<compile_context>
chip_gen: v7x
topology: tpu7x:2x2x1
jax: 0.10.0
libtpu: 0.0.40
codegen_flags: <defaults>
</compile_context>

<pallas_src>
import math
import jax
import jax.numpy as jnp
from jax.experimental import pallas as pl
from jax.experimental.pallas import tpu as pltpu

# ----- small, module-consistent hyperparameters -----
D_MODEL = 64            # d_model
NUM_HEADS = 4           # num_heads
HEAD_DIM = D_MODEL // NUM_HEADS
NUM_LAYERS = 2          # num_layers
FF_HIDDEN = 128         # ff_hidden_dim
MAX_SEQ = 16            # max_seq_len
VOCAB = 16              # vocab_size
VOCAB_PAD = 128         # pad fc_out to a full 128-lane store
BATCH = 2
SEQ = 8
LN_EPS = 1e-5           # torch.nn.LayerNorm default eps

LAYER_KEYS = ('wqkv', 'bqkv', 'wo', 'bo', 'g1', 'be1',
              'w1', 'bf1', 'w2', 'bf2', 'g2', 'be2')
PER_LAYER = len(LAYER_KEYS)


# ---------------------------------------------------------------------------
# Fused Pallas kernel (one batch element per grid step)
# ---------------------------------------------------------------------------
def _layer_norm(x, g, b):
    mu = jnp.mean(x, axis=-1, keepdims=True)
    var = jnp.mean(jnp.square(x - mu), axis=-1, keepdims=True)
    return (x - mu) * jax.lax.rsqrt(var + LN_EPS) * g + b


def fused_forward_kernel(*refs):
    """embed -> +PE -> NUM_LAYERS x TransformerBlock -> padded fc_out."""
    tok_ref, emb_ref, pe_ref = refs[0], refs[1], refs[2]
    layer_refs = refs[3:3 + NUM_LAYERS * PER_LAYER]
    fcw_ref, fcb_ref, o_ref = refs[3 + NUM_LAYERS * PER_LAYER:]

    S, D, H, dk = SEQ, D_MODEL, NUM_HEADS, HEAD_DIM
    scale = 1.0 / math.sqrt(dk)

    # ---- embedding gather as a one-hot matmul (stays on the MXU) ----
    tok = tok_ref[0]                                            # (S, 1) int32
    vocab_ids = jax.lax.broadcasted_iota(jnp.int32, (S, VOCAB), 1)
    onehot = (vocab_ids == tok).astype(jnp.float32)             # (S, V)
    x = jnp.dot(onehot, emb_ref[...], preferred_element_type=jnp.float32)
    x = x + pe_ref[...]                                         # (S, D)

    # ---- transformer blocks (statically unrolled) ----
    for li in range(NUM_LAYERS):
        (wqkv_r, bqkv_r, wo_r, bo_r, g1_r, be1_r,
         w1_r, bf1_r, w2_r, bf2_r, g2_r, be2_r) = \
            layer_refs[li * PER_LAYER:(li + 1) * PER_LAYER]

        # fused head-major QKV projection: one batched einsum over heads
        xh = jnp.broadcast_to(x, (H, S, D))
        qkv = jnp.einsum('hsd,hde->hse', xh, wqkv_r[...],
                         preferred_element_type=jnp.float32) + bqkv_r[...]  # (H,S,3dk)
        q = qkv[..., 0 * dk:1 * dk]
        k = qkv[..., 1 * dk:2 * dk]
        v = qkv[..., 2 * dk:3 * dk]

        # scaled dot-product attention, batched over heads (no mask, as in ref)
        s = jnp.einsum('hqd,hkd->hqk', q, k,
                       preferred_element_type=jnp.float32) * scale          # (H,S,S)
        s = s - jnp.max(s, axis=-1, keepdims=True)
        p = jnp.exp(s)
        p = p * pl.reciprocal(jnp.sum(p, axis=-1, keepdims=True), approx=True)
        ctx = jnp.einsum('hqk,hkd->hqd', p, v,
                         preferred_element_type=jnp.float32)                # (H,S,dk)

        # output projection: concat over heads == sum_h ctx_h @ Wo_h
        attn = jnp.sum(
            jnp.einsum('hsd,hde->hse', ctx, wo_r[...],
                       preferred_element_type=jnp.float32), axis=0) + bo_r[...]

        # TODO(synk): nn.Dropout treated as identity (inference / eval mode).
        x1 = _layer_norm(x + attn, g1_r[...], be1_r[...])

        h1 = jnp.dot(x1, w1_r[...], preferred_element_type=jnp.float32) + bf1_r[...]
        h1 = jnp.maximum(h1, 0.0)                                # ReLU
        ff = jnp.dot(h1, w2_r[...], preferred_element_type=jnp.float32) + bf2_r[...]
        x = _layer_norm(x1 + ff, g2_r[...], be2_r[...])

    # ---- vocab projection, padded to 128 lanes -> unmasked (lane-dense) store
    logits = jnp.dot(x, fcw_ref[...], preferred_element_type=jnp.float32) + fcb_ref[...]
    o_ref[0] = logits.astype(o_ref.dtype)


# ---------------------------------------------------------------------------
# pallas_call wrapper
# ---------------------------------------------------------------------------
def _const_spec(a):
    # Whole-array block, same block index at every grid step (no re-fetch).
    return pl.BlockSpec(a.shape, lambda b, n=a.ndim: (0,) * n)


def transformer_forward(tokens, params):
    B, S = tokens.shape
    tok3 = tokens.astype(jnp.int32).reshape(B, S, 1)
    pe = params['pe'][:S]

    weights = []
    for layer in params['layers']:
        weights += [layer[k] for k in LAYER_KEYS]
    inputs = [tok3, params['embedding'], pe] + weights + [params['fc_w'], params['fc_b']]

    in_specs = [pl.BlockSpec((1, S, 1), lambda b: (b, 0, 0))]
    in_specs += [_const_spec(a) for a in inputs[1:]]

    out = pl.pallas_call(
        fused_forward_kernel,
        out_shape=jax.ShapeDtypeStruct((B, S, VOCAB_PAD), jnp.float32),
        grid=(B,),
        in_specs=in_specs,
        out_specs=pl.BlockSpec((1, S, VOCAB_PAD), lambda b: (b, 0, 0)),
        compiler_params=pltpu.CompilerParams(
            dimension_semantics=("parallel",),
            vmem_limit_bytes=32 * 1024 * 1024),
    )(*inputs)
    return out[:, :, :VOCAB]                       # slice padded lanes back off


# ---------------------------------------------------------------------------
# Parameter construction (deterministic, PyTorch-style init)
# ---------------------------------------------------------------------------
def make_positional_encoding(max_len, d_model):
    position = jnp.arange(max_len, dtype=jnp.float32)[:, None]
    div_term = jnp.exp(jnp.arange(0, d_model, 2, dtype=jnp.float32)
                       * (-math.log(10000.0) / d_model))
    pe = jnp.zeros((max_len, d_model), dtype=jnp.float32)
    pe = pe.at[:, 0::2].set(jnp.sin(position * div_term))
    pe = pe.at[:, 1::2].set(jnp.cos(position * div_term))
    return pe


def _linear_init(key, fan_in, fan_out):
    kw, kb = jax.random.split(key)
    bound = 1.0 / math.sqrt(fan_in)
    w = jax.random.uniform(kw, (fan_in, fan_out), jnp.float32, -bound, bound)
    b = jax.random.uniform(kb, (1, fan_out), jnp.float32, -bound, bound)
    return w, b


def _head_major(w, b):
    """(D, D)/(1, D) -> (H, D, dk)/(H, 1, dk), matching torch's head split."""
    w_h = w.reshape(D_MODEL, NUM_HEADS, HEAD_DIM).transpose(1, 0, 2)
    b_h = b.reshape(NUM_HEADS, 1, HEAD_DIM)
    return w_h, b_h


def init_params(key):
    keys = jax.random.split(key, 2 + NUM_LAYERS)
    fc_w, fc_b = _linear_init(keys[1], D_MODEL, VOCAB)
    params = {
        'embedding': jax.random.normal(keys[0], (VOCAB, D_MODEL), jnp.float32),
        'pe': make_positional_encoding(MAX_SEQ, D_MODEL),
        # vocab projection padded to 128 output lanes (sliced back in wrapper)
        'fc_w': jnp.zeros((D_MODEL, VOCAB_PAD), jnp.float32).at[:, :VOCAB].set(fc_w),
        'fc_b': jnp.zeros((1, VOCAB_PAD), jnp.float32).at[:, :VOCAB].set(fc_b),
        'layers': [],
    }
    for li in range(NUM_LAYERS):
        lkeys = jax.random.split(keys[2 + li], 6)
        wq, bq = _linear_init(lkeys[0], D_MODEL, D_MODEL)
        wk, bk = _linear_init(lkeys[1], D_MODEL, D_MODEL)
        wv, bv = _linear_init(lkeys[2], D_MODEL, D_MODEL)
        wo, bo = _linear_init(lkeys[3], D_MODEL, D_MODEL)
        w1, bf1 = _linear_init(lkeys[4], D_MODEL, FF_HIDDEN)
        w2, bf2 = _linear_init(lkeys[5], FF_HIDDEN, D_MODEL)
        wq_h, bq_h = _head_major(wq, bq)
        wk_h, bk_h = _head_major(wk, bk)
        wv_h, bv_h = _head_major(wv, bv)
        params['layers'].append({
            # fused head-major QKV: (H, D, 3*dk) / (H, 1, 3*dk)
            'wqkv': jnp.concatenate([wq_h, wk_h, wv_h], axis=-1),
            'bqkv': jnp.concatenate([bq_h, bk_h, bv_h], axis=-1),
            # head-major output projection: rows h*dk:(h+1)*dk of Wo
            'wo': wo.reshape(NUM_HEADS, HEAD_DIM, D_MODEL),
            'bo': bo,
            'g1': jnp.ones((1, D_MODEL), jnp.float32),
            'be1': jnp.zeros((1, D_MODEL), jnp.float32),
            'w1': w1, 'bf1': bf1, 'w2': w2, 'bf2': bf2,
            'g2': jnp.ones((1, D_MODEL), jnp.float32),
            'be2': jnp.zeros((1, D_MODEL), jnp.float32),
        })
    return params


# ---------------------------------------------------------------------------
if __name__ == "__main__":
    key = jax.random.PRNGKey(0)
    pkey, tkey = jax.random.split(key)
    params = init_params(pkey)
    tokens = jax.random.randint(tkey, (BATCH, SEQ), 0, VOCAB, dtype=jnp.int32)

    fwd = jax.jit(transformer_forward)
    logits = fwd(tokens, params)
    jax.block_until_ready(logits)

    assert logits.shape == (BATCH, SEQ, VOCAB), logits.shape
    assert bool(jnp.all(jnp.isfinite(logits)))
    print("KERNEL_OK")
</pallas_src>

<mosaic_0001>
module attributes {stable_mosaic.version = 11 : i64} {
  func.func @fused_forward_kernel(%arg0: i32, %arg1: memref<1x8x1xi32, #tpu.memory_space<vmem>>, %arg2: memref<16x64xf32, #tpu.memory_space<vmem>>, %arg3: memref<8x64xf32, #tpu.memory_space<vmem>>, %arg4: memref<4x64x48xf32, #tpu.memory_space<vmem>>, %arg5: memref<4x1x48xf32, #tpu.memory_space<vmem>>, %arg6: memref<4x16x64xf32, #tpu.memory_space<vmem>>, %arg7: memref<1x64xf32, #tpu.memory_space<vmem>>, %arg8: memref<1x64xf32, #tpu.memory_space<vmem>>, %arg9: memref<1x64xf32, #tpu.memory_space<vmem>>, %arg10: memref<64x128xf32, #tpu.memory_space<vmem>>, %arg11: memref<1x128xf32, #tpu.memory_space<vmem>>, %arg12: memref<128x64xf32, #tpu.memory_space<vmem>>, %arg13: memref<1x64xf32, #tpu.memory_space<vmem>>, %arg14: memref<1x64xf32, #tpu.memory_space<vmem>>, %arg15: memref<1x64xf32, #tpu.memory_space<vmem>>, %arg16: memref<4x64x48xf32, #tpu.memory_space<vmem>>, %arg17: memref<4x1x48xf32, #tpu.memory_space<vmem>>, %arg18: memref<4x16x64xf32, #tpu.memory_space<vmem>>, %arg19: memref<1x64xf32, #tpu.memory_space<vmem>>, %arg20: memref<1x64xf32, #tpu.memory_space<vmem>>, %arg21: memref<1x64xf32, #tpu.memory_space<vmem>>, %arg22: memref<64x128xf32, #tpu.memory_space<vmem>>, %arg23: memref<1x128xf32, #tpu.memory_space<vmem>>, %arg24: memref<128x64xf32, #tpu.memory_space<vmem>>, %arg25: memref<1x64xf32, #tpu.memory_space<vmem>>, %arg26: memref<1x64xf32, #tpu.memory_space<vmem>>, %arg27: memref<1x64xf32, #tpu.memory_space<vmem>>, %arg28: memref<64x128xf32, #tpu.memory_space<vmem>>, %arg29: memref<1x128xf32, #tpu.memory_space<vmem>>, %arg30: memref<1x8x128xf32, #tpu.memory_space<vmem>>) attributes {dimension_semantics = [#tpu.dimension_semantics<parallel>], iteration_bounds = array<i64: 2>, scalar_prefetch = 0 : i64, scratch_operands = 0 : i64, tpu.core_type = #tpu.core_type<tc>, window_params = [{transform_indices = @transform_0, window_bounds = array<i64: 1, 8, 1>}, {pipeline_mode = #tpu.pipeline_mode<synchronous>, transform_indices = @transform_1, window_bounds = array<i64: 16, 64>}, {pipeline_mode = #tpu.pipeline_mode<synchronous>, transform_indices = @transform_2, window_bounds = array<i64: 8, 64>}, {pipeline_mode = #tpu.pipeline_mode<synchronous>, transform_indices = @transform_3, window_bounds = array<i64: 4, 64, 48>}, {pipeline_mode = #tpu.pipeline_mode<synchronous>, transform_indices = @transform_4, window_bounds = array<i64: 4, 1, 48>}, {pipeline_mode = #tpu.pipeline_mode<synchronous>, transform_indices = @transform_5, window_bounds = array<i64: 4, 16, 64>}, {pipeline_mode = #tpu.pipeline_mode<synchronous>, transform_indices = @transform_6, window_bounds = array<i64: 1, 64>}, {pipeline_mode = #tpu.pipeline_mode<synchronous>, transform_indices = @transform_7, window_bounds = array<i64: 1, 64>}, {pipeline_mode = #tpu.pipeline_mode<synchronous>, transform_indices = @transform_8, window_bounds = array<i64: 1, 64>}, {pipeline_mode = #tpu.pipeline_mode<synchronous>, transform_indices = @transform_9, window_bounds = array<i64: 64, 128>}, {pipeline_mode = #tpu.pipeline_mode<synchronous>, transform_indices = @transform_10, window_bounds = array<i64: 1, 128>}, {pipeline_mode = #tpu.pipeline_mode<synchronous>, transform_indices = @transform_11, window_bounds = array<i64: 128, 64>}, {pipeline_mode = #tpu.pipeline_mode<synchronous>, transform_indices = @transform_12, window_bounds = array<i64: 1, 64>}, {pipeline_mode = #tpu.pipeline_mode<synchronous>, transform_indices = @transform_13, window_bounds = array<i64: 1, 64>}, {pipeline_mode = #tpu.pipeline_mode<synchronous>, transform_indices = @transform_14, window_bounds = array<i64: 1, 64>}, {pipeline_mode = #tpu.pipeline_mode<synchronous>, transform_indices = @transform_15, window_bounds = array<i64: 4, 64, 48>}, {pipeline_mode = #tpu.pipeline_mode<synchronous>, transform_indices = @transform_16, window_bounds = array<i64: 4, 1, 48>}, {pipeline_mode = #tpu.pipeline_mode<synchronous>, transform_indices = @transform_17, window_bounds = array<i64: 4, 16, 64>}, {pipeline_mode = #tpu.pipeline_mode<synchronous>, transform_indices = @transform_18, window_bounds = array<i64: 1, 64>}, {pipeline_mode = #tpu.pipeline_mode<synchronous>, transform_indices = @transform_19, window_bounds = array<i64: 1, 64>}, {pipeline_mode = #tpu.pipeline_mode<synchronous>, transform_indices = @transform_20, window_bounds = array<i64: 1, 64>}, {pipeline_mode = #tpu.pipeline_mode<synchronous>, transform_indices = @transform_21, window_bounds = array<i64: 64, 128>}, {pipeline_mode = #tpu.pipeline_mode<synchronous>, transform_indices = @transform_22, window_bounds = array<i64: 1, 128>}, {pipeline_mode = #tpu.pipeline_mode<synchronous>, transform_indices = @transform_23, window_bounds = array<i64: 128, 64>}, {pipeline_mode = #tpu.pipeline_mode<synchronous>, transform_indices = @transform_24, window_bounds = array<i64: 1, 64>}, {pipeline_mode = #tpu.pipeline_mode<synchronous>, transform_indices = @transform_25, window_bounds = array<i64: 1, 64>}, {pipeline_mode = #tpu.pipeline_mode<synchronous>, transform_indices = @transform_26, window_bounds = array<i64: 1, 64>}, {pipeline_mode = #tpu.pipeline_mode<synchronous>, transform_indices = @transform_27, window_bounds = array<i64: 64, 128>}, {pipeline_mode = #tpu.pipeline_mode<synchronous>, transform_indices = @transform_28, window_bounds = array<i64: 1, 128>}, {transform_indices = @transform_29, window_bounds = array<i64: 1, 8, 128>}]} {
    %c0 = arith.constant 0 : index
    %c0_0 = arith.constant 0 : index
    %c0_1 = arith.constant 0 : index
    %0 = vector.load %arg1[%c0, %c0_0, %c0_1] : memref<1x8x1xi32, #tpu.memory_space<vmem>>, vector<1x8x1xi32>
    %1 = vector.shape_cast %0 : vector<1x8x1xi32> to vector<8x1xi32>
    %2 = tpu.iota {dimensions = array<i32: 1>} : vector<8x16xi32>
    %3 = vector.broadcast %1 : vector<8x1xi32> to vector<8x16xi32>
    %4 = arith.cmpi eq, %2, %3 : vector<8x16xi32>
    %5 = arith.extui %4 : vector<8x16xi1> to vector<8x16xi32>
    %6 = arith.sitofp %5 : vector<8x16xi32> to vector<8x16xf32>
    %c0_2 = arith.constant 0 : index
    %c0_3 = arith.constant 0 : index
    %7 = vector.load %arg2[%c0_2, %c0_3] : memref<16x64xf32, #tpu.memory_space<vmem>>, vector<16x64xf32>
    %cst = arith.constant dense<0.000000e+00> : vector<8x64xf32>
    %8 = tpu.matmul %6, %7, %cst {dimension_numbers = #tpu.dot_dimension_numbers<[1], [0], [0], [1], [0, 0, 1, 1], [], []>} : vector<8x16xf32>, vector<16x64xf32>, vector<8x64xf32> -> vector<8x64xf32>
    %c0_4 = arith.constant 0 : index
    %c0_5 = arith.constant 0 : index
    %9 = vector.load %arg3[%c0_4, %c0_5] : memref<8x64xf32, #tpu.memory_space<vmem>>, vector<8x64xf32>
    %10 = arith.addf %8, %9 : vector<8x64xf32>
    %11 = vector.shape_cast %10 : vector<8x64xf32> to vector<1x8x64xf32>
    %12 = vector.broadcast %11 : vector<1x8x64xf32> to vector<4x8x64xf32>
    %c0_6 = arith.constant 0 : index
    %c0_7 = arith.constant 0 : index
    %c0_8 = arith.constant 0 : index
    %13 = vector.load %arg4[%c0_6, %c0_7, %c0_8] : memref<4x64x48xf32, #tpu.memory_space<vmem>>, vector<4x64x48xf32>
    "tpu.trace_start"() <{level = 10 : i32, message = "hsd,hde->hse"}> : () -> ()
    %cst_9 = arith.constant dense<0.000000e+00> : vector<4x8x48xf32>
    %14 = tpu.matmul %12, %13, %cst_9 {dimension_numbers = #tpu.dot_dimension_numbers<[2], [1], [1], [2], [0, 0, 0, 1, 1, 2], [0], [0]>} : vector<4x8x64xf32>, vector<4x64x48xf32>, vector<4x8x48xf32> -> vector<4x8x48xf32>
    "tpu.trace_stop"() : () -> ()
    %c0_10 = arith.constant 0 : index
    %c0_11 = arith.constant 0 : index
    %c0_12 = arith.constant 0 : index
    %15 = vector.load %arg5[%c0_10, %c0_11, %c0_12] : memref<4x1x48xf32, #tpu.memory_space<vmem>>, vector<4x1x48xf32>
    %16 = vector.broadcast %15 : vector<4x1x48xf32> to vector<4x8x48xf32>
    %17 = arith.addf %14, %16 : vector<4x8x48xf32>
    %18 = vector.extract_strided_slice %17 {offsets = [0, 0, 0], sizes = [4, 8, 16], strides = [1, 1, 1]} : vector<4x8x48xf32> to vector<4x8x16xf32>
    %19 = vector.extract_strided_slice %17 {offsets = [0, 0, 16], sizes = [4, 8, 16], strides = [1, 1, 1]} : vector<4x8x48xf32> to vector<4x8x16xf32>
    %20 = vector.extract_strided_slice %17 {offsets = [0, 0, 32], sizes = [4, 8, 16], strides = [1, 1, 1]} : vector<4x8x48xf32> to vector<4x8x16xf32>
    "tpu.trace_start"() <{level = 10 : i32, message = "hqd,hkd->hqk"}> : () -> ()
    %cst_13 = arith.constant dense<0.000000e+00> : vector<4x8x8xf32>
    %21 = tpu.matmul %18, %19, %cst_13 {dimension_numbers = #tpu.dot_dimension_numbers<[2], [2], [1], [1], [0, 0, 0, 1, 1, 1], [0], [0]>} : vector<4x8x16xf32>, vector<4x8x16xf32>, vector<4x8x8xf32> -> vector<4x8x8xf32>
    "tpu.trace_stop"() : () -> ()
    %cst_14 = arith.constant 2.500000e-01 : f32
    %22 = vector.broadcast %cst_14 : f32 to vector<4x8x8xf32>
    %23 = arith.mulf %21, %22 : vector<4x8x8xf32>
    %cst_15 = arith.constant dense<0xFF800000> : vector<4x8xf32>
    %24 = vector.multi_reduction <maximumf>, %23, %cst_15 [2] : vector<4x8x8xf32> to vector<4x8xf32>
    %25 = vector.shape_cast %24 : vector<4x8xf32> to vector<4x8x1xf32>
    %26 = vector.broadcast %25 : vector<4x8x1xf32> to vector<4x8x8xf32>
    %27 = arith.subf %23, %26 : vector<4x8x8xf32>
    %28 = math.exp %27 : vector<4x8x8xf32>
    %cst_16 = arith.constant dense<0.000000e+00> : vector<4x8xf32>
    %29 = vector.multi_reduction <add>, %28, %cst_16 [2] : vector<4x8x8xf32> to vector<4x8xf32>
    %30 = vector.shape_cast %29 : vector<4x8xf32> to vector<4x8x1xf32>
    %31 = tpu.reciprocal %30 {approx = true} : vector<4x8x1xf32> -> vector<4x8x1xf32>
    %32 = vector.broadcast %31 : vector<4x8x1xf32> to vector<4x8x8xf32>
    %33 = arith.mulf %28, %32 : vector<4x8x8xf32>
    "tpu.trace_start"() <{level = 10 : i32, message = "hqk,hkd->hqd"}> : () -> ()
    %cst_17 = arith.constant dense<0.000000e+00> : vector<4x8x16xf32>
    %34 = tpu.matmul %33, %20, %cst_17 {dimension_numbers = #tpu.dot_dimension_numbers<[2], [1], [1], [2], [0, 0, 0, 1, 1, 2], [0], [0]>} : vector<4x8x8xf32>, vector<4x8x16xf32>, vector<4x8x16xf32> -> vector<4x8x16xf32>
    "tpu.trace_stop"() : () -> ()
    %c0_18 = arith.constant 0 : index
    %c0_19 = arith.constant 0 : index
    %c0_20 = arith.constant 0 : index
    %35 = vector.load %arg6[%c0_18, %c0_19, %c0_20] : memref<4x16x64xf32, #tpu.memory_space<vmem>>, vector<4x16x64xf32>
    "tpu.trace_start"() <{level = 10 : i32, message = "hsd,hde->hse"}> : () -> ()
    %cst_21 = arith.constant dense<0.000000e+00> : vector<4x8x64xf32>
    %36 = tpu.matmul %34, %35, %cst_21 {dimension_numbers = #tpu.dot_dimension_numbers<[2], [1], [1], [2], [0, 0, 0, 1, 1, 2], [0], [0]>} : vector<4x8x16xf32>, vector<4x16x64xf32>, vector<4x8x64xf32> -> vector<4x8x64xf32>
    "tpu.trace_stop"() : () -> ()
    %cst_22 = arith.constant dense<0.000000e+00> : vector<8x64xf32>
    %37 = vector.multi_reduction <add>, %36, %cst_22 [0] : vector<4x8x64xf32> to vector<8x64xf32>
    %c0_23 = arith.constant 0 : index
    %c0_24 = arith.constant 0 : index
    %38 = vector.load %arg7[%c0_23, %c0_24] : memref<1x64xf32, #tpu.memory_space<vmem>>, vector<1x64xf32>
    %39 = vector.broadcast %38 : vector<1x64xf32> to vector<8x64xf32>
    %40 = arith.addf %37, %39 : vector<8x64xf32>
    %41 = arith.addf %10, %40 : vector<8x64xf32>
    %c0_25 = arith.constant 0 : index
    %c0_26 = arith.constant 0 : index
    %42 = vector.load %arg8[%c0_25, %c0_26] : memref<1x64xf32, #tpu.memory_space<vmem>>, vector<1x64xf32>
    %c0_27 = arith.constant 0 : index
    %c0_28 = arith.constant 0 : index
    %43 = vector.load %arg9[%c0_27, %c0_28] : memref<1x64xf32, #tpu.memory_space<vmem>>, vector<1x64xf32>
    %cst_29 = arith.constant dense<0.000000e+00> : vector<8xf32>
    %44 = vector.multi_reduction <add>, %41, %cst_29 [1] : vector<8x64xf32> to vector<8xf32>
    %45 = vector.shape_cast %44 : vector<8xf32> to vector<8x1xf32>
    %cst_30 = arith.constant 6.400000e+01 : f32
    %46 = vector.broadcast %cst_30 : f32 to vector<8x1xf32>
    %47 = arith.divf %45, %46 : vector<8x1xf32>
    %48 = vector.broadcast %47 : vector<8x1xf32> to vector<8x64xf32>
    %49 = arith.subf %41, %48 : vector<8x64xf32>
    %50 = arith.mulf %49, %49 : vector<8x64xf32>
    %cst_31 = arith.constant dense<0.000000e+00> : vector<8xf32>
    %51 = vector.multi_reduction <add>, %50, %cst_31 [1] : vector<8x64xf32> to vector<8xf32>
    %52 = vector.shape_cast %51 : vector<8xf32> to vector<8x1xf32>
    %cst_32 = arith.constant 6.400000e+01 : f32
    %53 = vector.broadcast %cst_32 : f32 to vector<8x1xf32>
    %54 = arith.divf %52, %53 : vector<8x1xf32>
    %55 = vector.broadcast %47 : vector<8x1xf32> to vector<8x64xf32>
    %56 = arith.subf %41, %55 : vector<8x64xf32>
    %cst_33 = arith.constant 9.99999974E-6 : f32
    %57 = vector.broadcast %cst_33 : f32 to vector<8x1xf32>
    %58 = arith.addf %54, %57 : vector<8x1xf32>
    %59 = math.rsqrt %58 : vector<8x1xf32>
    %60 = vector.broadcast %59 : vector<8x1xf32> to vector<8x64xf32>
    %61 = arith.mulf %56, %60 : vector<8x64xf32>
    %62 = vector.broadcast %42 : vector<1x64xf32> to vector<8x64xf32>
    %63 = arith.mulf %61, %62 : vector<8x64xf32>
    %64 = vector.broadcast %43 : vector<1x64xf32> to vector<8x64xf32>
    %65 = arith.addf %63, %64 : vector<8x64xf32>
    %c0_34 = arith.constant 0 : index
    %c0_35 = arith.constant 0 : index
    %66 = vector.load %arg10[%c0_34, %c0_35] : memref<64x128xf32, #tpu.memory_space<vmem>>, vector<64x128xf32>
    %cst_36 = arith.constant dense<0.000000e+00> : vector<8x128xf32>
    %67 = tpu.matmul %65, %66, %cst_36 {dimension_numbers = #tpu.dot_dimension_numbers<[1], [0], [0], [1], [0, 0, 1, 1], [], []>} : vector<8x64xf32>, vector<64x128xf32>, vector<8x128xf32> -> vector<8x128xf32>
    %c0_37 = arith.constant 0 : index
    %c0_38 = arith.constant 0 : index
    %68 = vector.load %arg11[%c0_37, %c0_38] : memref<1x128xf32, #tpu.memory_space<vmem>>, vector<1x128xf32>
    %69 = vector.broadcast %68 : vector<1x128xf32> to vector<8x128xf32>
    %70 = arith.addf %67, %69 : vector<8x128xf32>
    %cst_39 = arith.constant 0.000000e+00 : f32
    %71 = vector.broadcast %cst_39 : f32 to vector<8x128xf32>
    %72 = arith.maximumf %70, %71 : vector<8x128xf32>
    %c0_40 = arith.constant 0 : index
    %c0_41 = arith.constant 0 : index
    %73 = vector.load %arg12[%c0_40, %c0_41] : memref<128x64xf32, #tpu.memory_space<vmem>>, vector<128x64xf32>
    %cst_42 = arith.constant dense<0.000000e+00> : vector<8x64xf32>
    %74 = tpu.matmul %72, %73, %cst_42 {dimension_numbers = #tpu.dot_dimension_numbers<[1], [0], [0], [1], [0, 0, 1, 1], [], []>} : vector<8x128xf32>, vector<128x64xf32>, vector<8x64xf32> -> vector<8x64xf32>
    %c0_43 = arith.constant 0 : index
    %c0_44 = arith.constant 0 : index
    %75 = vector.load %arg13[%c0_43, %c0_44] : memref<1x64xf32, #tpu.memory_space<vmem>>, vector<1x64xf32>
    %76 = vector.broadcast %75 : vector<1x64xf32> to vector<8x64xf32>
    %77 = arith.addf %74, %76 : vector<8x64xf32>
    %78 = arith.addf %65, %77 : vector<8x64xf32>
    %c0_45 = arith.constant 0 : index
    %c0_46 = arith.constant 0 : index
    %79 = vector.load %arg14[%c0_45, %c0_46] : memref<1x64xf32, #tpu.memory_space<vmem>>, vector<1x64xf32>
    %c0_47 = arith.constant 0 : index
    %c0_48 = arith.constant 0 : index
    %80 = vector.load %arg15[%c0_47, %c0_48] : memref<1x64xf32, #tpu.memory_space<vmem>>, vector<1x64xf32>
    %cst_49 = arith.constant dense<0.000000e+00> : vector<8xf32>
    %81 = vector.multi_reduction <add>, %78, %cst_49 [1] : vector<8x64xf32> to vector<8xf32>
    %82 = vector.shape_cast %81 : vector<8xf32> to vector<8x1xf32>
    %cst_50 = arith.constant 6.400000e+01 : f32
    %83 = vector.broadcast %cst_50 : f32 to vector<8x1xf32>
    %84 = arith.divf %82, %83 : vector<8x1xf32>
    %85 = vector.broadcast %84 : vector<8x1xf32> to vector<8x64xf32>
    %86 = arith.subf %78, %85 : vector<8x64xf32>
    %87 = arith.mulf %86, %86 : vector<8x64xf32>
    %cst_51 = arith.constant dense<0.000000e+00> : vector<8xf32>
    %88 = vector.multi_reduction <add>, %87, %cst_51 [1] : vector<8x64xf32> to vector<8xf32>
    %89 = vector.shape_cast %88 : vector<8xf32> to vector<8x1xf32>
    %cst_52 = arith.constant 6.400000e+01 : f32
    %90 = vector.broadcast %cst_52 : f32 to vector<8x1xf32>
    %91 = arith.divf %89, %90 : vector<8x1xf32>
    %92 = vector.broadcast %84 : vector<8x1xf32> to vector<8x64xf32>
    %93 = arith.subf %78, %92 : vector<8x64xf32>
    %cst_53 = arith.constant 9.99999974E-6 : f32
    %94 = vector.broadcast %cst_53 : f32 to vector<8x1xf32>
    %95 = arith.addf %91, %94 : vector<8x1xf32>
    %96 = math.rsqrt %95 : vector<8x1xf32>
    %97 = vector.broadcast %96 : vector<8x1xf32> to vector<8x64xf32>
    %98 = arith.mulf %93, %97 : vector<8x64xf32>
    %99 = vector.broadcast %79 : vector<1x64xf32> to vector<8x64xf32>
    %100 = arith.mulf %98, %99 : vector<8x64xf32>
    %101 = vector.broadcast %80 : vector<1x64xf32> to vector<8x64xf32>
    %102 = arith.addf %100, %101 : vector<8x64xf32>
    %103 = vector.shape_cast %102 : vector<8x64xf32> to vector<1x8x64xf32>
    %104 = vector.broadcast %103 : vector<1x8x64xf32> to vector<4x8x64xf32>
    %c0_54 = arith.constant 0 : index
    %c0_55 = arith.constant 0 : index
    %c0_56 = arith.constant 0 : index
    %105 = vector.load %arg16[%c0_54, %c0_55, %c0_56] : memref<4x64x48xf32, #tpu.memory_space<vmem>>, vector<4x64x48xf32>
    "tpu.trace_start"() <{level = 10 : i32, message = "hsd,hde->hse"}> : () -> ()
    %cst_57 = arith.constant dense<0.000000e+00> : vector<4x8x48xf32>
    %106 = tpu.matmul %104, %105, %cst_57 {dimension_numbers = #tpu.dot_dimension_numbers<[2], [1], [1], [2], [0, 0, 0, 1, 1, 2], [0], [0]>} : vector<4x8x64xf32>, vector<4x64x48xf32>, vector<4x8x48xf32> -> vector<4x8x48xf32>
    "tpu.trace_stop"() : () -> ()
    %c0_58 = arith.constant 0 : index
    %c0_59 = arith.constant 0 : index
    %c0_60 = arith.constant 0 : index
    %107 = vector.load %arg17[%c0_58, %c0_59, %c0_60] : memref<4x1x48xf32, #tpu.memory_space<vmem>>, vector<4x1x48xf32>
    %108 = vector.broadcast %107 : vector<4x1x48xf32> to vector<4x8x48xf32>
    %109 = arith.addf %106, %108 : vector<4x8x48xf32>
    %110 = vector.extract_strided_slice %109 {offsets = [0, 0, 0], sizes = [4, 8, 16], strides = [1, 1, 1]} : vector<4x8x48xf32> to vector<4x8x16xf32>
    %111 = vector.extract_strided_slice %109 {offsets = [0, 0, 16], sizes = [4, 8, 16], strides = [1, 1, 1]} : vector<4x8x48xf32> to vector<4x8x16xf32>
    %112 = vector.extract_strided_slice %109 {offsets = [0, 0, 32], sizes = [4, 8, 16], strides = [1, 1, 1]} : vector<4x8x48xf32> to vector<4x8x16xf32>
    "tpu.trace_start"() <{level = 10 : i32, message = "hqd,hkd->hqk"}> : () -> ()
    %cst_61 = arith.constant dense<0.000000e+00> : vector<4x8x8xf32>
    %113 = tpu.matmul %110, %111, %cst_61 {dimension_numbers = #tpu.dot_dimension_numbers<[2], [2], [1], [1], [0, 0, 0, 1, 1, 1], [0], [0]>} : vector<4x8x16xf32>, vector<4x8x16xf32>, vector<4x8x8xf32> -> vector<4x8x8xf32>
    "tpu.trace_stop"() : () -> ()
    %cst_62 = arith.constant 2.500000e-01 : f32
    %114 = vector.broadcast %cst_62 : f32 to vector<4x8x8xf32>
    %115 = arith.mulf %113, %114 : vector<4x8x8xf32>
    %cst_63 = arith.constant dense<0xFF800000> : vector<4x8xf32>
    %116 = vector.multi_reduction <maximumf>, %115, %cst_63 [2] : vector<4x8x8xf32> to vector<4x8xf32>
    %117 = vector.shape_cast %116 : vector<4x8xf32> to vector<4x8x1xf32>
    %118 = vector.broadcast %117 : vector<4x8x1xf32> to vector<4x8x8xf32>
    %119 = arith.subf %115, %118 : vector<4x8x8xf32>
    %120 = math.exp %119 : vector<4x8x8xf32>
    %cst_64 = arith.constant dense<0.000000e+00> : vector<4x8xf32>
    %121 = vector.multi_reduction <add>, %120, %cst_64 [2] : vector<4x8x8xf32> to vector<4x8xf32>
    %122 = vector.shape_cast %121 : vector<4x8xf32> to vector<4x8x1xf32>
    %123 = tpu.reciprocal %122 {approx = true} : vector<4x8x1xf32> -> vector<4x8x1xf32>
    %124 = vector.broadcast %123 : vector<4x8x1xf32> to vector<4x8x8xf32>
    %125 = arith.mulf %120, %124 : vector<4x8x8xf32>
    "tpu.trace_start"() <{level = 10 : i32, message = "hqk,hkd->hqd"}> : () -> ()
    %cst_65 = arith.constant dense<0.000000e+00> : vector<4x8x16xf32>
    %126 = tpu.matmul %125, %112, %cst_65 {dimension_numbers = #tpu.dot_dimension_numbers<[2], [1], [1], [2], [0, 0, 0, 1, 1, 2], [0], [0]>} : vector<4x8x8xf32>, vector<4x8x16xf32>, vector<4x8x16xf32> -> vector<4x8x16xf32>
    "tpu.trace_stop"() : () -> ()
    %c0_66 = arith.constant 0 : index
    %c0_67 = arith.constant 0 : index
    %c0_68 = arith.constant 0 : index
    %127 = vector.load %arg18[%c0_66, %c0_67, %c0_68] : memref<4x16x64xf32, #tpu.memory_space<vmem>>, vector<4x16x64xf32>
    "tpu.trace_start"() <{level = 10 : i32, message = "hsd,hde->hse"}> : () -> ()
    %cst_69 = arith.constant dense<0.000000e+00> : vector<4x8x64xf32>
    %128 = tpu.matmul %126, %127, %cst_69 {dimension_numbers = #tpu.dot_dimension_numbers<[2], [1], [1], [2], [0, 0, 0, 1, 1, 2], [0], [0]>} : vector<4x8x16xf32>, vector<4x16x64xf32>, vector<4x8x64xf32> -> vector<4x8x64xf32>
    "tpu.trace_stop"() : () -> ()
    %cst_70 = arith.constant dense<0.000000e+00> : vector<8x64xf32>
    %129 = vector.multi_reduction <add>, %128, %cst_70 [0] : vector<4x8x64xf32> to vector<8x64xf32>
    %c0_71 = arith.constant 0 : index
    %c0_72 = arith.constant 0 : index
    %130 = vector.load %arg19[%c0_71, %c0_72] : memref<1x64xf32, #tpu.memory_space<vmem>>, vector<1x64xf32>
    %131 = vector.broadcast %130 : vector<1x64xf32> to vector<8x64xf32>
    %132 = arith.addf %129, %131 : vector<8x64xf32>
    %133 = arith.addf %102, %132 : vector<8x64xf32>
    %c0_73 = arith.constant 0 : index
    %c0_74 = arith.constant 0 : index
    %134 = vector.load %arg20[%c0_73, %c0_74] : memref<1x64xf32, #tpu.memory_space<vmem>>, vector<1x64xf32>
    %c0_75 = arith.constant 0 : index
    %c0_76 = arith.constant 0 : index
    %135 = vector.load %arg21[%c0_75, %c0_76] : memref<1x64xf32, #tpu.memory_space<vmem>>, vector<1x64xf32>
    %cst_77 = arith.constant dense<0.000000e+00> : vector<8xf32>
    %136 = vector.multi_reduction <add>, %133, %cst_77 [1] : vector<8x64xf32> to vector<8xf32>
    %137 = vector.shape_cast %136 : vector<8xf32> to vector<8x1xf32>
    %cst_78 = arith.constant 6.400000e+01 : f32
    %138 = vector.broadcast %cst_78 : f32 to vector<8x1xf32>
    %139 = arith.divf %137, %138 : vector<8x1xf32>
    %140 = vector.broadcast %139 : vector<8x1xf32> to vector<8x64xf32>
    %141 = arith.subf %133, %140 : vector<8x64xf32>
    %142 = arith.mulf %141, %141 : vector<8x64xf32>
    %cst_79 = arith.constant dense<0.000000e+00> : vector<8xf32>
    %143 = vector.multi_reduction <add>, %142, %cst_79 [1] : vector<8x64xf32> to vector<8xf32>
    %144 = vector.shape_cast %143 : vector<8xf32> to vector<8x1xf32>
    %cst_80 = arith.constant 6.400000e+01 : f32
    %145 = vector.broadcast %cst_80 : f32 to vector<8x1xf32>
    %146 = arith.divf %144, %145 : vector<8x1xf32>
    %147 = vector.broadcast %139 : vector<8x1xf32> to vector<8x64xf32>
    %148 = arith.subf %133, %147 : vector<8x64xf32>
    %cst_81 = arith.constant 9.99999974E-6 : f32
    %149 = vector.broadcast %cst_81 : f32 to vector<8x1xf32>
    %150 = arith.addf %146, %149 : vector<8x1xf32>
    %151 = math.rsqrt %150 : vector<8x1xf32>
    %152 = vector.broadcast %151 : vector<8x1xf32> to vector<8x64xf32>
    %153 = arith.mulf %148, %152 : vector<8x64xf32>
    %154 = vector.broadcast %134 : vector<1x64xf32> to vector<8x64xf32>
    %155 = arith.mulf %153, %154 : vector<8x64xf32>
    %156 = vector.broadcast %135 : vector<1x64xf32> to vector<8x64xf32>
    %157 = arith.addf %155, %156 : vector<8x64xf32>
    %c0_82 = arith.constant 0 : index
    %c0_83 = arith.constant 0 : index
    %158 = vector.load %arg22[%c0_82, %c0_83] : memref<64x128xf32, #tpu.memory_space<vmem>>, vector<64x128xf32>
    %cst_84 = arith.constant dense<0.000000e+00> : vector<8x128xf32>
    %159 = tpu.matmul %157, %158, %cst_84 {dimension_numbers = #tpu.dot_dimension_numbers<[1], [0], [0], [1], [0, 0, 1, 1], [], []>} : vector<8x64xf32>, vector<64x128xf32>, vector<8x128xf32> -> vector<8x128xf32>
    %c0_85 = arith.constant 0 : index
    %c0_86 = arith.constant 0 : index
    %160 = vector.load %arg23[%c0_85, %c0_86] : memref<1x128xf32, #tpu.memory_space<vmem>>, vector<1x128xf32>
    %161 = vector.broadcast %160 : vector<1x128xf32> to vector<8x128xf32>
    %162 = arith.addf %159, %161 : vector<8x128xf32>
    %cst_87 = arith.constant 0.000000e+00 : f32
    %163 = vector.broadcast %cst_87 : f32 to vector<8x128xf32>
    %164 = arith.maximumf %162, %163 : vector<8x128xf32>
    %c0_88 = arith.constant 0 : index
    %c0_89 = arith.constant 0 : index
    %165 = vector.load %arg24[%c0_88, %c0_89] : memref<128x64xf32, #tpu.memory_space<vmem>>, vector<128x64xf32>
    %cst_90 = arith.constant dense<0.000000e+00> : vector<8x64xf32>
    %166 = tpu.matmul %164, %165, %cst_90 {dimension_numbers = #tpu.dot_dimension_numbers<[1], [0], [0], [1], [0, 0, 1, 1], [], []>} : vector<8x128xf32>, vector<128x64xf32>, vector<8x64xf32> -> vector<8x64xf32>
    %c0_91 = arith.constant 0 : index
    %c0_92 = arith.constant 0 : index
    %167 = vector.load %arg25[%c0_91, %c0_92] : memref<1x64xf32, #tpu.memory_space<vmem>>, vector<1x64xf32>
    %168 = vector.broadcast %167 : vector<1x64xf32> to vector<8x64xf32>
    %169 = arith.addf %166, %168 : vector<8x64xf32>
    %170 = arith.addf %157, %169 : vector<8x64xf32>
    %c0_93 = arith.constant 0 : index
    %c0_94 = arith.constant 0 : index
    %171 = vector.load %arg26[%c0_93, %c0_94] : memref<1x64xf32, #tpu.memory_space<vmem>>, vector<1x64xf32>
    %c0_95 = arith.constant 0 : index
    %c0_96 = arith.constant 0 : index
    %172 = vector.load %arg27[%c0_95, %c0_96] : memref<1x64xf32, #tpu.memory_space<vmem>>, vector<1x64xf32>
    %cst_97 = arith.constant dense<0.000000e+00> : vector<8xf32>
    %173 = vector.multi_reduction <add>, %170, %cst_97 [1] : vector<8x64xf32> to vector<8xf32>
    %174 = vector.shape_cast %173 : vector<8xf32> to vector<8x1xf32>
    %cst_98 = arith.constant 6.400000e+01 : f32
    %175 = vector.broadcast %cst_98 : f32 to vector<8x1xf32>
    %176 = arith.divf %174, %175 : vector<8x1xf32>
    %177 = vector.broadcast %176 : vector<8x1xf32> to vector<8x64xf32>
    %178 = arith.subf %170, %177 : vector<8x64xf32>
    %179 = arith.mulf %178, %178 : vector<8x64xf32>
    %cst_99 = arith.constant dense<0.000000e+00> : vector<8xf32>
    %180 = vector.multi_reduction <add>, %179, %cst_99 [1] : vector<8x64xf32> to vector<8xf32>
    %181 = vector.shape_cast %180 : vector<8xf32> to vector<8x1xf32>
    %cst_100 = arith.constant 6.400000e+01 : f32
    %182 = vector.broadcast %cst_100 : f32 to vector<8x1xf32>
    %183 = arith.divf %181, %182 : vector<8x1xf32>
    %184 = vector.broadcast %176 : vector<8x1xf32> to vector<8x64xf32>
    %185 = arith.subf %170, %184 : vector<8x64xf32>
    %cst_101 = arith.constant 9.99999974E-6 : f32
    %186 = vector.broadcast %cst_101 : f32 to vector<8x1xf32>
    %187 = arith.addf %183, %186 : vector<8x1xf32>
    %188 = math.rsqrt %187 : vector<8x1xf32>
    %189 = vector.broadcast %188 : vector<8x1xf32> to vector<8x64xf32>
    %190 = arith.mulf %185, %189 : vector<8x64xf32>
    %191 = vector.broadcast %171 : vector<1x64xf32> to vector<8x64xf32>
    %192 = arith.mulf %190, %191 : vector<8x64xf32>
    %193 = vector.broadcast %172 : vector<1x64xf32> to vector<8x64xf32>
    %194 = arith.addf %192, %193 : vector<8x64xf32>
    %c0_102 = arith.constant 0 : index
    %c0_103 = arith.constant 0 : index
    %195 = vector.load %arg28[%c0_102, %c0_103] : memref<64x128xf32, #tpu.memory_space<vmem>>, vector<64x128xf32>
    %cst_104 = arith.constant dense<0.000000e+00> : vector<8x128xf32>
    %196 = tpu.matmul %194, %195, %cst_104 {dimension_numbers = #tpu.dot_dimension_numbers<[1], [0], [0], [1], [0, 0, 1, 1], [], []>} : vector<8x64xf32>, vector<64x128xf32>, vector<8x128xf32> -> vector<8x128xf32>
    %c0_105 = arith.constant 0 : index
    %c0_106 = arith.constant 0 : index
    %197 = vector.load %arg29[%c0_105, %c0_106] : memref<1x128xf32, #tpu.memory_space<vmem>>, vector<1x128xf32>
    %198 = vector.broadcast %197 : vector<1x128xf32> to vector<8x128xf32>
    %199 = arith.addf %196, %198 : vector<8x128xf32>
    %c0_107 = arith.constant 0 : index
    %c0_108 = arith.constant 0 : index
    %c0_109 = arith.constant 0 : index
    %200 = vector.load %arg30[%c0_107, %c0_108, %c0_109] : memref<1x8x128xf32, #tpu.memory_space<vmem>>, vector<1x8x128xf32>
    %201 = vector.shape_cast %200 : vector<1x8x128xf32> to vector<8x128xf32>
    %202 = vector.shape_cast %199 : vector<8x128xf32> to vector<1x8x128xf32>
    tpu.vector_store %arg30[%c0_107, %c0_108, %c0_109], %202 {strides = array<i32>} : memref<1x8x128xf32, #tpu.memory_space<vmem>>, vector<1x8x128xf32>,
    return
  }
  func.func @transform_0(%arg0: i32) -> (i32, i32, i32) {
    %c0_i32 = arith.constant 0 : i32
    %c0_i32_0 = arith.constant 0 : i32
    %c0_i32_1 = arith.constant 0 : i32
    return %arg0, %c0_i32, %c0_i32_0 : i32, i32, i32
  }
  func.func @transform_1(%arg0: i32) -> (i32, i32) {
    %c0_i32 = arith.constant 0 : i32
    %c0_i32_0 = arith.constant 0 : i32
    %c0_i32_1 = arith.constant 0 : i32
    return %c0_i32, %c0_i32_0 : i32, i32
  }
  func.func @transform_2(%arg0: i32) -> (i32, i32) {
    %c0_i32 = arith.constant 0 : i32
    %c0_i32_0 = arith.constant 0 : i32
    %c0_i32_1 = arith.constant 0 : i32
    return %c0_i32, %c0_i32_0 : i32, i32
  }
  func.func @transform_3(%arg0: i32) -> (i32, i32, i32) {
    %c0_i32 = arith.constant 0 : i32
    %c0_i32_0 = arith.constant 0 : i32
    %c0_i32_1 = arith.constant 0 : i32
    %c0_i32_2 = arith.constant 0 : i32
    return %c0_i32, %c0_i32_0, %c0_i32_1 : i32, i32, i32
  }
  func.func @transform_4(%arg0: i32) -> (i32, i32, i32) {
    %c0_i32 = arith.constant 0 : i32
    %c0_i32_0 = arith.constant 0 : i32
    %c0_i32_1 = arith.constant 0 : i32
    %c0_i32_2 = arith.constant 0 : i32
    return %c0_i32, %c0_i32_0, %c0_i32_1 : i32, i32, i32
  }
  func.func @transform_5(%arg0: i32) -> (i32, i32, i32) {
    %c0_i32 = arith.constant 0 : i32
    %c0_i32_0 = arith.constant 0 : i32
    %c0_i32_1 = arith.constant 0 : i32
    %c0_i32_2 = arith.constant 0 : i32
    return %c0_i32, %c0_i32_0, %c0_i32_1 : i32, i32, i32
  }
  func.func @transform_6(%arg0: i32) -> (i32, i32) {
    %c0_i32 = arith.constant 0 : i32
    %c0_i32_0 = arith.constant 0 : i32
    %c0_i32_1 = arith.constant 0 : i32
    return %c0_i32, %c0_i32_0 : i32, i32
  }
  func.func @transform_7(%arg0: i32) -> (i32, i32) {
    %c0_i32 = arith.constant 0 : i32
    %c0_i32_0 = arith.constant 0 : i32
    %c0_i32_1 = arith.constant 0 : i32
    return %c0_i32, %c0_i32_0 : i32, i32
  }
  func.func @transform_8(%arg0: i32) -> (i32, i32) {
    %c0_i32 = arith.constant 0 : i32
    %c0_i32_0 = arith.constant 0 : i32
    %c0_i32_1 = arith.constant 0 : i32
    return %c0_i32, %c0_i32_0 : i32, i32
  }
  func.func @transform_9(%arg0: i32) -> (i32, i32) {
    %c0_i32 = arith.constant 0 : i32
    %c0_i32_0 = arith.constant 0 : i32
    %c0_i32_1 = arith.constant 0 : i32
    return %c0_i32, %c0_i32_0 : i32, i32
  }
  func.func @transform_10(%arg0: i32) -> (i32, i32) {
    %c0_i32 = arith.constant 0 : i32
    %c0_i32_0 = arith.constant 0 : i32
    %c0_i32_1 = arith.constant 0 : i32
    return %c0_i32, %c0_i32_0 : i32, i32
  }
  func.func @transform_11(%arg0: i32) -> (i32, i32) {
    %c0_i32 = arith.constant 0 : i32
    %c0_i32_0 = arith.constant 0 : i32
    %c0_i32_1 = arith.constant 0 : i32
    return %c0_i32, %c0_i32_0 : i32, i32
  }
  func.func @transform_12(%arg0: i32) -> (i32, i32) {
    %c0_i32 = arith.constant 0 : i32
    %c0_i32_0 = arith.constant 0 : i32
    %c0_i32_1 = arith.constant 0 : i32
    return %c0_i32, %c0_i32_0 : i32, i32
  }
  func.func @transform_13(%arg0: i32) -> (i32, i32) {
    %c0_i32 = arith.constant 0 : i32
    %c0_i32_0 = arith.constant 0 : i32
    %c0_i32_1 = arith.constant 0 : i32
    return %c0_i32, %c0_i32_0 : i32, i32
  }
  func.func @transform_14(%arg0: i32) -> (i32, i32) {
    %c0_i32 = arith.constant 0 : i32
    %c0_i32_0 = arith.constant 0 : i32
    %c0_i32_1 = arith.constant 0 : i32
    return %c0_i32, %c0_i32_0 : i32, i32
  }
  func.func @transform_15(%arg0: i32) -> (i32, i32, i32) {
    %c0_i32 = arith.constant 0 : i32
    %c0_i32_0 = arith.constant 0 : i32
    %c0_i32_1 = arith.constant 0 : i32
    %c0_i32_2 = arith.constant 0 : i32
    return %c0_i32, %c0_i32_0, %c0_i32_1 : i32, i32, i32
  }
  func.func @transform_16(%arg0: i32) -> (i32, i32, i32) {
    %c0_i32 = arith.constant 0 : i32
    %c0_i32_0 = arith.constant 0 : i32
    %c0_i32_1 = arith.constant 0 : i32
    %c0_i32_2 = arith.constant 0 : i32
    return %c0_i32, %c0_i32_0, %c0_i32_1 : i32, i32, i32
  }
  func.func @transform_17(%arg0: i32) -> (i32, i32, i32) {
    %c0_i32 = arith.constant 0 : i32
    %c0_i32_0 = arith.constant 0 : i32
    %c0_i32_1 = arith.constant 0 : i32
    %c0_i32_2 = arith.constant 0 : i32
    return %c0_i32, %c0_i32_0, %c0_i32_1 : i32, i32, i32
  }
  func.func @transform_18(%arg0: i32) -> (i32, i32) {
    %c0_i32 = arith.constant 0 : i32
    %c0_i32_0 = arith.constant 0 : i32
    %c0_i32_1 = arith.constant 0 : i32
    return %c0_i32, %c0_i32_0 : i32, i32
  }
  func.func @transform_19(%arg0: i32) -> (i32, i32) {
    %c0_i32 = arith.constant 0 : i32
    %c0_i32_0 = arith.constant 0 : i32
    %c0_i32_1 = arith.constant 0 : i32
    return %c0_i32, %c0_i32_0 : i32, i32
  }
  func.func @transform_20(%arg0: i32) -> (i32, i32) {
    %c0_i32 = arith.constant 0 : i32
    %c0_i32_0 = arith.constant 0 : i32
    %c0_i32_1 = arith.constant 0 : i32
    return %c0_i32, %c0_i32_0 : i32, i32
  }
  func.func @transform_21(%arg0: i32) -> (i32, i32) {
    %c0_i32 = arith.constant 0 : i32
    %c0_i32_0 = arith.constant 0 : i32
    %c0_i32_1 = arith.constant 0 : i32
    return %c0_i32, %c0_i32_0 : i32, i32
  }
  func.func @transform_22(%arg0: i32) -> (i32, i32) {
    %c0_i32 = arith.constant 0 : i32
    %c0_i32_0 = arith.constant 0 : i32
    %c0_i32_1 = arith.constant 0 : i32
    return %c0_i32, %c0_i32_0 : i32, i32
  }
  func.func @transform_23(%arg0: i32) -> (i32, i32) {
    %c0_i32 = arith.constant 0 : i32
    %c0_i32_0 = arith.constant 0 : i32
    %c0_i32_1 = arith.constant 0 : i32
    return %c0_i32, %c0_i32_0 : i32, i32
  }
  func.func @transform_24(%arg0: i32) -> (i32, i32) {
    %c0_i32 = arith.constant 0 : i32
    %c0_i32_0 = arith.constant 0 : i32
    %c0_i32_1 = arith.constant 0 : i32
    return %c0_i32, %c0_i32_0 : i32, i32
  }
  func.func @transform_25(%arg0: i32) -> (i32, i32) {
    %c0_i32 = arith.constant 0 : i32
    %c0_i32_0 = arith.constant 0 : i32
    %c0_i32_1 = arith.constant 0 : i32
    return %c0_i32, %c0_i32_0 : i32, i32
  }
  func.func @transform_26(%arg0: i32) -> (i32, i32) {
    %c0_i32 = arith.constant 0 : i32
    %c0_i32_0 = arith.constant 0 : i32
    %c0_i32_1 = arith.constant 0 : i32
    return %c0_i32, %c0_i32_0 : i32, i32
  }
  func.func @transform_27(%arg0: i32) -> (i32, i32) {
    %c0_i32 = arith.constant 0 : i32
    %c0_i32_0 = arith.constant 0 : i32
    %c0_i32_1 = arith.constant 0 : i32
    return %c0_i32, %c0_i32_0 : i32, i32
  }
  func.func @transform_28(%arg0: i32) -> (i32, i32) {
    %c0_i32 = arith.constant 0 : i32
    %c0_i32_0 = arith.constant 0 : i32
    %c0_i32_1 = arith.constant 0 : i32
    return %c0_i32, %c0_i32_0 : i32, i32
  }
  func.func @transform_29(%arg0: i32) -> (i32, i32, i32) {
    %c0_i32 = arith.constant 0 : i32
    %c0_i32_0 = arith.constant 0 : i32
    %c0_i32_1 = arith.constant 0 : i32
    return %arg0, %c0_i32, %c0_i32_0 : i32, i32, i32
  }
}

</mosaic_0001>

<llo_original>
// kernel: transformer_forward.1
$region0: #{transformer_forward.1}
  #allocation0 [shape = 'u32[]', space=smem, size = 0x4, offset = 0x4, fixed_abs, tag = 'smem constant byte address 0x4 - core index']
  #allocation1 [shape = 'u32[144,128]{1,0:T(1,128)}', space=vmem, size = 0x12000, scoped, tag = 'internal scratch']
  %s0 = inlined_call_operand.smem [shape: u32[30], index: -1, kind: input, shape index: {}]
  %s1 = sld [smem:[%s0]]
  %s2 = scalar_lea.smem %s0, 1
  %s3 = sld [smem:[%s2]]
  %s4 = scalar_lea.smem %s0, 2
  %s5 = sld [smem:[%s4]]
  %s6 = scalar_lea.smem %s0, 3
  %s7 = sld [smem:[%s6]]
  %s8 = scalar_lea.smem %s0, 4
  %s9 = sld [smem:[%s8]]
  %s10 = scalar_lea.smem %s0, 5
  %s11 = sld [smem:[%s10]]
  %s12 = scalar_lea.smem %s0, 6
  %s13 = sld [smem:[%s12]]
  %s14 = scalar_lea.smem %s0, 7
  %s15 = sld [smem:[%s14]]
  %s16 = scalar_lea.smem %s0, 8
  %s17 = sld [smem:[%s16]]
  %s18 = scalar_lea.smem %s0, 9
  %s19 = sld [smem:[%s18]]
  %s20 = scalar_lea.smem %s0, 10
  %s21 = sld [smem:[%s20]]
  %s22 = scalar_lea.smem %s0, 11
  %s23 = sld [smem:[%s22]]
  %s24 = scalar_lea.smem %s0, 12
  %s25 = sld [smem:[%s24]]
  %s26 = scalar_lea.smem %s0, 13
  %s27 = sld [smem:[%s26]]
  %s28 = scalar_lea.smem %s0, 14
  %s29 = sld [smem:[%s28]]
  %s30 = scalar_lea.smem %s0, 15
  %s31 = sld [smem:[%s30]]
  %s32 = scalar_lea.smem %s0, 16
  %s33 = sld [smem:[%s32]]
  %s34 = scalar_lea.smem %s0, 17
  %s35 = sld [smem:[%s34]]
  %s36 = scalar_lea.smem %s0, 18
  %s37 = sld [smem:[%s36]]
  %s38 = scalar_lea.smem %s0, 19
  %s39 = sld [smem:[%s38]]
  %s40 = scalar_lea.smem %s0, 20
  %s41 = sld [smem:[%s40]]
  %s42 = scalar_lea.smem %s0, 21
  %s43 = sld [smem:[%s42]]
  %s44 = scalar_lea.smem %s0, 22
  %s45 = sld [smem:[%s44]]
  %s46 = scalar_lea.smem %s0, 23
  %s47 = sld [smem:[%s46]]
  %s48 = scalar_lea.smem %s0, 24
  %s49 = sld [smem:[%s48]]
  %s50 = scalar_lea.smem %s0, 25
  %s51 = sld [smem:[%s50]]
  %s52 = scalar_lea.smem %s0, 26
  %s53 = sld [smem:[%s52]]
  %s54 = scalar_lea.smem %s0, 27
  %s55 = sld [smem:[%s54]]
  %s56 = scalar_lea.smem %s0, 28
  %s57 = sld [smem:[%s56]]
  %s58 = scalar_lea.smem %s0, 29
  %s59 = sld [smem:[%s58]]
  %s60 = sld [smem:[#allocation0]]
  $region149: #{transformer_forward.1} parent=0
    _
  %s62 = ssub.s32 1, %s60
  %s63 = scalar_select 0, %s62, %s60
  $region1: #{transformer_forward.1} parent=0
    #allocation2 [shape = 'u8[8192]{0}', space=vmem, size = 0x2000, scoped, tag = 'output window, operand 0']
    #allocation3 [shape = 's32[2]{0}', space=sflag, size = 0x8, scoped, tag = 'scoped memory for transformer_forward.1']
    %64 = vsyncpa [#allocation3], 0
    %s65 = scalar_lea.sflag [#allocation3], 1
    %66 = vsyncpa %s65, 0
    loop: start=0, step=1, limit=4
    $region2: #{transformer_forward.1} parent=1 // loop_pre_header
      _
    $region3: #{transformer_forward.1} parent=1 // loop_header
      %s68 = sphi 0, %s72
      %p69 = scmp.ge.s32.totalorder %s68, 4
      %s78 = sphi 0, %s80
      %s81 = sphi 0, %s78
      %s82 = sphi 0, %s81
      %s98 = sphi 0, %s82
      %s102 = sphi 0, %s102
      %s104 = sphi 0, %s102
      %s105 = sphi 0, %s104
      %s119 = sphi 0, %s105
      %s123 = sphi 0, %s123
      %s125 = sphi 0, %s123
      %s126 = sphi 0, %s125
      %s140 = sphi 0, %s126
      %s144 = sphi 0, %s144
      %s146 = sphi 0, %s144
      %s147 = sphi 0, %s146
      %s161 = sphi 0, %s147
      %s165 = sphi 0, %s165
      %s167 = sphi 0, %s165
      %s168 = sphi 0, %s167
      %s182 = sphi 0, %s168
      %s186 = sphi 0, %s186
      %s188 = sphi 0, %s186
      %s189 = sphi 0, %s188
      %s203 = sphi 0, %s189
      %s207 = sphi 0, %s207
      %s209 = sphi 0, %s207
      %s210 = sphi 0, %s209
      %s224 = sphi 0, %s210
      %s228 = sphi 0, %s228
      %s230 = sphi 0, %s228
      %s231 = sphi 0, %s230
      %s245 = sphi 0, %s231
      %s249 = sphi 0, %s249
      %s251 = sphi 0, %s249
      %s252 = sphi 0, %s251
      %s266 = sphi 0, %s252
      %s270 = sphi 0, %s270
      %s272 = sphi 0, %s270
      %s273 = sphi 0, %s272
      %s287 = sphi 0, %s273
      %s291 = sphi 0, %s291
      %s293 = sphi 0, %s291
      %s294 = sphi 0, %s293
      %s308 = sphi 0, %s294
      %s312 = sphi 0, %s312
      %s314 = sphi 0, %s312
      %s315 = sphi 0, %s314
      %s329 = sphi 0, %s315
      %s333 = sphi 0, %s333
      %s335 = sphi 0, %s333
      %s336 = sphi 0, %s335
      %s350 = sphi 0, %s336
      %s354 = sphi 0, %s354
      %s356 = sphi 0, %s354
      %s357 = sphi 0, %s356
      %s371 = sphi 0, %s357
      %s375 = sphi 0, %s375
      %s377 = sphi 0, %s375
      %s378 = sphi 0, %s377
      %s392 = sphi 0, %s378
      %s396 = sphi 0, %s396
      %s398 = sphi 0, %s396
      %s399 = sphi 0, %s398
      %s413 = sphi 0, %s399
      %s417 = sphi 0, %s417
      %s419 = sphi 0, %s417
      %s420 = sphi 0, %s419
      %s434 = sphi 0, %s420
      %s438 = sphi 0, %s438
      %s440 = sphi 0, %s438
      %s441 = sphi 0, %s440
      %s455 = sphi 0, %s441
      %s459 = sphi 0, %s459
      %s461 = sphi 0, %s459
      %s462 = sphi 0, %s461
      %s476 = sphi 0, %s462
      %s480 = sphi 0, %s480
      %s482 = sphi 0, %s480
      %s483 = sphi 0, %s482
      %s497 = sphi 0, %s483
      %s501 = sphi 0, %s501
      %s503 = sphi 0, %s501
      %s504 = sphi 0, %s503
      %s518 = sphi 0, %s504
      %s522 = sphi 0, %s522
      %s524 = sphi 0, %s522
      %s525 = sphi 0, %s524
      %s539 = sphi 0, %s525
      %s543 = sphi 0, %s543
      %s545 = sphi 0, %s543
      %s546 = sphi 0, %s545
      %s560 = sphi 0, %s546
      %s564 = sphi 0, %s564
      %s566 = sphi 0, %s564
      %s567 = sphi 0, %s566
      %s581 = sphi 0, %s567
      %s585 = sphi 0, %s585
      %s587 = sphi 0, %s585
      %s588 = sphi 0, %s587
      %s602 = sphi 0, %s588
      %s606 = sphi 0, %s606
      %s608 = sphi 0, %s606
      %s609 = sphi 0, %s608
      %s623 = sphi 0, %s609
      %s627 = sphi 0, %s627
      %s629 = sphi 0, %s627
      %s630 = sphi 0, %s629
      %s644 = sphi 0, %s630
      %s648 = sphi 0, %s648
      %s650 = sphi 0, %s648
      %s651 = sphi 0, %s650
      %s665 = sphi 0, %s651
      %s669 = sphi 0, %s669
      %s671 = sphi 0, %s669
      %s672 = sphi 0, %s671
      %s686 = sphi 0, %s672
      %s692 = sphi 0, %s694
      %s695 = sphi 0, %s692
      %s696 = sphi 0, %s695
      %s712 = sphi 0, %s696
    $region4: #{transformer_forward.1} parent=1 // loop_header_branch
      %71 = sbr.rel (%p69) target = $region8
    $region5: #{transformer_forward.1} parent=1 // loop_body
      %s73 = ssub.s32 %s68, 1
      %s74 = ssub.s32 %s68, 2
      %s75 = sadd.s32 %s68, 1
      %s76 = ssub.s32 %s68, %s75
      %p77 = scmp.eq.s32.totalorder %s76, 0
      %s79 = sadd.s32 %s78, 1
      %s80 = scalar_select %p77, %s78, %s79
      %p83 = pneg %p77
      %p84 = scmp.eq.s32.totalorder %s68, 1
      %p85 = por %p83, %p84
      %p86 = scmp.ne.s32.totalorder %s78, %s81
      %p87 = scmp.eq.s32.totalorder %s68, 0
      %p88 = por %p86, %p87
      %p89 = scmp.ne.s32.totalorder %s78, %s81
      %p90 = scmp.eq.s32.totalorder %s73, 1
      %p91 = por %p89, %p90
      %p92 = scmp.ne.s32.totalorder %s81, %s82
      %p93 = scmp.eq.s32.totalorder %s73, 0
      %p94 = por %p92, %p93
      %p95 = scmp.ne.s32.totalorder %s81, %s82
      %p96 = scmp.eq.s32.totalorder %s74, 1
      %p97 = por %p95, %p96
      %p99 = scmp.ne.s32.totalorder %s82, %s98
      %p100 = scmp.eq.s32.totalorder %s74, 0
      %p101 = por %p99, %p100
      %s103 = sadd.s32 %s102, 1
      %p106 = scmp.eq.s32.totalorder %s68, 1
      %p107 = scmp.ne.s32.totalorder %s102, %s104
      %p108 = scmp.eq.s32.totalorder %s68, 0
      %p109 = por %p107, %p108
      %p110 = scmp.ne.s32.totalorder %s102, %s104
      %p111 = scmp.eq.s32.totalorder %s73, 1
      %p112 = por %p110, %p111
      %p113 = scmp.ne.s32.totalorder %s104, %s105
      %p114 = scmp.eq.s32.totalorder %s73, 0
      %p115 = por %p113, %p114
      %p116 = scmp.ne.s32.totalorder %s104, %s105
      %p117 = scmp.eq.s32.totalorder %s74, 1
      %p118 = por %p116, %p117
      %p120 = scmp.ne.s32.totalorder %s105, %s119
      %p121 = scmp.eq.s32.totalorder %s74, 0
      %p122 = por %p120, %p121
      %s124 = sadd.s32 %s123, 1
      %p127 = scmp.eq.s32.totalorder %s68, 1
      %p128 = scmp.ne.s32.totalorder %s123, %s125
      %p129 = scmp.eq.s32.totalorder %s68, 0
      %p130 = por %p128, %p129
      %p131 = scmp.ne.s32.totalorder %s123, %s125
      %p132 = scmp.eq.s32.totalorder %s73, 1
      %p133 = por %p131, %p132
      %p134 = scmp.ne.s32.totalorder %s125, %s126
      %p135 = scmp.eq.s32.totalorder %s73, 0
      %p136 = por %p134, %p135
      %p137 = scmp.ne.s32.totalorder %s125, %s126
      %p138 = scmp.eq.s32.totalorder %s74, 1
      %p139 = por %p137, %p138
      %p141 = scmp.ne.s32.totalorder %s126, %s140
      %p142 = scmp.eq.s32.totalorder %s74, 0
      %p143 = por %p141, %p142
      %s145 = sadd.s32 %s144, 1
      %p148 = scmp.eq.s32.totalorder %s68, 1
      %p149 = scmp.ne.s32.totalorder %s144, %s146
      %p150 = scmp.eq.s32.totalorder %s68, 0
      %p151 = por %p149, %p150
      %p152 = scmp.ne.s32.totalorder %s144, %s146
      %p153 = scmp.eq.s32.totalorder %s73, 1
      %p154 = por %p152, %p153
      %p155 = scmp.ne.s32.totalorder %s146, %s147
      %p156 = scmp.eq.s32.totalorder %s73, 0
      %p157 = por %p155, %p156
      %p158 = scmp.ne.s32.totalorder %s146, %s147
      %p159 = scmp.eq.s32.totalorder %s74, 1
      %p160 = por %p158, %p159
      %p162 = scmp.ne.s32.totalorder %s147, %s161
      %p163 = scmp.eq.s32.totalorder %s74, 0
      %p164 = por %p162, %p163
      %s166 = sadd.s32 %s165, 1
      %p169 = scmp.eq.s32.totalorder %s68, 1
      %p170 = scmp.ne.s32.totalorder %s165, %s167
      %p171 = scmp.eq.s32.totalorder %s68, 0
      %p172 = por %p170, %p171
      %p173 = scmp.ne.s32.totalorder %s165, %s167
      %p174 = scmp.eq.s32.totalorder %s73, 1
      %p175 = por %p173, %p174
      %p176 = scmp.ne.s32.totalorder %s167, %s168
      %p177 = scmp.eq.s32.totalorder %s73, 0
      %p178 = por %p176, %p177
      %p179 = scmp.ne.s32.totalorder %s167, %s168
      %p180 = scmp.eq.s32.totalorder %s74, 1
      %p181 = por %p179, %p180
      %p183 = scmp.ne.s32.totalorder %s168, %s182
      %p184 = scmp.eq.s32.totalorder %s74, 0
      %p185 = por %p183, %p184
      %s187 = sadd.s32 %s186, 1
      %p190 = scmp.eq.s32.totalorder %s68, 1
      %p191 = scmp.ne.s32.totalorder %s186, %s188
      %p192 = scmp.eq.s32.totalorder %s68, 0
      %p193 = por %p191, %p192
      %p194 = scmp.ne.s32.totalorder %s186, %s188
      %p195 = scmp.eq.s32.totalorder %s73, 1
      %p196 = por %p194, %p195
      %p197 = scmp.ne.s32.totalorder %s188, %s189
      %p198 = scmp.eq.s32.totalorder %s73, 0
      %p199 = por %p197, %p198
      %p200 = scmp.ne.s32.totalorder %s188, %s189
      %p201 = scmp.eq.s32.totalorder %s74, 1
      %p202 = por %p200, %p201
      %p204 = scmp.ne.s32.totalorder %s189, %s203
      %p205 = scmp.eq.s32.totalorder %s74, 0
      %p206 = por %p204, %p205
      %s208 = sadd.s32 %s207, 1
      %p211 = scmp.eq.s32.totalorder %s68, 1
      %p212 = scmp.ne.s32.totalorder %s207, %s209
      %p213 = scmp.eq.s32.totalorder %s68, 0
      %p214 = por %p212, %p213
      %p215 = scmp.ne.s32.totalorder %s207, %s209
      %p216 = scmp.eq.s32.totalorder %s73, 1
      %p217 = por %p215, %p216
      %p218 = scmp.ne.s32.totalorder %s209, %s210
      %p219 = scmp.eq.s32.totalorder %s73, 0
      %p220 = por %p218, %p219
      %p221 = scmp.ne.s32.totalorder %s209, %s210
      %p222 = scmp.eq.s32.totalorder %s74, 1
      %p223 = por %p221, %p222
      %p225 = scmp.ne.s32.totalorder %s210, %s224
      %p226 = scmp.eq.s32.totalorder %s74, 0
      %p227 = por %p225, %p226
      %s229 = sadd.s32 %s228, 1
      %p232 = scmp.eq.s32.totalorder %s68, 1
      %p233 = scmp.ne.s32.totalorder %s228, %s230
      %p234 = scmp.eq.s32.totalorder %s68, 0
      %p235 = por %p233, %p234
      %p236 = scmp.ne.s32.totalorder %s228, %s230
      %p237 = scmp.eq.s32.totalorder %s73, 1
      %p238 = por %p236, %p237
      %p239 = scmp.ne.s32.totalorder %s230, %s231
      %p240 = scmp.eq.s32.totalorder %s73, 0
      %p241 = por %p239, %p240
      %p242 = scmp.ne.s32.totalorder %s230, %s231
      %p243 = scmp.eq.s32.totalorder %s74, 1
      %p244 = por %p242, %p243
      %p246 = scmp.ne.s32.totalorder %s231, %s245
      %p247 = scmp.eq.s32.totalorder %s74, 0
      %p248 = por %p246, %p247
      %s250 = sadd.s32 %s249, 1
      %p253 = scmp.eq.s32.totalorder %s68, 1
      %p254 = scmp.ne.s32.totalorder %s249, %s251
      %p255 = scmp.eq.s32.totalorder %s68, 0
      %p256 = por %p254, %p255
      %p257 = scmp.ne.s32.totalorder %s249, %s251
      %p258 = scmp.eq.s32.totalorder %s73, 1
      %p259 = por %p257, %p258
      %p260 = scmp.ne.s32.totalorder %s251, %s252
      %p261 = scmp.eq.s32.totalorder %s73, 0
      %p262 = por %p260, %p261
      %p263 = scmp.ne.s32.totalorder %s251, %s252
      %p264 = scmp.eq.s32.totalorder %s74, 1
      %p265 = por %p263, %p264
      %p267 = scmp.ne.s32.totalorder %s252, %s266
      %p268 = scmp.eq.s32.totalorder %s74, 0
      %p269 = por %p267, %p268
      %s271 = sadd.s32 %s270, 1
      %p274 = scmp.eq.s32.totalorder %s68, 1
      %p275 = scmp.ne.s32.totalorder %s270, %s272
      %p276 = scmp.eq.s32.totalorder %s68, 0
      %p277 = por %p275, %p276
      %p278 = scmp.ne.s32.totalorder %s270, %s272
      %p279 = scmp.eq.s32.totalorder %s73, 1
      %p280 = por %p278, %p279
      %p281 = scmp.ne.s32.totalorder %s272, %s273
      %p282 = scmp.eq.s32.totalorder %s73, 0
      %p283 = por %p281, %p282
      %p284 = scmp.ne.s32.totalorder %s272, %s273
      %p285 = scmp.eq.s32.totalorder %s74, 1
      %p286 = por %p284, %p285
      %p288 = scmp.ne.s32.totalorder %s273, %s287
      %p289 = scmp.eq.s32.totalorder %s74, 0
      %p290 = por %p288, %p289
      %s292 = sadd.s32 %s291, 1
      %p295 = scmp.eq.s32.totalorder %s68, 1
      %p296 = scmp.ne.s32.totalorder %s291, %s293
      %p297 = scmp.eq.s32.totalorder %s68, 0
      %p298 = por %p296, %p297
      %p299 = scmp.ne.s32.totalorder %s291, %s293
      %p300 = scmp.eq.s32.totalorder %s73, 1
      %p301 = por %p299, %p300
      %p302 = scmp.ne.s32.totalorder %s293, %s294
      %p303 = scmp.eq.s32.totalorder %s73, 0
      %p304 = por %p302, %p303
      %p305 = scmp.ne.s32.totalorder %s293, %s294
      %p306 = scmp.eq.s32.totalorder %s74, 1
      %p307 = por %p305, %p306
      %p309 = scmp.ne.s32.totalorder %s294, %s308
      %p310 = scmp.eq.s32.totalorder %s74, 0
      %p311 = por %p309, %p310
      %s313 = sadd.s32 %s312, 1
      %p316 = scmp.eq.s32.totalorder %s68, 1
      %p317 = scmp.ne.s32.totalorder %s312, %s314
      %p318 = scmp.eq.s32.totalorder %s68, 0
      %p319 = por %p317, %p318
      %p320 = scmp.ne.s32.totalorder %s312, %s314
      %p321 = scmp.eq.s32.totalorder %s73, 1
      %p322 = por %p320, %p321
      %p323 = scmp.ne.s32.totalorder %s314, %s315
      %p324 = scmp.eq.s32.totalorder %s73, 0
      %p325 = por %p323, %p324
      %p326 = scmp.ne.s32.totalorder %s314, %s315
      %p327 = scmp.eq.s32.totalorder %s74, 1
      %p328 = por %p326, %p327
      %p330 = scmp.ne.s32.totalorder %s315, %s329
      %p331 = scmp.eq.s32.totalorder %s74, 0
      %p332 = por %p330, %p331
      %s334 = sadd.s32 %s333, 1
      %p337 = scmp.eq.s32.totalorder %s68, 1
      %p338 = scmp.ne.s32.totalorder %s333, %s335
      %p339 = scmp.eq.s32.totalorder %s68, 0
      %p340 = por %p338, %p339
      %p341 = scmp.ne.s32.totalorder %s333, %s335
      %p342 = scmp.eq.s32.totalorder %s73, 1
      %p343 = por %p341, %p342
      %p344 = scmp.ne.s32.totalorder %s335, %s336
      %p345 = scmp.eq.s32.totalorder %s73, 0
      %p346 = por %p344, %p345
      %p347 = scmp.ne.s32.totalorder %s335, %s336
      %p348 = scmp.eq.s32.totalorder %s74, 1
      %p349 = por %p347, %p348
      %p351 = scmp.ne.s32.totalorder %s336, %s350
      %p352 = scmp.eq.s32.totalorder %s74, 0
      %p353 = por %p351, %p352
      %s355 = sadd.s32 %s354, 1
      %p358 = scmp.eq.s32.totalorder %s68, 1
      %p359 = scmp.ne.s32.totalorder %s354, %s356
      %p360 = scmp.eq.s32.totalorder %s68, 0
      %p361 = por %p359, %p360
      %p362 = scmp.ne.s32.totalorder %s354, %s356
      %p363 = scmp.eq.s32.totalorder %s73, 1
      %p364 = por %p362, %p363
      %p365 = scmp.ne.s32.totalorder %s356, %s357
      %p366 = scmp.eq.s32.totalorder %s73, 0
      %p367 = por %p365, %p366
      %p368 = scmp.ne.s32.totalorder %s356, %s357
      %p369 = scmp.eq.s32.totalorder %s74, 1
      %p370 = por %p368, %p369
      %p372 = scmp.ne.s32.totalorder %s357, %s371
      %p373 = scmp.eq.s32.totalorder %s74, 0
      %p374 = por %p372, %p373
      %s376 = sadd.s32 %s375, 1
      %p379 = scmp.eq.s32.totalorder %s68, 1
      %p380 = scmp.ne.s32.totalorder %s375, %s377
      %p381 = scmp.eq.s32.totalorder %s68, 0
      %p382 = por %p380, %p381
      %p383 = scmp.ne.s32.totalorder %s375, %s377
      %p384 = scmp.eq.s32.totalorder %s73, 1
      %p385 = por %p383, %p384
      %p386 = scmp.ne.s32.totalorder %s377, %s378
      %p387 = scmp.eq.s32.totalorder %s73, 0
      %p388 = por %p386, %p387
      %p389 = scmp.ne.s32.totalorder %s377, %s378
      %p390 = scmp.eq.s32.totalorder %s74, 1
      %p391 = por %p389, %p390
      %p393 = scmp.ne.s32.totalorder %s378, %s392
      %p394 = scmp.eq.s32.totalorder %s74, 0
      %p395 = por %p393, %p394
      %s397 = sadd.s32 %s396, 1
      %p400 = scmp.eq.s32.totalorder %s68, 1
      %p401 = scmp.ne.s32.totalorder %s396, %s398
      %p402 = scmp.eq.s32.totalorder %s68, 0
      %p403 = por %p401, %p402
      %p404 = scmp.ne.s32.totalorder %s396, %s398
      %p405 = scmp.eq.s32.totalorder %s73, 1
      %p406 = por %p404, %p405
      %p407 = scmp.ne.s32.totalorder %s398, %s399
      %p408 = scmp.eq.s32.totalorder %s73, 0
      %p409 = por %p407, %p408
      %p410 = scmp.ne.s32.totalorder %s398, %s399
      %p411 = scmp.eq.s32.totalorder %s74, 1
      %p412 = por %p410, %p411
      %p414 = scmp.ne.s32.totalorder %s399, %s413
      %p415 = scmp.eq.s32.totalorder %s74, 0
      %p416 = por %p414, %p415
      %s418 = sadd.s32 %s417, 1
      %p421 = scmp.eq.s32.totalorder %s68, 1
      %p422 = scmp.ne.s32.totalorder %s417, %s419
      %p423 = scmp.eq.s32.totalorder %s68, 0
      %p424 = por %p422, %p423
      %p425 = scmp.ne.s32.totalorder %s417, %s419
      %p426 = scmp.eq.s32.totalorder %s73, 1
      %p427 = por %p425, %p426
      %p428 = scmp.ne.s32.totalorder %s419, %s420
      %p429 = scmp.eq.s32.totalorder %s73, 0
      %p430 = por %p428, %p429
      %p431 = scmp.ne.s32.totalorder %s419, %s420
      %p432 = scmp.eq.s32.totalorder %s74, 1
      %p433 = por %p431, %p432
      %p435 = scmp.ne.s32.totalorder %s420, %s434
      %p436 = scmp.eq.s32.totalorder %s74, 0
      %p437 = por %p435, %p436
      %s439 = sadd.s32 %s438, 1
      %p442 = scmp.eq.s32.totalorder %s68, 1
      %p443 = scmp.ne.s32.totalorder %s438, %s440
      %p444 = scmp.eq.s32.totalorder %s68, 0
      %p445 = por %p443, %p444
      %p446 = scmp.ne.s32.totalorder %s438, %s440
      %p447 = scmp.eq.s32.totalorder %s73, 1
      %p448 = por %p446, %p447
      %p449 = scmp.ne.s32.totalorder %s440, %s441
      %p450 = scmp.eq.s32.totalorder %s73, 0
      %p451 = por %p449, %p450
      %p452 = scmp.ne.s32.totalorder %s440, %s441
      %p453 = scmp.eq.s32.totalorder %s74, 1
      %p454 = por %p452, %p453
      %p456 = scmp.ne.s32.totalorder %s441, %s455
      %p457 = scmp.eq.s32.totalorder %s74, 0
      %p458 = por %p456, %p457
      %s460 = sadd.s32 %s459, 1
      %p463 = scmp.eq.s32.totalorder %s68, 1
      %p464 = scmp.ne.s32.totalorder %s459, %s461
      %p465 = scmp.eq.s32.totalorder %s68, 0
      %p466 = por %p464, %p465
      %p467 = scmp.ne.s32.totalorder %s459, %s461
      %p468 = scmp.eq.s32.totalorder %s73, 1
      %p469 = por %p467, %p468
      %p470 = scmp.ne.s32.totalorder %s461, %s462
      %p471 = scmp.eq.s32.totalorder %s73, 0
      %p472 = por %p470, %p471
      %p473 = scmp.ne.s32.totalorder %s461, %s462
      %p474 = scmp.eq.s32.totalorder %s74, 1
      %p475 = por %p473, %p474
      %p477 = scmp.ne.s32.totalorder %s462, %s476
      %p478 = scmp.eq.s32.totalorder %s74, 0
      %p479 = por %p477, %p478
      %s481 = sadd.s32 %s480, 1
      %p484 = scmp.eq.s32.totalorder %s68, 1
      %p485 = scmp.ne.s32.totalorder %s480, %s482
      %p486 = scmp.eq.s32.totalorder %s68, 0
      %p487 = por %p485, %p486
      %p488 = scmp.ne.s32.totalorder %s480, %s482
      %p489 = scmp.eq.s32.totalorder %s73, 1
      %p490 = por %p488, %p489
      %p491 = scmp.ne.s32.totalorder %s482, %s483
      %p492 = scmp.eq.s32.totalorder %s73, 0
      %p493 = por %p491, %p492
      %p494 = scmp.ne.s32.totalorder %s482, %s483
      %p495 = scmp.eq.s32.totalorder %s74, 1
      %p496 = por %p494, %p495
      %p498 = scmp.ne.s32.totalorder %s483, %s497
      %p499 = scmp.eq.s32.totalorder %s74, 0
      %p500 = por %p498, %p499
      %s502 = sadd.s32 %s501, 1
      %p505 = scmp.eq.s32.totalorder %s68, 1
      %p506 = scmp.ne.s32.totalorder %s501, %s503
      %p507 = scmp.eq.s32.totalorder %s68, 0
      %p508 = por %p506, %p507
      %p509 = scmp.ne.s32.totalorder %s501, %s503
      %p510 = scmp.eq.s32.totalorder %s73, 1
      %p511 = por %p509, %p510
      %p512 = scmp.ne.s32.totalorder %s503, %s504
      %p513 = scmp.eq.s32.totalorder %s73, 0
      %p514 = por %p512, %p513
      %p515 = scmp.ne.s32.totalorder %s503, %s504
      %p516 = scmp.eq.s32.totalorder %s74, 1
      %p517 = por %p515, %p516
      %p519 = scmp.ne.s32.totalorder %s504, %s518
      %p520 = scmp.eq.s32.totalorder %s74, 0
      %p521 = por %p519, %p520
      %s523 = sadd.s32 %s522, 1
      %p526 = scmp.eq.s32.totalorder %s68, 1
      %p527 = scmp.ne.s32.totalorder %s522, %s524
      %p528 = scmp.eq.s32.totalorder %s68, 0
      %p529 = por %p527, %p528
      %p530 = scmp.ne.s32.totalorder %s522, %s524
      %p531 = scmp.eq.s32.totalorder %s73, 1
      %p532 = por %p530, %p531
      %p533 = scmp.ne.s32.totalorder %s524, %s525
      %p534 = scmp.eq.s32.totalorder %s73, 0
      %p535 = por %p533, %p534
      %p536 = scmp.ne.s32.totalorder %s524, %s525
      %p537 = scmp.eq.s32.totalorder %s74, 1
      %p538 = por %p536, %p537
      %p540 = scmp.ne.s32.totalorder %s525, %s539
      %p541 = scmp.eq.s32.totalorder %s74, 0
      %p542 = por %p540, %p541
      %s544 = sadd.s32 %s543, 1
      %p547 = scmp.eq.s32.totalorder %s68, 1
      %p548 = scmp.ne.s32.totalorder %s543, %s545
      %p549 = scmp.eq.s32.totalorder %s68, 0
      %p550 = por %p548, %p549
      %p551 = scmp.ne.s32.totalorder %s543, %s545
      %p552 = scmp.eq.s32.totalorder %s73, 1
      %p553 = por %p551, %p552
      %p554 = scmp.ne.s32.totalorder %s545, %s546
      %p555 = scmp.eq.s32.totalorder %s73, 0
      %p556 = por %p554, %p555
      %p557 = scmp.ne.s32.totalorder %s545, %s546
      %p558 = scmp.eq.s32.totalorder %s74, 1
      %p559 = por %p557, %p558
      %p561 = scmp.ne.s32.totalorder %s546, %s560
      %p562 = scmp.eq.s32.totalorder %s74, 0
      %p563 = por %p561, %p562
      %s565 = sadd.s32 %s564, 1
      %p568 = scmp.eq.s32.totalorder %s68, 1
      %p569 = scmp.ne.s32.totalorder %s564, %s566
      %p570 = scmp.eq.s32.totalorder %s68, 0
      %p571 = por %p569, %p570
      %p572 = scmp.ne.s32.totalorder %s564, %s566
      %p573 = scmp.eq.s32.totalorder %s73, 1
      %p574 = por %p572, %p573
      %p575 = scmp.ne.s32.totalorder %s566, %s567
      %p576 = scmp.eq.s32.totalorder %s73, 0
      %p577 = por %p575, %p576
      %p578 = scmp.ne.s32.totalorder %s566, %s567
      %p579 = scmp.eq.s32.totalorder %s74, 1
      %p580 = por %p578, %p579
      %p582 = scmp.ne.s32.totalorder %s567, %s581
      %p583 = scmp.eq.s32.totalorder %s74, 0
      %p584 = por %p582, %p583
      %s586 = sadd.s32 %s585, 1
      %p589 = scmp.eq.s32.totalorder %s68, 1
      %p590 = scmp.ne.s32.totalorder %s585, %s587
      %p591 = scmp.eq.s32.totalorder %s68, 0
      %p592 = por %p590, %p591
      %p593 = scmp.ne.s32.totalorder %s585, %s587
      %p594 = scmp.eq.s32.totalorder %s73, 1
      %p595 = por %p593, %p594
      %p596 = scmp.ne.s32.totalorder %s587, %s588
      %p597 = scmp.eq.s32.totalorder %s73, 0
      %p598 = por %p596, %p597
      %p599 = scmp.ne.s32.totalorder %s587, %s588
      %p600 = scmp.eq.s32.totalorder %s74, 1
      %p601 = por %p599, %p600
      %p603 = scmp.ne.s32.totalorder %s588, %s602
      %p604 = scmp.eq.s32.totalorder %s74, 0
      %p605 = por %p603, %p604
      %s607 = sadd.s32 %s606, 1
      %p610 = scmp.eq.s32.totalorder %s68, 1
      %p611 = scmp.ne.s32.totalorder %s606, %s608
      %p612 = scmp.eq.s32.totalorder %s68, 0
      %p613 = por %p611, %p612
      %p614 = scmp.ne.s32.totalorder %s606, %s608
      %p615 = scmp.eq.s32.totalorder %s73, 1
      %p616 = por %p614, %p615
      %p617 = scmp.ne.s32.totalorder %s608, %s609
      %p618 = scmp.eq.s32.totalorder %s73, 0
      %p619 = por %p617, %p618
      %p620 = scmp.ne.s32.totalorder %s608, %s609
      %p621 = scmp.eq.s32.totalorder %s74, 1
      %p622 = por %p620, %p621
      %p624 = scmp.ne.s32.totalorder %s609, %s623
      %p625 = scmp.eq.s32.totalorder %s74, 0
      %p626 = por %p624, %p625
      %s628 = sadd.s32 %s627, 1
      %p631 = scmp.eq.s32.totalorder %s68, 1
      %p632 = scmp.ne.s32.totalorder %s627, %s629
      %p633 = scmp.eq.s32.totalorder %s68, 0
      %p634 = por %p632, %p633
      %p635 = scmp.ne.s32.totalorder %s627, %s629
      %p636 = scmp.eq.s32.totalorder %s73, 1
      %p637 = por %p635, %p636
      %p638 = scmp.ne.s32.totalorder %s629, %s630
      %p639 = scmp.eq.s32.totalorder %s73, 0
      %p640 = por %p638, %p639
      %p641 = scmp.ne.s32.totalorder %s629, %s630
      %p642 = scmp.eq.s32.totalorder %s74, 1
      %p643 = por %p641, %p642
      %p645 = scmp.ne.s32.totalorder %s630, %s644
      %p646 = scmp.eq.s32.totalorder %s74, 0
      %p647 = por %p645, %p646
      %s649 = sadd.s32 %s648, 1
      %p652 = scmp.eq.s32.totalorder %s68, 1
      %p653 = scmp.ne.s32.totalorder %s648, %s650
      %p654 = scmp.eq.s32.totalorder %s68, 0
      %p655 = por %p653, %p654
      %p656 = scmp.ne.s32.totalorder %s648, %s650
      %p657 = scmp.eq.s32.totalorder %s73, 1
      %p658 = por %p656, %p657
      %p659 = scmp.ne.s32.totalorder %s650, %s651
      %p660 = scmp.eq.s32.totalorder %s73, 0
      %p661 = por %p659, %p660
      %p662 = scmp.ne.s32.totalorder %s650, %s651
      %p663 = scmp.eq.s32.totalorder %s74, 1
      %p664 = por %p662, %p663
      %p666 = scmp.ne.s32.totalorder %s651, %s665
      %p667 = scmp.eq.s32.totalorder %s74, 0
      %p668 = por %p666, %p667
      %s670 = sadd.s32 %s669, 1
      %p673 = scmp.eq.s32.totalorder %s68, 1
      %p674 = scmp.ne.s32.totalorder %s669, %s671
      %p675 = scmp.eq.s32.totalorder %s68, 0
      %p676 = por %p674, %p675
      %p677 = scmp.ne.s32.totalorder %s669, %s671
      %p678 = scmp.eq.s32.totalorder %s73, 1
      %p679 = por %p677, %p678
      %p680 = scmp.ne.s32.totalorder %s671, %s672
      %p681 = scmp.eq.s32.totalorder %s73, 0
      %p682 = por %p680, %p681
      %p683 = scmp.ne.s32.totalorder %s671, %s672
      %p684 = scmp.eq.s32.totalorder %s74, 1
      %p685 = por %p683, %p684
      %p687 = scmp.ne.s32.totalorder %s672, %s686
      %p688 = scmp.eq.s32.totalorder %s74, 0
      %p689 = por %p687, %p688
      %s690 = ssub.s32 %s68, %s75
      %p691 = scmp.eq.s32.totalorder %s690, 0
      %s693 = sadd.s32 %s692, 1
      %s694 = scalar_select %p691, %s692, %s693
      %p697 = pneg %p691
      %p698 = scmp.eq.s32.totalorder %s68, 1
      %p699 = por %p697, %p698
      %p700 = scmp.ne.s32.totalorder %s692, %s695
      %p701 = scmp.eq.s32.totalorder %s68, 0
      %p702 = por %p700, %p701
      %p703 = scmp.ne.s32.totalorder %s692, %s695
      %p704 = scmp.eq.s32.totalorder %s73, 1
      %p705 = por %p703, %p704
      %p706 = scmp.ne.s32.totalorder %s695, %s696
      %p707 = scmp.eq.s32.totalorder %s73, 0
      %p708 = por %p706, %p707
      %p709 = scmp.ne.s32.totalorder %s695, %s696
      %p710 = scmp.eq.s32.totalorder %s74, 1
      %p711 = por %p709, %p710
      %p713 = scmp.ne.s32.totalorder %s696, %s712
      %p714 = scmp.eq.s32.totalorder %s74, 0
      %p715 = por %p713, %p714
      %p716 = scmp.le.s32.totalorder 1, %s68
      %p717 = scmp.lt.s32.totalorder %s68, 3
      %p718 = pnand %p716, %p717
      %p719 = pneg %p718
      // Predicated region
      $region9: #{transformer_forward.1} parent=5 // pred_check
        _
      $region10: #{transformer_forward.1} parent=5 // pred_check_branch
        %721 = sbr.rel (%p718) target = $region12
      $region11: #{transformer_forward.1} parent=5 // pred_region
        %s722 = ssub.s32 %s68, 1
        // Predicated region
        $region13: #{transformer_forward.1} parent=11 // pred_check
          %p723 = pneg %p115
        $region14: #{transformer_forward.1} parent=11 // pred_check_branch
          %725 = sbr.rel (%p723) target = $region16
        $region15: #{transformer_forward.1} parent=11 // pred_region
          _
        $region16: #{transformer_forward.1} parent=11 // pred_fallthru
          _
        // Predicated region
        $region17: #{transformer_forward.1} parent=11 // pred_check
          %p726 = pneg %p136
        $region18: #{transformer_forward.1} parent=11 // pred_check_branch
          %728 = sbr.rel (%p726) target = $region20
        $region19: #{transformer_forward.1} parent=11 // pred_region
          _
        $region20: #{transformer_forward.1} parent=11 // pred_fallthru
          _
        // Predicated region
        $region21: #{transformer_forward.1} parent=11 // pred_check
          %p729 = pneg %p157
        $region22: #{transformer_forward.1} parent=11 // pred_check_branch
          %731 = sbr.rel (%p729) target = $region24
        $region23: #{transformer_forward.1} parent=11 // pred_region
          _
        $region24: #{transformer_forward.1} parent=11 // pred_fallthru
          _
        // Predicated region
        $region25: #{transformer_forward.1} parent=11 // pred_check
          %p732 = pneg %p178
        $region26: #{transformer_forward.1} parent=11 // pred_check_branch
          %734 = sbr.rel (%p732) target = $region28
        $region27: #{transformer_forward.1} parent=11 // pred_region
          _
        $region28: #{transformer_forward.1} parent=11 // pred_fallthru
          _
        // Predicated region
        $region29: #{transformer_forward.1} parent=11 // pred_check
          %p735 = pneg %p199
        $region30: #{transformer_forward.1} parent=11 // pred_check_branch
          %737 = sbr.rel (%p735) target = $region32
        $region31: #{transformer_forward.1} parent=11 // pred_region
          _
        $region32: #{transformer_forward.1} parent=11 // pred_fallthru
          _
        // Predicated region
        $region33: #{transformer_forward.1} parent=11 // pred_check
          %p738 = pneg %p220
        $region34: #{transformer_forward.1} parent=11 // pred_check_branch
          %740 = sbr.rel (%p738) target = $region36
        $region35: #{transformer_forward.1} parent=11 // pred_region
          _
        $region36: #{transformer_forward.1} parent=11 // pred_fallthru
          _
        // Predicated region
        $region37: #{transformer_forward.1} parent=11 // pred_check
          %p741 = pneg %p241
        $region38: #{transformer_forward.1} parent=11 // pred_check_branch
          %743 = sbr.rel (%p741) target = $region40
        $region39: #{transformer_forward.1} parent=11 // pred_region
          _
        $region40: #{transformer_forward.1} parent=11 // pred_fallthru
          _
        // Predicated region
        $region41: #{transformer_forward.1} parent=11 // pred_check
          %p744 = pneg %p262
        $region42: #{transformer_forward.1} parent=11 // pred_check_branch
          %746 = sbr.rel (%p744) target = $region44
        $region43: #{transformer_forward.1} parent=11 // pred_region
          _
        $region44: #{transformer_forward.1} parent=11 // pred_fallthru
          _
        // Predicated region
        $region45: #{transformer_forward.1} parent=11 // pred_check
          %p747 = pneg %p283
        $region46: #{transformer_forward.1} parent=11 // pred_check_branch
          %749 = sbr.rel (%p747) target = $region48
        $region47: #{transformer_forward.1} parent=11 // pred_region
          _
        $region48: #{transformer_forward.1} parent=11 // pred_fallthru
          _
        // Predicated region
        $region49: #{transformer_forward.1} parent=11 // pred_check
          %p750 = pneg %p304
        $region50: #{transformer_forward.1} parent=11 // pred_check_branch
          %752 = sbr.rel (%p750) target = $region52
        $region51: #{transformer_forward.1} parent=11 // pred_region
          _
        $region52: #{transformer_forward.1} parent=11 // pred_fallthru
          _
        // Predicated region
        $region53: #{transformer_forward.1} parent=11 // pred_check
          %p753 = pneg %p325
        $region54: #{transformer_forward.1} parent=11 // pred_check_branch
          %755 = sbr.rel (%p753) target = $region56
        $region55: #{transformer_forward.1} parent=11 // pred_region
          _
        $region56: #{transformer_forward.1} parent=11 // pred_fallthru
          _
        // Predicated region
        $region57: #{transformer_forward.1} parent=11 // pred_check
          %p756 = pneg %p346
        $region58: #{transformer_forward.1} parent=11 // pred_check_branch
          %758 = sbr.rel (%p756) target = $region60
        $region59: #{transformer_forward.1} parent=11 // pred_region
          _
        $region60: #{transformer_forward.1} parent=11 // pred_fallthru
          _
        // Predicated region
        $region61: #{transformer_forward.1} parent=11 // pred_check
          %p759 = pneg %p367
        $region62: #{transformer_forward.1} parent=11 // pred_check_branch
          %761 = sbr.rel (%p759) target = $region64
        $region63: #{transformer_forward.1} parent=11 // pred_region
          _
        $region64: #{transformer_forward.1} parent=11 // pred_fallthru
          _
        // Predicated region
        $region65: #{transformer_forward.1} parent=11 // pred_check
          %p762 = pneg %p388
        $region66: #{transformer_forward.1} parent=11 // pred_check_branch
          %764 = sbr.rel (%p762) target = $region68
        $region67: #{transformer_forward.1} parent=11 // pred_region
          _
        $region68: #{transformer_forward.1} parent=11 // pred_fallthru
          _
        // Predicated region
        $region69: #{transformer_forward.1} parent=11 // pred_check
          %p765 = pneg %p409
        $region70: #{transformer_forward.1} parent=11 // pred_check_branch
          %767 = sbr.rel (%p765) target = $region72
        $region71: #{transformer_forward.1} parent=11 // pred_region
          _
        $region72: #{transformer_forward.1} parent=11 // pred_fallthru
          _
        // Predicated region
        $region73: #{transformer_forward.1} parent=11 // pred_check
          %p768 = pneg %p430
        $region74: #{transformer_forward.1} parent=11 // pred_check_branch
          %770 = sbr.rel (%p768) target = $region76
        $region75: #{transformer_forward.1} parent=11 // pred_region
          _
        $region76: #{transformer_forward.1} parent=11 // pred_fallthru
          _
        // Predicated region
        $region77: #{transformer_forward.1} parent=11 // pred_check
          %p771 = pneg %p451
        $region78: #{transformer_forward.1} parent=11 // pred_check_branch
          %773 = sbr.rel (%p771) target = $region80
        $region79: #{transformer_forward.1} parent=11 // pred_region
          _
        $region80: #{transformer_forward.1} parent=11 // pred_fallthru
          _
        // Predicated region
        $region81: #{transformer_forward.1} parent=11 // pred_check
          %p774 = pneg %p472
        $region82: #{transformer_forward.1} parent=11 // pred_check_branch
          %776 = sbr.rel (%p774) target = $region84
        $region83: #{transformer_forward.1} parent=11 // pred_region
          _
        $region84: #{transformer_forward.1} parent=11 // pred_fallthru
          _
        // Predicated region
        $region85: #{transformer_forward.1} parent=11 // pred_check
          %p777 = pneg %p493
        $region86: #{transformer_forward.1} parent=11 // pred_check_branch
          %779 = sbr.rel (%p777) target = $region88
        $region87: #{transformer_forward.1} parent=11 // pred_region
          _
        $region88: #{transformer_forward.1} parent=11 // pred_fallthru
          _
        // Predicated region
        $region89: #{transformer_forward.1} parent=11 // pred_check
          %p780 = pneg %p514
        $region90: #{transformer_forward.1} parent=11 // pred_check_branch
          %782 = sbr.rel (%p780) target = $region92
        $region91: #{transformer_forward.1} parent=11 // pred_region
          _
        $region92: #{transformer_forward.1} parent=11 // pred_fallthru
          _
        // Predicated region
        $region93: #{transformer_forward.1} parent=11 // pred_check
          %p783 = pneg %p535
        $region94: #{transformer_forward.1} parent=11 // pred_check_branch
          %785 = sbr.rel (%p783) target = $region96
        $region95: #{transformer_forward.1} parent=11 // pred_region
          _
        $region96: #{transformer_forward.1} parent=11 // pred_fallthru
          _
        // Predicated region
        $region97: #{transformer_forward.1} parent=11 // pred_check
          %p786 = pneg %p556
        $region98: #{transformer_forward.1} parent=11 // pred_check_branch
          %788 = sbr.rel (%p786) target = $region100
        $region99: #{transformer_forward.1} parent=11 // pred_region
          _
        $region100: #{transformer_forward.1} parent=11 // pred_fallthru
          _
        // Predicated region
        $region101: #{transformer_forward.1} parent=11 // pred_check
          %p789 = pneg %p577
        $region102: #{transformer_forward.1} parent=11 // pred_check_branch
          %791 = sbr.rel (%p789) target = $region104
        $region103: #{transformer_forward.1} parent=11 // pred_region
          _
        $region104: #{transformer_forward.1} parent=11 // pred_fallthru
          _
        // Predicated region
        $region105: #{transformer_forward.1} parent=11 // pred_check
          %p792 = pneg %p598
        $region106: #{transformer_forward.1} parent=11 // pred_check_branch
          %794 = sbr.rel (%p792) target = $region108
        $region107: #{transformer_forward.1} parent=11 // pred_region
          _
        $region108: #{transformer_forward.1} parent=11 // pred_fallthru
          _
        // Predicated region
        $region109: #{transformer_forward.1} parent=11 // pred_check
          %p795 = pneg %p619
        $region110: #{transformer_forward.1} parent=11 // pred_check_branch
          %797 = sbr.rel (%p795) target = $region112
        $region111: #{transformer_forward.1} parent=11 // pred_region
          _
        $region112: #{transformer_forward.1} parent=11 // pred_fallthru
          _
        // Predicated region
        $region113: #{transformer_forward.1} parent=11 // pred_check
          %p798 = pneg %p640
        $region114: #{transformer_forward.1} parent=11 // pred_check_branch
          %800 = sbr.rel (%p798) target = $region116
        $region115: #{transformer_forward.1} parent=11 // pred_region
          _
        $region116: #{transformer_forward.1} parent=11 // pred_fallthru
          _
        // Predicated region
        $region117: #{transformer_forward.1} parent=11 // pred_check
          %p801 = pneg %p661
        $region118: #{transformer_forward.1} parent=11 // pred_check_branch
          %803 = sbr.rel (%p801) target = $region120
        $region119: #{transformer_forward.1} parent=11 // pred_region
          _
        $region120: #{transformer_forward.1} parent=11 // pred_fallthru
          _
        // Predicated region
        $region121: #{transformer_forward.1} parent=11 // pred_check
          %p804 = pneg %p682
        $region122: #{transformer_forward.1} parent=11 // pred_check_branch
          %806 = sbr.rel (%p804) target = $region124
        $region123: #{transformer_forward.1} parent=11 // pred_region
          _
        $region124: #{transformer_forward.1} parent=11 // pred_fallthru
          _
      $region12: #{transformer_forward.1} parent=5 // pred_fallthru
        _
      %p807 = scmp.lt.s32.totalorder %s68, 2
      // Predicated region
      $region125: #{transformer_forward.1} parent=5 // pred_check
        %p808 = pneg %p807
      $region126: #{transformer_forward.1} parent=5 // pred_check_branch
        %810 = sbr.rel (%p808) target = $region128
      $region127: #{transformer_forward.1} parent=5 // pred_region
        // Predicated region
        $region129: #{transformer_forward.1} parent=127 // pred_check
          %p811 = pneg %p88
        $region130: #{transformer_forward.1} parent=127 // pred_check_branch
          %813 = sbr.rel (%p811) target = $region132
        $region131: #{transformer_forward.1} parent=127 // pred_region
          %p814 = scmp.lt.s32.totalorder %s68, 1
          %s815 = scalar_select %p814, %s68, 1
          %s816 = smul.addr %s815, 8
          %s817 = scalar_lea.vmem %s1, %s816
        $region132: #{transformer_forward.1} parent=127 // pred_fallthru
          _
      $region128: #{transformer_forward.1} parent=5 // pred_fallthru
        _
      %p818 = scmp.le.s32.totalorder 1, %s68
      %p819 = scmp.lt.s32.totalorder %s68, 3
      %p820 = pnand %p818, %p819
      %p821 = pneg %p820
      // Predicated region
      $region133: #{transformer_forward.1} parent=5 // pred_check
        _
      $region134: #{transformer_forward.1} parent=5 // pred_check_branch
        %823 = sbr.rel (%p820) target = $region136
      $region135: #{transformer_forward.1} parent=5 // pred_region
        %s824 = ssub.s32 %s68, 1
        %p825 = scmp.lt.s32.totalorder %s73, 1
        %s826 = scalar_select %p825, %s73, 1
        %s827 = smul.addr %s826, 8
        %s828 = scalar_lea.vmem %s1, %s827
        %p829 = pneg %p94
        %p830 = pneg %p91
        %p831 = pneg %p115
        %p832 = pneg %p112
        %p833 = pneg %p136
        %p834 = pneg %p133
        %p835 = pneg %p157
        %p836 = pneg %p154
        %p837 = pneg %p178
        %p838 = pneg %p175
        %p839 = pneg %p199
        %p840 = pneg %p196
        %p841 = pneg %p220
        %p842 = pneg %p217
        %p843 = pneg %p241
        %p844 = pneg %p238
        %p845 = pneg %p262
        %p846 = pneg %p259
        %p847 = pneg %p283
        %p848 = pneg %p280
        %p849 = pneg %p304
        %p850 = pneg %p301
        %p851 = pneg %p325
        %p852 = pneg %p322
        %p853 = pneg %p346
        %p854 = pneg %p343
        %p855 = pneg %p367
        %p856 = pneg %p364
        %p857 = pneg %p388
        %p858 = pneg %p385
        %p859 = pneg %p409
        %p860 = pneg %p406
        %p861 = pneg %p430
        %p862 = pneg %p427
        %p863 = pneg %p451
        %p864 = pneg %p448
        %p865 = pneg %p472
        %p866 = pneg %p469
        %p867 = pneg %p493
        %p868 = pneg %p490
        %p869 = pneg %p514
        %p870 = pneg %p511
        %p871 = pneg %p535
        %p872 = pneg %p532
        %p873 = pneg %p556
        %p874 = pneg %p553
        %p875 = pneg %p577
        %p876 = pneg %p574
        %p877 = pneg %p598
        %p878 = pneg %p595
        %p879 = pneg %p619
        %p880 = pneg %p616
        %p881 = pneg %p640
        %p882 = pneg %p637
        %p883 = pneg %p661
        %p884 = pneg %p658
        %p885 = pneg %p682
        %p886 = pneg %p679
        %p887 = pneg %p708
        %p888 = pneg %p705
        %s889 = sand.u32 %s695, 1
        %s890 = scalar_lea.sflag [#allocation3], %s889
        %s891 = sand.u32 %s695, 1
        %s892 = smul.addr %s891, 8
        %s893 = scalar_lea.vmem [#allocation2], %s892
        %p894 = scmp.lt.s32.totalorder %s73, 1
        %s895 = scalar_select %p894, %s73, 1
        %s896 = smul.addr %s895, 8
        %s897 = scalar_lea.vmem %s1, %s896
        %v898 = vld [vmem:[%s897] sm:$0xff]
        %v899 = vlaneseq
        %v900 = vand.u32 %v899, 127
        %901 = vset.pattern.permute.xlu0 0
        %902 = vperm.xlu0 %901, %v898
        %v903 = vpop.permute.xlu0 %902
        %vm904 = vcmp.eq.s32.totalorder %v900, %v903
        %v905 = vsel %vm904, 1, 0
        %v906 = vcvt.s32.f32 %v905
        %v907 = vld [vmem:[%s3] sm:$0xff]
        %v908 = vld [vmem:[%s3 + $0x8] sm:$0xff]
        %v909 = vld [vmem:[%s5] sm:$0xff]
        %vm910 = vcmask 130048
        %v912 = vsel %vm910, %v906, 0
        %914 = vmatprep.subr.mxu0 0.0
        %915 = vmatpush1.msra.mxu0 %v907
        %916 = vmatprep.subr.mxu0 0.0
        %917 = vmatpush1.msra.mxu0 %v908
        %918 = vmatprep.subr.mxu0 0.0
        %919 = vmatpush1.msra.mxu0 0.0
        %920 = vmatprep.subr.mxu0 0.0
        %921 = vmatpush1.msra.mxu0 0.0
        %922 = vmatprep.subr.mxu0 0.0
        %923 = vmatpush1.msra.mxu0 0.0
        %924 = vmatprep.subr.mxu0 0.0
        %925 = vmatpush1.msra.mxu0 0.0
        %926 = vmatprep.subr.mxu0 0.0
        %927 = vmatpush1.msra.mxu0 0.0
        %928 = vmatprep.subr.mxu0 0.0
        %929 = vmatpush1.msra.mxu0 0.0
        %930 = vmatprep.subr.mxu0 0.0
        %931 = vmatpush1.msra.mxu0 0.0
        %932 = vmatprep.subr.mxu0 0.0
        %933 = vmatpush1.msra.mxu0 0.0
        %934 = vmatprep.subr.mxu0 0.0
        %935 = vmatpush1.msra.mxu0 0.0
        %936 = vmatprep.subr.mxu0 0.0
        %937 = vmatpush1.msra.mxu0 0.0
        %938 = vmatprep.subr.mxu0 0.0
        %939 = vmatpush1.msra.mxu0 0.0
        %940 = vmatprep.subr.mxu0 0.0
        %941 = vmatpush1.msra.mxu0 0.0
        %942 = vmatprep.subr.mxu0 0.0
        %943 = vmatpush1.msra.mxu0 0.0
        %944 = vmatprep.subr.mxu0 0.0
        %945 = vmatpush1.msra.mxu0 0.0
        %946 = vmatprep.subr.mxu0 0.0
        %947 = vmatpush1.msra.mxu0 0.0
        %948 = vmatprep.subr.mxu0 0.0
        %949 = vmatpush1.msra.mxu0 0.0
        %950 = vmatprep.subr.mxu0 0.0
        %951 = vmatpush1.msra.mxu0 0.0
        %952 = vmatprep.subr.mxu0 0.0
        %953 = vmatpush1.msra.mxu0 0.0
        %954 = vmatprep.subr.mxu0 0.0
        %955 = vmatpush1.msra.mxu0 0.0
        %956 = vmatprep.subr.mxu0 0.0
        %957 = vmatpush1.msra.mxu0 0.0
        %958 = vmatprep.subr.mxu0 0.0
        %959 = vmatpush1.msra.mxu0 0.0
        %960 = vmatprep.subr.mxu0 0.0
        %961 = vmatpush1.msra.mxu0 0.0
        %962 = vmatprep.subr.mxu0 0.0
        %963 = vmatpush1.msra.mxu0 0.0
        %964 = vmatprep.subr.mxu0 0.0
        %965 = vmatpush1.msra.mxu0 0.0
        %966 = vmatprep.subr.mxu0 0.0
        %967 = vmatpush1.msra.mxu0 0.0
        %968 = vmatprep.subr.mxu0 0.0
        %969 = vmatpush1.msra.mxu0 0.0
        %970 = vmatprep.subr.mxu0 0.0
        %971 = vmatpush1.msra.mxu0 0.0
        %972 = vmatprep.subr.mxu0 0.0
        %973 = vmatpush1.msra.mxu0 0.0
        %974 = vmatprep.subr.mxu0 0.0
        %975 = vmatpush1.msra.mxu0 0.0
        %976 = vmatprep.subr.mxu0 0.0
        %977 = vmatpush1.msra.mxu0 0.0
        %978 = vmatprep.mubr.f32.mxu0 0.0
        %979 = vmatmul.mubr.f32.gmra.mrb[0].mxu0 %v912
        %v980 = vpop.f32.mrb[0].mxu0
        %v981 = vadd.f32 %v909, %v980
        %v982 = vpop.f32.mrb[0].mxu0
        %983 = vdwg.mxu0
        %v984 = vld [vmem:[%s7] sm:$0xff]
        %v985 = vld [vmem:[%s7 + $0x8] sm:$0xff]
        %v986 = vld [vmem:[%s7 + $0x10] sm:$0xff]
        %v987 = vld [vmem:[%s7 + $0x18] sm:$0xff]
        %v988 = vld [vmem:[%s7 + $0x20] sm:$0xff]
        %v989 = vld [vmem:[%s7 + $0x28] sm:$0xff]
        %v990 = vld [vmem:[%s7 + $0x30] sm:$0xff]
        %v991 = vld [vmem:[%s7 + $0x38] sm:$0xff]
        %v992 = vld [vmem:[%s7 + $0x40] sm:$0xff]
        %v993 = vld [vmem:[%s7 + $0x48] sm:$0xff]
        %v994 = vld [vmem:[%s7 + $0x50] sm:$0xff]
        %v995 = vld [vmem:[%s7 + $0x58] sm:$0xff]
        %v996 = vld [vmem:[%s7 + $0x60] sm:$0xff]
        %v997 = vld [vmem:[%s7 + $0x68] sm:$0xff]
        %v998 = vld [vmem:[%s7 + $0x70] sm:$0xff]
        %v999 = vld [vmem:[%s7 + $0x78] sm:$0xff]
        %v1000 = vld [vmem:[%s7 + $0x80] sm:$0xff]
        %v1001 = vld [vmem:[%s7 + $0x88] sm:$0xff]
        %v1002 = vld [vmem:[%s7 + $0x90] sm:$0xff]
        %v1003 = vld [vmem:[%s7 + $0x98] sm:$0xff]
        %v1004 = vld [vmem:[%s7 + $0xa0] sm:$0xff]
        %v1005 = vld [vmem:[%s7 + $0xa8] sm:$0xff]
        %v1006 = vld [vmem:[%s7 + $0xb0] sm:$0xff]
        %v1007 = vld [vmem:[%s7 + $0xb8] sm:$0xff]
        %v1008 = vld [vmem:[%s7 + $0xc0] sm:$0xff]
        %v1009 = vld [vmem:[%s7 + $0xc8] sm:$0xff]
        %v1010 = vld [vmem:[%s7 + $0xd0] sm:$0xff]
        %v1011 = vld [vmem:[%s7 + $0xd8] sm:$0xff]
        %v1012 = vld [vmem:[%s7 + $0xe0] sm:$0xff]
        %v1013 = vld [vmem:[%s7 + $0xe8] sm:$0xff]
        %v1014 = vld [vmem:[%s7 + $0xf0] sm:$0xff]
        %v1015 = vld [vmem:[%s7 + $0xf8] sm:$0xff]
        %v1016 = vld [vmem:[%s9] sm:$0x1]
        %v1017 = vld [vmem:[%s9 + $0x1] sm:$0x1]
        %v1018 = vld [vmem:[%s9 + $0x2] sm:$0x1]
        %v1019 = vld [vmem:[%s9 + $0x3] sm:$0x1]
        %v1024 = vlaneseq
        %v1025 = vshrl.u32 %v1024, 7
        %v1026 = vsub.s32 0, %v1025
        %v1027 = vrot.slane %v1016, %v1026
        %v1028 = vlaneseq
        %v1029 = vshrl.u32 %v1028, 7
        %v1030 = vsub.s32 0, %v1029
        %v1031 = vrot.slane %v1017, %v1030
        %v1032 = vlaneseq
        %v1033 = vshrl.u32 %v1032, 7
        %v1034 = vsub.s32 0, %v1033
        %v1035 = vrot.slane %v1018, %v1034
        %v1036 = vlaneseq
        %v1037 = vshrl.u32 %v1036, 7
        %v1038 = vsub.s32 0, %v1037
        %v1039 = vrot.slane %v1019, %v1038
        %vm1044 = vcmask 523264
        %v1046 = vsel %vm1044, %v981, 0
        %1048 = vmatprep.subr.mxu0 0.0
        %1049 = vmatpush1.msra.mxu0 %v984
        %1050 = vmatprep.subr.mxu0 0.0
        %1051 = vmatpush1.msra.mxu0 %v985
        %1052 = vmatprep.subr.mxu0 0.0
        %1053 = vmatpush1.msra.mxu0 %v986
        %1054 = vmatprep.subr.mxu0 0.0
        %1055 = vmatpush1.msra.mxu0 %v987
        %1056 = vmatprep.subr.mxu0 0.0
        %1057 = vmatpush1.msra.mxu0 %v988
        %1058 = vmatprep.subr.mxu0 0.0
        %1059 = vmatpush1.msra.mxu0 %v989
        %1060 = vmatprep.subr.mxu0 0.0
        %1061 = vmatpush1.msra.mxu0 %v990
        %1062 = vmatprep.subr.mxu0 0.0
        %1063 = vmatpush1.msra.mxu0 %v991
        %1064 = vmatprep.subr.mxu0 0.0
        %1065 = vmatpush1.msra.mxu0 0.0
        %1066 = vmatprep.subr.mxu0 0.0
        %1067 = vmatpush1.msra.mxu0 0.0
        %1068 = vmatprep.subr.mxu0 0.0
        %1069 = vmatpush1.msra.mxu0 0.0
        %1070 = vmatprep.subr.mxu0 0.0
        %1071 = vmatpush1.msra.mxu0 0.0
        %1072 = vmatprep.subr.mxu0 0.0
        %1073 = vmatpush1.msra.mxu0 0.0
        %1074 = vmatprep.subr.mxu0 0.0
        %1075 = vmatpush1.msra.mxu0 0.0
        %1076 = vmatprep.subr.mxu0 0.0
        %1077 = vmatpush1.msra.mxu0 0.0
        %1078 = vmatprep.subr.mxu0 0.0
        %1079 = vmatpush1.msra.mxu0 0.0
        %1080 = vmatprep.subr.mxu0 0.0
        %1081 = vmatpush1.msra.mxu0 0.0
        %1082 = vmatprep.subr.mxu0 0.0
        %1083 = vmatpush1.msra.mxu0 0.0
        %1084 = vmatprep.subr.mxu0 0.0
        %1085 = vmatpush1.msra.mxu0 0.0
        %1086 = vmatprep.subr.mxu0 0.0
        %1087 = vmatpush1.msra.mxu0 0.0
        %1088 = vmatprep.subr.mxu0 0.0
        %1089 = vmatpush1.msra.mxu0 0.0
        %1090 = vmatprep.subr.mxu0 0.0
        %1091 = vmatpush1.msra.mxu0 0.0
        %1092 = vmatprep.subr.mxu0 0.0
        %1093 = vmatpush1.msra.mxu0 0.0
        %1094 = vmatprep.subr.mxu0 0.0
        %1095 = vmatpush1.msra.mxu0 0.0
        %1096 = vmatprep.subr.mxu0 0.0
        %1097 = vmatpush1.msra.mxu0 0.0
        %1098 = vmatprep.subr.mxu0 0.0
        %1099 = vmatpush1.msra.mxu0 0.0
        %1100 = vmatprep.subr.mxu0 0.0
        %1101 = vmatpush1.msra.mxu0 0.0
        %1102 = vmatprep.subr.mxu0 0.0
        %1103 = vmatpush1.msra.mxu0 0.0
        %1104 = vmatprep.subr.mxu0 0.0
        %1105 = vmatpush1.msra.mxu0 0.0
        %1106 = vmatprep.subr.mxu0 0.0
        %1107 = vmatpush1.msra.mxu0 0.0
        %1108 = vmatprep.subr.mxu0 0.0
        %1109 = vmatpush1.msra.mxu0 0.0
        %1110 = vmatprep.subr.mxu0 0.0
        %1111 = vmatpush1.msra.mxu0 0.0
        %1112 = vmatprep.mubr.f32.mxu0 0.0
        %1113 = vmatmul.mubr.f32.gmra.mrb[0].mxu0 %v1046
        %v1114 = vpop.f32.mrb[0].mxu0
        %v1115 = vadd.f32 %v1027, %v1114
        %v1116 = vpop.f32.mrb[0].mxu0
        %1117 = vdwg.mxu0
        %1118 = vmatprep.subr.mxu0 0.0
        %1119 = vmatpush1.msra.mxu0 %v992
        %1120 = vmatprep.subr.mxu0 0.0
        %1121 = vmatpush1.msra.mxu0 %v993
        %1122 = vmatprep.subr.mxu0 0.0
        %1123 = vmatpush1.msra.mxu0 %v994
        %1124 = vmatprep.subr.mxu0 0.0
        %1125 = vmatpush1.msra.mxu0 %v995
        %1126 = vmatprep.subr.mxu0 0.0
        %1127 = vmatpush1.msra.mxu0 %v996
        %1128 = vmatprep.subr.mxu0 0.0
        %1129 = vmatpush1.msra.mxu0 %v997
        %1130 = vmatprep.subr.mxu0 0.0
        %1131 = vmatpush1.msra.mxu0 %v998
        %1132 = vmatprep.subr.mxu0 0.0
        %1133 = vmatpush1.msra.mxu0 %v999
        %1134 = vmatprep.subr.mxu0 0.0
        %1135 = vmatpush1.msra.mxu0 0.0
        %1136 = vmatprep.subr.mxu0 0.0
        %1137 = vmatpush1.msra.mxu0 0.0
        %1138 = vmatprep.subr.mxu0 0.0
        %1139 = vmatpush1.msra.mxu0 0.0
        %1140 = vmatprep.subr.mxu0 0.0
        %1141 = vmatpush1.msra.mxu0 0.0
        %1142 = vmatprep.subr.mxu0 0.0
        %1143 = vmatpush1.msra.mxu0 0.0
        %1144 = vmatprep.subr.mxu0 0.0
        %1145 = vmatpush1.msra.mxu0 0.0
        %1146 = vmatprep.subr.mxu0 0.0
        %1147 = vmatpush1.msra.mxu0 0.0
        %1148 = vmatprep.subr.mxu0 0.0
        %1149 = vmatpush1.msra.mxu0 0.0
        %1150 = vmatprep.subr.mxu0 0.0
        %1151 = vmatpush1.msra.mxu0 0.0
        %1152 = vmatprep.subr.mxu0 0.0
        %1153 = vmatpush1.msra.mxu0 0.0
        %1154 = vmatprep.subr.mxu0 0.0
        %1155 = vmatpush1.msra.mxu0 0.0
        %1156 = vmatprep.subr.mxu0 0.0
        %1157 = vmatpush1.msra.mxu0 0.0
        %1158 = vmatprep.subr.mxu0 0.0
        %1159 = vmatpush1.msra.mxu0 0.0
        %1160 = vmatprep.subr.mxu0 0.0
        %1161 = vmatpush1.msra.mxu0 0.0
        %1162 = vmatprep.subr.mxu0 0.0
        %1163 = vmatpush1.msra.mxu0 0.0
        %1164 = vmatprep.subr.mxu0 0.0
        %1165 = vmatpush1.msra.mxu0 0.0
        %1166 = vmatprep.subr.mxu0 0.0
        %1167 = vmatpush1.msra.mxu0 0.0
        %1168 = vmatprep.subr.mxu0 0.0
        %1169 = vmatpush1.msra.mxu0 0.0
        %1170 = vmatprep.subr.mxu0 0.0
        %1171 = vmatpush1.msra.mxu0 0.0
        %1172 = vmatprep.subr.mxu0 0.0
        %1173 = vmatpush1.msra.mxu0 0.0
        %1174 = vmatprep.subr.mxu0 0.0
        %1175 = vmatpush1.msra.mxu0 0.0
        %1176 = vmatprep.subr.mxu0 0.0
        %1177 = vmatpush1.msra.mxu0 0.0
        %1178 = vmatprep.subr.mxu0 0.0
        %1179 = vmatpush1.msra.mxu0 0.0
        %1180 = vmatprep.subr.mxu0 0.0
        %1181 = vmatpush1.msra.mxu0 0.0
        %1182 = vmatprep.mubr.f32.mxu0 0.0
        %1183 = vmatmul.mubr.f32.gmra.mrb[0].mxu0 %v1046
        %v1184 = vpop.f32.mrb[0].mxu0
        %v1185 = vadd.f32 %v1031, %v1184
        %v1186 = vpop.f32.mrb[0].mxu0
        %1187 = vdwg.mxu0
        %1188 = vmatprep.subr.mxu0 0.0
        %1189 = vmatpush1.msra.mxu0 %v1000
        %1190 = vmatprep.subr.mxu0 0.0
        %1191 = vmatpush1.msra.mxu0 %v1001
        %1192 = vmatprep.subr.mxu0 0.0
        %1193 = vmatpush1.msra.mxu0 %v1002
        %1194 = vmatprep.subr.mxu0 0.0
        %1195 = vmatpush1.msra.mxu0 %v1003
        %1196 = vmatprep.subr.mxu0 0.0
        %1197 = vmatpush1.msra.mxu0 %v1004
        %1198 = vmatprep.subr.mxu0 0.0
        %1199 = vmatpush1.msra.mxu0 %v1005
        %1200 = vmatprep.subr.mxu0 0.0
        %1201 = vmatpush1.msra.mxu0 %v1006
        %1202 = vmatprep.subr.mxu0 0.0
        %1203 = vmatpush1.msra.mxu0 %v1007
        %1204 = vmatprep.subr.mxu0 0.0
        %1205 = vmatpush1.msra.mxu0 0.0
        %1206 = vmatprep.subr.mxu0 0.0
        %1207 = vmatpush1.msra.mxu0 0.0
        %1208 = vmatprep.subr.mxu0 0.0
        %1209 = vmatpush1.msra.mxu0 0.0
        %1210 = vmatprep.subr.mxu0 0.0
        %1211 = vmatpush1.msra.mxu0 0.0
        %1212 = vmatprep.subr.mxu0 0.0
        %1213 = vmatpush1.msra.mxu0 0.0
        %1214 = vmatprep.subr.mxu0 0.0
        %1215 = vmatpush1.msra.mxu0 0.0
        %1216 = vmatprep.subr.mxu0 0.0
        %1217 = vmatpush1.msra.mxu0 0.0
        %1218 = vmatprep.subr.mxu0 0.0
        %1219 = vmatpush1.msra.mxu0 0.0
        %1220 = vmatprep.subr.mxu0 0.0
        %1221 = vmatpush1.msra.mxu0 0.0
        %1222 = vmatprep.subr.mxu0 0.0
        %1223 = vmatpush1.msra.mxu0 0.0
        %1224 = vmatprep.subr.mxu0 0.0
        %1225 = vmatpush1.msra.mxu0 0.0
        %1226 = vmatprep.subr.mxu0 0.0
        %1227 = vmatpush1.msra.mxu0 0.0
        %1228 = vmatprep.subr.mxu0 0.0
        %1229 = vmatpush1.msra.mxu0 0.0
        %1230 = vmatprep.subr.mxu0 0.0
        %1231 = vmatpush1.msra.mxu0 0.0
        %1232 = vmatprep.subr.mxu0 0.0
        %1233 = vmatpush1.msra.mxu0 0.0
        %1234 = vmatprep.subr.mxu0 0.0
        %1235 = vmatpush1.msra.mxu0 0.0
        %1236 = vmatprep.subr.mxu0 0.0
        %1237 = vmatpush1.msra.mxu0 0.0
        %1238 = vmatprep.subr.mxu0 0.0
        %1239 = vmatpush1.msra.mxu0 0.0
        %1240 = vmatprep.subr.mxu0 0.0
        %1241 = vmatpush1.msra.mxu0 0.0
        %1242 = vmatprep.subr.mxu0 0.0
        %1243 = vmatpush1.msra.mxu0 0.0
        %1244 = vmatprep.subr.mxu0 0.0
        %1245 = vmatpush1.msra.mxu0 0.0
        %1246 = vmatprep.subr.mxu0 0.0
        %1247 = vmatpush1.msra.mxu0 0.0
        %1248 = vmatprep.subr.mxu0 0.0
        %1249 = vmatpush1.msra.mxu0 0.0
        %1250 = vmatprep.subr.mxu0 0.0
        %1251 = vmatpush1.msra.mxu0 0.0
        %1252 = vmatprep.mubr.f32.mxu0 0.0
        %1253 = vmatmul.mubr.f32.gmra.mrb[0].mxu0 %v1046
        %v1254 = vpop.f32.mrb[0].mxu0
        %v1255 = vadd.f32 %v1035, %v1254
        %v1256 = vpop.f32.mrb[0].mxu0
        %1257 = vdwg.mxu0
        %1258 = vmatprep.subr.mxu0 0.0
        %1259 = vmatpush1.msra.mxu0 %v1008
        %1260 = vmatprep.subr.mxu0 0.0
        %1261 = vmatpush1.msra.mxu0 %v1009
        %1262 = vmatprep.subr.mxu0 0.0
        %1263 = vmatpush1.msra.mxu0 %v1010
        %1264 = vmatprep.subr.mxu0 0.0
        %1265 = vmatpush1.msra.mxu0 %v1011
        %1266 = vmatprep.subr.mxu0 0.0
        %1267 = vmatpush1.msra.mxu0 %v1012
        %1268 = vmatprep.subr.mxu0 0.0
        %1269 = vmatpush1.msra.mxu0 %v1013
        %1270 = vmatprep.subr.mxu0 0.0
        %1271 = vmatpush1.msra.mxu0 %v1014
        %1272 = vmatprep.subr.mxu0 0.0
        %1273 = vmatpush1.msra.mxu0 %v1015
        %1274 = vmatprep.subr.mxu0 0.0
        %1275 = vmatpush1.msra.mxu0 0.0
        %1276 = vmatprep.subr.mxu0 0.0
        %1277 = vmatpush1.msra.mxu0 0.0
        %1278 = vmatprep.subr.mxu0 0.0
        %1279 = vmatpush1.msra.mxu0 0.0
        %1280 = vmatprep.subr.mxu0 0.0
        %1281 = vmatpush1.msra.mxu0 0.0
        %1282 = vmatprep.subr.mxu0 0.0
        %1283 = vmatpush1.msra.mxu0 0.0
        %1284 = vmatprep.subr.mxu0 0.0
        %1285 = vmatpush1.msra.mxu0 0.0
        %1286 = vmatprep.subr.mxu0 0.0
        %1287 = vmatpush1.msra.mxu0 0.0
        %1288 = vmatprep.subr.mxu0 0.0
        %1289 = vmatpush1.msra.mxu0 0.0
        %1290 = vmatprep.subr.mxu0 0.0
        %1291 = vmatpush1.msra.mxu0 0.0
        %1292 = vmatprep.subr.mxu0 0.0
        %1293 = vmatpush1.msra.mxu0 0.0
        %1294 = vmatprep.subr.mxu0 0.0
        %1295 = vmatpush1.msra.mxu0 0.0
        %1296 = vmatprep.subr.mxu0 0.0
        %1297 = vmatpush1.msra.mxu0 0.0
        %1298 = vmatprep.subr.mxu0 0.0
        %1299 = vmatpush1.msra.mxu0 0.0
        %1300 = vmatprep.subr.mxu0 0.0
        %1301 = vmatpush1.msra.mxu0 0.0
        %1302 = vmatprep.subr.mxu0 0.0
        %1303 = vmatpush1.msra.mxu0 0.0
        %1304 = vmatprep.subr.mxu0 0.0
        %1305 = vmatpush1.msra.mxu0 0.0
        %1306 = vmatprep.subr.mxu0 0.0
        %1307 = vmatpush1.msra.mxu0 0.0
        %1308 = vmatprep.subr.mxu0 0.0
        %1309 = vmatpush1.msra.mxu0 0.0
        %1310 = vmatprep.subr.mxu0 0.0
        %1311 = vmatpush1.msra.mxu0 0.0
        %1312 = vmatprep.subr.mxu0 0.0
        %1313 = vmatpush1.msra.mxu0 0.0
        %1314 = vmatprep.subr.mxu0 0.0
        %1315 = vmatpush1.msra.mxu0 0.0
        %1316 = vmatprep.subr.mxu0 0.0
        %1317 = vmatpush1.msra.mxu0 0.0
        %1318 = vmatprep.subr.mxu0 0.0
        %1319 = vmatpush1.msra.mxu0 0.0
        %1320 = vmatprep.subr.mxu0 0.0
        %1321 = vmatpush1.msra.mxu0 0.0
        %1322 = vmatprep.mubr.f32.mxu0 0.0
        %1323 = vmatmul.mubr.f32.gmra.mrb[0].mxu0 %v1046
        %v1324 = vpop.f32.mrb[0].mxu0
        %v1325 = vadd.f32 %v1039, %v1324
        %v1326 = vpop.f32.mrb[0].mxu0
        %1327 = vdwg.mxu0
        %1329 = vrot.lane.b32.xlu0 %v1115, 112
        %v1330 = vpop.permute.xlu0 %1329
        %v1331 = vsel %vm910, %v1115, 0
        %v1333 = vsel %vm910, %v1330, 0
        %1335 = vmatprep.subr.mxu0 0.0
        %1336 = vmatpush1.xpose.msra.mxu0 %v1333
        %1337 = vmatprep.subr.mxu0 0.0
        %1338 = vmatpush1.xpose.msra.mxu0 0.0
        %1339 = vmatprep.subr.mxu0 0.0
        %1340 = vmatpush1.xpose.msra.mxu0 0.0
        %1341 = vmatprep.subr.mxu0 0.0
        %1342 = vmatpush1.xpose.msra.mxu0 0.0
        %1343 = vmatprep.subr.mxu0 0.0
        %1344 = vmatpush1.xpose.msra.mxu0 0.0
        %1345 = vmatprep.subr.mxu0 0.0
        %1346 = vmatpush1.xpose.msra.mxu0 0.0
        %1347 = vmatprep.subr.mxu0 0.0
        %1348 = vmatpush1.xpose.msra.mxu0 0.0
        %1349 = vmatprep.subr.mxu0 0.0
        %1350 = vmatpush1.xpose.msra.mxu0 0.0
        %1351 = vmatprep.subr.mxu0 0.0
        %1352 = vmatpush1.xpose.msra.mxu0 0.0
        %1353 = vmatprep.subr.mxu0 0.0
        %1354 = vmatpush1.xpose.msra.mxu0 0.0
        %1355 = vmatprep.subr.mxu0 0.0
        %1356 = vmatpush1.xpose.msra.mxu0 0.0
        %1357 = vmatprep.subr.mxu0 0.0
        %1358 = vmatpush1.xpose.msra.mxu0 0.0
        %1359 = vmatprep.subr.mxu0 0.0
        %1360 = vmatpush1.xpose.msra.mxu0 0.0
        %1361 = vmatprep.subr.mxu0 0.0
        %1362 = vmatpush1.xpose.msra.mxu0 0.0
        %1363 = vmatprep.subr.mxu0 0.0
        %1364 = vmatpush1.xpose.msra.mxu0 0.0
        %1365 = vmatprep.subr.mxu0 0.0
        %1366 = vmatpush1.xpose.msra.mxu0 0.0
        %1367 = vmatprep.subr.mxu0 0.0
        %1368 = vmatpush1.xpose.msra.mxu0 0.0
        %1369 = vmatprep.subr.mxu0 0.0
        %1370 = vmatpush1.xpose.msra.mxu0 0.0
        %1371 = vmatprep.subr.mxu0 0.0
        %1372 = vmatpush1.xpose.msra.mxu0 0.0
        %1373 = vmatprep.subr.mxu0 0.0
        %1374 = vmatpush1.xpose.msra.mxu0 0.0
        %1375 = vmatprep.subr.mxu0 0.0
        %1376 = vmatpush1.xpose.msra.mxu0 0.0
        %1377 = vmatprep.subr.mxu0 0.0
        %1378 = vmatpush1.xpose.msra.mxu0 0.0
        %1379 = vmatprep.subr.mxu0 0.0
        %1380 = vmatpush1.xpose.msra.mxu0 0.0
        %1381 = vmatprep.subr.mxu0 0.0
        %1382 = vmatpush1.xpose.msra.mxu0 0.0
        %1383 = vmatprep.subr.mxu0 0.0
        %1384 = vmatpush1.xpose.msra.mxu0 0.0
        %1385 = vmatprep.subr.mxu0 0.0
        %1386 = vmatpush1.xpose.msra.mxu0 0.0
        %1387 = vmatprep.subr.mxu0 0.0
        %1388 = vmatpush1.xpose.msra.mxu0 0.0
        %1389 = vmatprep.subr.mxu0 0.0
        %1390 = vmatpush1.xpose.msra.mxu0 0.0
        %1391 = vmatprep.subr.mxu0 0.0
        %1392 = vmatpush1.xpose.msra.mxu0 0.0
        %1393 = vmatprep.subr.mxu0 0.0
        %1394 = vmatpush1.xpose.msra.mxu0 0.0
        %1395 = vmatprep.subr.mxu0 0.0
        %1396 = vmatpush1.xpose.msra.mxu0 0.0
        %1397 = vmatprep.subr.mxu0 0.0
        %1398 = vmatpush1.xpose.msra.mxu0 0.0
        %1399 = vmatprep.mubr.f32.mxu0 0.0
        %1400 = vmatmul.mubr.f32.gmra.mrb[0].mxu0 %v1331
        %v1401 = vpop.f32.mrb[0].mxu0
        %v1402 = vadd.f32 0.0, %v1401
        %v1403 = vpop.f32.mrb[0].mxu0
        %1404 = vdwg.mxu0
        %1406 = vrot.lane.b32.xlu0 %v1185, 112
        %v1407 = vpop.permute.xlu0 %1406
        %v1408 = vsel %vm910, %v1185, 0
        %v1410 = vsel %vm910, %v1407, 0
        %1412 = vmatprep.subr.mxu0 0.0
        %1413 = vmatpush1.xpose.msra.mxu0 %v1410
        %1414 = vmatprep.subr.mxu0 0.0
        %1415 = vmatpush1.xpose.msra.mxu0 0.0
        %1416 = vmatprep.subr.mxu0 0.0
        %1417 = vmatpush1.xpose.msra.mxu0 0.0
        %1418 = vmatprep.subr.mxu0 0.0
        %1419 = vmatpush1.xpose.msra.mxu0 0.0
        %1420 = vmatprep.subr.mxu0 0.0
        %1421 = vmatpush1.xpose.msra.mxu0 0.0
        %1422 = vmatprep.subr.mxu0 0.0
        %1423 = vmatpush1.xpose.msra.mxu0 0.0
        %1424 = vmatprep.subr.mxu0 0.0
        %1425 = vmatpush1.xpose.msra.mxu0 0.0
        %1426 = vmatprep.subr.mxu0 0.0
        %1427 = vmatpush1.xpose.msra.mxu0 0.0
        %1428 = vmatprep.subr.mxu0 0.0
        %1429 = vmatpush1.xpose.msra.mxu0 0.0
        %1430 = vmatprep.subr.mxu0 0.0
        %1431 = vmatpush1.xpose.msra.mxu0 0.0
        %1432 = vmatprep.subr.mxu0 0.0
        %1433 = vmatpush1.xpose.msra.mxu0 0.0
        %1434 = vmatprep.subr.mxu0 0.0
        %1435 = vmatpush1.xpose.msra.mxu0 0.0
        %1436 = vmatprep.subr.mxu0 0.0
        %1437 = vmatpush1.xpose.msra.mxu0 0.0
        %1438 = vmatprep.subr.mxu0 0.0
        %1439 = vmatpush1.xpose.msra.mxu0 0.0
        %1440 = vmatprep.subr.mxu0 0.0
        %1441 = vmatpush1.xpose.msra.mxu0 0.0
        %1442 = vmatprep.subr.mxu0 0.0
        %1443 = vmatpush1.xpose.msra.mxu0 0.0
        %1444 = vmatprep.subr.mxu0 0.0
        %1445 = vmatpush1.xpose.msra.mxu0 0.0
        %1446 = vmatprep.subr.mxu0 0.0
        %1447 = vmatpush1.xpose.msra.mxu0 0.0
        %1448 = vmatprep.subr.mxu0 0.0
        %1449 = vmatpush1.xpose.msra.mxu0 0.0
        %1450 = vmatprep.subr.mxu0 0.0
        %1451 = vmatpush1.xpose.msra.mxu0 0.0
        %1452 = vmatprep.subr.mxu0 0.0
        %1453 = vmatpush1.xpose.msra.mxu0 0.0
        %1454 = vmatprep.subr.mxu0 0.0
        %1455 = vmatpush1.xpose.msra.mxu0 0.0
        %1456 = vmatprep.subr.mxu0 0.0
        %1457 = vmatpush1.xpose.msra.mxu0 0.0
        %1458 = vmatprep.subr.mxu0 0.0
        %1459 = vmatpush1.xpose.msra.mxu0 0.0
        %1460 = vmatprep.subr.mxu0 0.0
        %1461 = vmatpush1.xpose.msra.mxu0 0.0
        %1462 = vmatprep.subr.mxu0 0.0
        %1463 = vmatpush1.xpose.msra.mxu0 0.0
        %1464 = vmatprep.subr.mxu0 0.0
        %1465 = vmatpush1.xpose.msra.mxu0 0.0
        %1466 = vmatprep.subr.mxu0 0.0
        %1467 = vmatpush1.xpose.msra.mxu0 0.0
        %1468 = vmatprep.subr.mxu0 0.0
        %1469 = vmatpush1.xpose.msra.mxu0 0.0
        %1470 = vmatprep.subr.mxu0 0.0
        %1471 = vmatpush1.xpose.msra.mxu0 0.0
        %1472 = vmatprep.subr.mxu0 0.0
        %1473 = vmatpush1.xpose.msra.mxu0 0.0
        %1474 = vmatprep.subr.mxu0 0.0
        %1475 = vmatpush1.xpose.msra.mxu0 0.0
        %1476 = vmatprep.mubr.f32.mxu0 0.0
        %1477 = vmatmul.mubr.f32.gmra.mrb[0].mxu0 %v1408
        %v1478 = vpop.f32.mrb[0].mxu0
        %v1479 = vadd.f32 0.0, %v1478
        %v1480 = vpop.f32.mrb[0].mxu0
        %1481 = vdwg.mxu0
        %1483 = vrot.lane.b32.xlu0 %v1255, 112
        %v1484 = vpop.permute.xlu0 %1483
        %v1485 = vsel %vm910, %v1255, 0
        %v1487 = vsel %vm910, %v1484, 0
        %1489 = vmatprep.subr.mxu0 0.0
        %1490 = vmatpush1.xpose.msra.mxu0 %v1487
        %1491 = vmatprep.subr.mxu0 0.0
        %1492 = vmatpush1.xpose.msra.mxu0 0.0
        %1493 = vmatprep.subr.mxu0 0.0
        %1494 = vmatpush1.xpose.msra.mxu0 0.0
        %1495 = vmatprep.subr.mxu0 0.0
        %1496 = vmatpush1.xpose.msra.mxu0 0.0
        %1497 = vmatprep.subr.mxu0 0.0
        %1498 = vmatpush1.xpose.msra.mxu0 0.0
        %1499 = vmatprep.subr.mxu0 0.0
        %1500 = vmatpush1.xpose.msra.mxu0 0.0
        %1501 = vmatprep.subr.mxu0 0.0
        %1502 = vmatpush1.xpose.msra.mxu0 0.0
        %1503 = vmatprep.subr.mxu0 0.0
        %1504 = vmatpush1.xpose.msra.mxu0 0.0
        %1505 = vmatprep.subr.mxu0 0.0
        %1506 = vmatpush1.xpose.msra.mxu0 0.0
        %1507 = vmatprep.subr.mxu0 0.0
        %1508 = vmatpush1.xpose.msra.mxu0 0.0
        %1509 = vmatprep.subr.mxu0 0.0
        %1510 = vmatpush1.xpose.msra.mxu0 0.0
        %1511 = vmatprep.subr.mxu0 0.0
        %1512 = vmatpush1.xpose.msra.mxu0 0.0
        %1513 = vmatprep.subr.mxu0 0.0
        %1514 = vmatpush1.xpose.msra.mxu0 0.0
        %1515 = vmatprep.subr.mxu0 0.0
        %1516 = vmatpush1.xpose.msra.mxu0 0.0
        %1517 = vmatprep.subr.mxu0 0.0
        %1518 = vmatpush1.xpose.msra.mxu0 0.0
        %1519 = vmatprep.subr.mxu0 0.0
        %1520 = vmatpush1.xpose.msra.mxu0 0.0
        %1521 = vmatprep.subr.mxu0 0.0
        %1522 = vmatpush1.xpose.msra.mxu0 0.0
        %1523 = vmatprep.subr.mxu0 0.0
        %1524 = vmatpush1.xpose.msra.mxu0 0.0
        %1525 = vmatprep.subr.mxu0 0.0
        %1526 = vmatpush1.xpose.msra.mxu0 0.0
        %1527 = vmatprep.subr.mxu0 0.0
        %1528 = vmatpush1.xpose.msra.mxu0 0.0
        %1529 = vmatprep.subr.mxu0 0.0
        %1530 = vmatpush1.xpose.msra.mxu0 0.0
        %1531 = vmatprep.subr.mxu0 0.0
        %1532 = vmatpush1.xpose.msra.mxu0 0.0
        %1533 = vmatprep.subr.mxu0 0.0
        %1534 = vmatpush1.xpose.msra.mxu0 0.0
        %1535 = vmatprep.subr.mxu0 0.0
        %1536 = vmatpush1.xpose.msra.mxu0 0.0
        %1537 = vmatprep.subr.mxu0 0.0
        %1538 = vmatpush1.xpose.msra.mxu0 0.0
        %1539 = vmatprep.subr.mxu0 0.0
        %1540 = vmatpush1.xpose.msra.mxu0 0.0
        %1541 = vmatprep.subr.mxu0 0.0
        %1542 = vmatpush1.xpose.msra.mxu0 0.0
        %1543 = vmatprep.subr.mxu0 0.0
        %1544 = vmatpush1.xpose.msra.mxu0 0.0
        %1545 = vmatprep.subr.mxu0 0.0
        %1546 = vmatpush1.xpose.msra.mxu0 0.0
        %1547 = vmatprep.subr.mxu0 0.0
        %1548 = vmatpush1.xpose.msra.mxu0 0.0
        %1549 = vmatprep.subr.mxu0 0.0
        %1550 = vmatpush1.xpose.msra.mxu0 0.0
        %1551 = vmatprep.subr.mxu0 0.0
        %1552 = vmatpush1.xpose.msra.mxu0 0.0
        %1553 = vmatprep.mubr.f32.mxu0 0.0
        %1554 = vmatmul.mubr.f32.gmra.mrb[0].mxu0 %v1485
        %v1555 = vpop.f32.mrb[0].mxu0
        %v1556 = vadd.f32 0.0, %v1555
        %v1557 = vpop.f32.mrb[0].mxu0
        %1558 = vdwg.mxu0
        %1560 = vrot.lane.b32.xlu0 %v1325, 112
        %v1561 = vpop.permute.xlu0 %1560
        %v1562 = vsel %vm910, %v1325, 0
        %v1564 = vsel %vm910, %v1561, 0
        %1566 = vmatprep.subr.mxu0 0.0
        %1567 = vmatpush1.xpose.msra.mxu0 %v1564
        %1568 = vmatprep.subr.mxu0 0.0
        %1569 = vmatpush1.xpose.msra.mxu0 0.0
        %1570 = vmatprep.subr.mxu0 0.0
        %1571 = vmatpush1.xpose.msra.mxu0 0.0
        %1572 = vmatprep.subr.mxu0 0.0
        %1573 = vmatpush1.xpose.msra.mxu0 0.0
        %1574 = vmatprep.subr.mxu0 0.0
        %1575 = vmatpush1.xpose.msra.mxu0 0.0
        %1576 = vmatprep.subr.mxu0 0.0
        %1577 = vmatpush1.xpose.msra.mxu0 0.0
        %1578 = vmatprep.subr.mxu0 0.0
        %1579 = vmatpush1.xpose.msra.mxu0 0.0
        %1580 = vmatprep.subr.mxu0 0.0
        %1581 = vmatpush1.xpose.msra.mxu0 0.0
        %1582 = vmatprep.subr.mxu0 0.0
        %1583 = vmatpush1.xpose.msra.mxu0 0.0
        %1584 = vmatprep.subr.mxu0 0.0
        %1585 = vmatpush1.xpose.msra.mxu0 0.0
        %1586 = vmatprep.subr.mxu0 0.0
        %1587 = vmatpush1.xpose.msra.mxu0 0.0
        %1588 = vmatprep.subr.mxu0 0.0
        %1589 = vmatpush1.xpose.msra.mxu0 0.0
        %1590 = vmatprep.subr.mxu0 0.0
        %1591 = vmatpush1.xpose.msra.mxu0 0.0
        %1592 = vmatprep.subr.mxu0 0.0
        %1593 = vmatpush1.xpose.msra.mxu0 0.0
        %1594 = vmatprep.subr.mxu0 0.0
        %1595 = vmatpush1.xpose.msra.mxu0 0.0
        %1596 = vmatprep.subr.mxu0 0.0
        %1597 = vmatpush1.xpose.msra.mxu0 0.0
        %1598 = vmatprep.subr.mxu0 0.0
        %1599 = vmatpush1.xpose.msra.mxu0 0.0
        %1600 = vmatprep.subr.mxu0 0.0
        %1601 = vmatpush1.xpose.msra.mxu0 0.0
        %1602 = vmatprep.subr.mxu0 0.0
        %1603 = vmatpush1.xpose.msra.mxu0 0.0
        %1604 = vmatprep.subr.mxu0 0.0
        %1605 = vmatpush1.xpose.msra.mxu0 0.0
        %1606 = vmatprep.subr.mxu0 0.0
        %1607 = vmatpush1.xpose.msra.mxu0 0.0
        %1608 = vmatprep.subr.mxu0 0.0
        %1609 = vmatpush1.xpose.msra.mxu0 0.0
        %1610 = vmatprep.subr.mxu0 0.0
        %1611 = vmatpush1.xpose.msra.mxu0 0.0
        %1612 = vmatprep.subr.mxu0 0.0
        %1613 = vmatpush1.xpose.msra.mxu0 0.0
        %1614 = vmatprep.subr.mxu0 0.0
        %1615 = vmatpush1.xpose.msra.mxu0 0.0
        %1616 = vmatprep.subr.mxu0 0.0
        %1617 = vmatpush1.xpose.msra.mxu0 0.0
        %1618 = vmatprep.subr.mxu0 0.0
        %1619 = vmatpush1.xpose.msra.mxu0 0.0
        %1620 = vmatprep.subr.mxu0 0.0
        %1621 = vmatpush1.xpose.msra.mxu0 0.0
        %1622 = vmatprep.subr.mxu0 0.0
        %1623 = vmatpush1.xpose.msra.mxu0 0.0
        %1624 = vmatprep.subr.mxu0 0.0
        %1625 = vmatpush1.xpose.msra.mxu0 0.0
        %1626 = vmatprep.subr.mxu0 0.0
        %1627 = vmatpush1.xpose.msra.mxu0 0.0
        %1628 = vmatprep.subr.mxu0 0.0
        %1629 = vmatpush1.xpose.msra.mxu0 0.0
        %1630 = vmatprep.mubr.f32.mxu0 0.0
        %1631 = vmatmul.mubr.f32.gmra.mrb[0].mxu0 %v1562
        %v1632 = vpop.f32.mrb[0].mxu0
        %v1633 = vadd.f32 0.0, %v1632
        %v1634 = vpop.f32.mrb[0].mxu0
        %1635 = vdwg.mxu0
        %v1636 = vmul.f32 %v1402, 0.25
        %v1637 = vmul.f32 %v1479, 0.25
        %v1638 = vmul.f32 %v1556, 0.25
        %v1639 = vmul.f32 %v1633, 0.25
        %vm1640 = vcmask 64512
        %v1641 = vsel %vm1640, %v1636, -inf
        %1642 = vmax.xlane.f32.xlu0 %v1641
        %v1643 = vpop.xlane.xlu0 %1642
        %v1644 = vsel %vm1640, %v1637, -inf
        %1645 = vmax.xlane.f32.xlu0 %v1644
        %v1646 = vpop.xlane.xlu0 %1645
        %v1647 = vsel %vm1640, %v1638, -inf
        %1648 = vmax.xlane.f32.xlu0 %v1647
        %v1649 = vpop.xlane.xlu0 %1648
        %v1650 = vsel %vm1640, %v1639, -inf
        %1651 = vmax.xlane.f32.xlu0 %v1650
        %v1652 = vpop.xlane.xlu0 %1651
        %v1653 = vsub.f32 %v1636, %v1643
        %v1654 = vsub.f32 %v1637, %v1646
        %v1655 = vsub.f32 %v1638, %v1649
        %v1656 = vsub.f32 %v1639, %v1652
        %v1657 = vmul.f32 %v1653, 1.442695
        %v1658 = vpow.pop %v1657
        %v1659 = vmul.f32 %v1654, 1.442695
        %v1660 = vpow.pop %v1659
        %v1661 = vmul.f32 %v1655, 1.442695
        %v1662 = vpow.pop %v1661
        %v1663 = vmul.f32 %v1656, 1.442695
        %v1664 = vpow.pop %v1663
        %v1665 = vsel %vm1640, %v1658, 0.0
        %1666 = vadd.xlane.f32.xlu0 %v1665
        %v1667 = vpop.xlane.xlu0 %1666
        %v1668 = vsel %vm1640, %v1660, 0.0
        %1669 = vadd.xlane.f32.xlu0 %v1668
        %v1670 = vpop.xlane.xlu0 %1669
        %v1671 = vsel %vm1640, %v1662, 0.0
        %1672 = vadd.xlane.f32.xlu0 %v1671
        %v1673 = vpop.xlane.xlu0 %1672
        %v1674 = vsel %vm1640, %v1664, 0.0
        %1675 = vadd.xlane.f32.xlu0 %v1674
        %v1676 = vpop.xlane.xlu0 %1675
        %v1677 = vrcp.pop %v1667
        %v1678 = vrcp.pop %v1670
        %v1679 = vrcp.pop %v1673
        %v1680 = vrcp.pop %v1676
        %v1681 = vmul.f32 %v1658, %v1677
        %v1682 = vmul.f32 %v1660, %v1678
        %v1683 = vmul.f32 %v1662, %v1679
        %v1684 = vmul.f32 %v1664, %v1680
        %1685 = vrot.lane.b32.xlu0 %v1115, 96
        %v1686 = vpop.permute.xlu0 %1685
        %v1689 = vsel %vm1640, %v1681, 0
        %1691 = vmatprep.subr.mxu0 0.0
        %1692 = vmatpush1.msra.mxu0 %v1686
        %1693 = vmatprep.subr.mxu0 0.0
        %1694 = vmatpush1.msra.mxu0 0.0
        %1695 = vmatprep.subr.mxu0 0.0
        %1696 = vmatpush1.msra.mxu0 0.0
        %1697 = vmatprep.subr.mxu0 0.0
        %1698 = vmatpush1.msra.mxu0 0.0
        %1699 = vmatprep.subr.mxu0 0.0
        %1700 = vmatpush1.msra.mxu0 0.0
        %1701 = vmatprep.subr.mxu0 0.0
        %1702 = vmatpush1.msra.mxu0 0.0
        %1703 = vmatprep.subr.mxu0 0.0
        %1704 = vmatpush1.msra.mxu0 0.0
        %1705 = vmatprep.subr.mxu0 0.0
        %1706 = vmatpush1.msra.mxu0 0.0
        %1707 = vmatprep.subr.mxu0 0.0
        %1708 = vmatpush1.msra.mxu0 0.0
        %1709 = vmatprep.subr.mxu0 0.0
        %1710 = vmatpush1.msra.mxu0 0.0
        %1711 = vmatprep.subr.mxu0 0.0
        %1712 = vmatpush1.msra.mxu0 0.0
        %1713 = vmatprep.subr.mxu0 0.0
        %1714 = vmatpush1.msra.mxu0 0.0
        %1715 = vmatprep.subr.mxu0 0.0
        %1716 = vmatpush1.msra.mxu0 0.0
        %1717 = vmatprep.subr.mxu0 0.0
        %1718 = vmatpush1.msra.mxu0 0.0
        %1719 = vmatprep.subr.mxu0 0.0
        %1720 = vmatpush1.msra.mxu0 0.0
        %1721 = vmatprep.subr.mxu0 0.0
        %1722 = vmatpush1.msra.mxu0 0.0
        %1723 = vmatprep.subr.mxu0 0.0
        %1724 = vmatpush1.msra.mxu0 0.0
        %1725 = vmatprep.subr.mxu0 0.0
        %1726 = vmatpush1.msra.mxu0 0.0
        %1727 = vmatprep.subr.mxu0 0.0
        %1728 = vmatpush1.msra.mxu0 0.0
        %1729 = vmatprep.subr.mxu0 0.0
        %1730 = vmatpush1.msra.mxu0 0.0
        %1731 = vmatprep.subr.mxu0 0.0
        %1732 = vmatpush1.msra.mxu0 0.0
        %1733 = vmatprep.subr.mxu0 0.0
        %1734 = vmatpush1.msra.mxu0 0.0
        %1735 = vmatprep.subr.mxu0 0.0
        %1736 = vmatpush1.msra.mxu0 0.0
        %1737 = vmatprep.subr.mxu0 0.0
        %1738 = vmatpush1.msra.mxu0 0.0
        %1739 = vmatprep.subr.mxu0 0.0
        %1740 = vmatpush1.msra.mxu0 0.0
        %1741 = vmatprep.subr.mxu0 0.0
        %1742 = vmatpush1.msra.mxu0 0.0
        %1743 = vmatprep.subr.mxu0 0.0
        %1744 = vmatpush1.msra.mxu0 0.0
        %1745 = vmatprep.subr.mxu0 0.0
        %1746 = vmatpush1.msra.mxu0 0.0
        %1747 = vmatprep.subr.mxu0 0.0
        %1748 = vmatpush1.msra.mxu0 0.0
        %1749 = vmatprep.subr.mxu0 0.0
        %1750 = vmatpush1.msra.mxu0 0.0
        %1751 = vmatprep.subr.mxu0 0.0
        %1752 = vmatpush1.msra.mxu0 0.0
        %1753 = vmatprep.subr.mxu0 0.0
        %1754 = vmatpush1.msra.mxu0 0.0
        %1755 = vmatprep.mubr.f32.mxu0 0.0
        %1756 = vmatmul.mubr.f32.gmra.mrb[0].mxu0 %v1689
        %v1757 = vpop.f32.mrb[0].mxu0
        %v1758 = vadd.f32 0.0, %v1757
        %v1759 = vpop.f32.mrb[0].mxu0
        %1760 = vdwg.mxu0
        %1761 = vrot.lane.b32.xlu0 %v1185, 96
        %v1762 = vpop.permute.xlu0 %1761
        %v1765 = vsel %vm1640, %v1682, 0
        %1767 = vmatprep.subr.mxu0 0.0
        %1768 = vmatpush1.msra.mxu0 %v1762
        %1769 = vmatprep.subr.mxu0 0.0
        %1770 = vmatpush1.msra.mxu0 0.0
        %1771 = vmatprep.subr.mxu0 0.0
        %1772 = vmatpush1.msra.mxu0 0.0
        %1773 = vmatprep.subr.mxu0 0.0
        %1774 = vmatpush1.msra.mxu0 0.0
        %1775 = vmatprep.subr.mxu0 0.0
        %1776 = vmatpush1.msra.mxu0 0.0
        %1777 = vmatprep.subr.mxu0 0.0
        %1778 = vmatpush1.msra.mxu0 0.0
        %1779 = vmatprep.subr.mxu0 0.0
        %1780 = vmatpush1.msra.mxu0 0.0
        %1781 = vmatprep.subr.mxu0 0.0
        %1782 = vmatpush1.msra.mxu0 0.0
        %1783 = vmatprep.subr.mxu0 0.0
        %1784 = vmatpush1.msra.mxu0 0.0
        %1785 = vmatprep.subr.mxu0 0.0
        %1786 = vmatpush1.msra.mxu0 0.0
        %1787 = vmatprep.subr.mxu0 0.0
        %1788 = vmatpush1.msra.mxu0 0.0
        %1789 = vmatprep.subr.mxu0 0.0
        %1790 = vmatpush1.msra.mxu0 0.0
        %1791 = vmatprep.subr.mxu0 0.0
        %1792 = vmatpush1.msra.mxu0 0.0
        %1793 = vmatprep.subr.mxu0 0.0
        %1794 = vmatpush1.msra.mxu0 0.0
        %1795 = vmatprep.subr.mxu0 0.0
        %1796 = vmatpush1.msra.mxu0 0.0
        %1797 = vmatprep.subr.mxu0 0.0
        %1798 = vmatpush1.msra.mxu0 0.0
        %1799 = vmatprep.subr.mxu0 0.0
        %1800 = vmatpush1.msra.mxu0 0.0
        %1801 = vmatprep.subr.mxu0 0.0
        %1802 = vmatpush1.msra.mxu0 0.0
        %1803 = vmatprep.subr.mxu0 0.0
        %1804 = vmatpush1.msra.mxu0 0.0
        %1805 = vmatprep.subr.mxu0 0.0
        %1806 = vmatpush1.msra.mxu0 0.0
        %1807 = vmatprep.subr.mxu0 0.0
        %1808 = vmatpush1.msra.mxu0 0.0
        %1809 = vmatprep.subr.mxu0 0.0
        %1810 = vmatpush1.msra.mxu0 0.0
        %1811 = vmatprep.subr.mxu0 0.0
        %1812 = vmatpush1.msra.mxu0 0.0
        %1813 = vmatprep.subr.mxu0 0.0
        %1814 = vmatpush1.msra.mxu0 0.0
        %1815 = vmatprep.subr.mxu0 0.0
        %1816 = vmatpush1.msra.mxu0 0.0
        %1817 = vmatprep.subr.mxu0 0.0
        %1818 = vmatpush1.msra.mxu0 0.0
        %1819 = vmatprep.subr.mxu0 0.0
        %1820 = vmatpush1.msra.mxu0 0.0
        %1821 = vmatprep.subr.mxu0 0.0
        %1822 = vmatpush1.msra.mxu0 0.0
        %1823 = vmatprep.subr.mxu0 0.0
        %1824 = vmatpush1.msra.mxu0 0.0
        %1825 = vmatprep.subr.mxu0 0.0
        %1826 = vmatpush1.msra.mxu0 0.0
        %1827 = vmatprep.subr.mxu0 0.0
        %1828 = vmatpush1.msra.mxu0 0.0
        %1829 = vmatprep.subr.mxu0 0.0
        %1830 = vmatpush1.msra.mxu0 0.0
        %1831 = vmatprep.mubr.f32.mxu0 0.0
        %1832 = vmatmul.mubr.f32.gmra.mrb[0].mxu0 %v1765
        %v1833 = vpop.f32.mrb[0].mxu0
        %v1834 = vadd.f32 0.0, %v1833
        %v1835 = vpop.f32.mrb[0].mxu0
        %1836 = vdwg.mxu0
        %1837 = vrot.lane.b32.xlu0 %v1255, 96
        %v1838 = vpop.permute.xlu0 %1837
        %v1841 = vsel %vm1640, %v1683, 0
        %1843 = vmatprep.subr.mxu0 0.0
        %1844 = vmatpush1.msra.mxu0 %v1838
        %1845 = vmatprep.subr.mxu0 0.0
        %1846 = vmatpush1.msra.mxu0 0.0
        %1847 = vmatprep.subr.mxu0 0.0
        %1848 = vmatpush1.msra.mxu0 0.0
        %1849 = vmatprep.subr.mxu0 0.0
        %1850 = vmatpush1.msra.mxu0 0.0
        %1851 = vmatprep.subr.mxu0 0.0
        %1852 = vmatpush1.msra.mxu0 0.0
        %1853 = vmatprep.subr.mxu0 0.0
        %1854 = vmatpush1.msra.mxu0 0.0
        %1855 = vmatprep.subr.mxu0 0.0
        %1856 = vmatpush1.msra.mxu0 0.0
        %1857 = vmatprep.subr.mxu0 0.0
        %1858 = vmatpush1.msra.mxu0 0.0
        %1859 = vmatprep.subr.mxu0 0.0
        %1860 = vmatpush1.msra.mxu0 0.0
        %1861 = vmatprep.subr.mxu0 0.0
        %1862 = vmatpush1.msra.mxu0 0.0
        %1863 = vmatprep.subr.mxu0 0.0
        %1864 = vmatpush1.msra.mxu0 0.0
        %1865 = vmatprep.subr.mxu0 0.0
        %1866 = vmatpush1.msra.mxu0 0.0
        %1867 = vmatprep.subr.mxu0 0.0
        %1868 = vmatpush1.msra.mxu0 0.0
        %1869 = vmatprep.subr.mxu0 0.0
        %1870 = vmatpush1.msra.mxu0 0.0
        %1871 = vmatprep.subr.mxu0 0.0
        %1872 = vmatpush1.msra.mxu0 0.0
        %1873 = vmatprep.subr.mxu0 0.0
        %1874 = vmatpush1.msra.mxu0 0.0
        %1875 = vmatprep.subr.mxu0 0.0
        %1876 = vmatpush1.msra.mxu0 0.0
        %1877 = vmatprep.subr.mxu0 0.0
        %1878 = vmatpush1.msra.mxu0 0.0
        %1879 = vmatprep.subr.mxu0 0.0
        %1880 = vmatpush1.msra.mxu0 0.0
        %1881 = vmatprep.subr.mxu0 0.0
        %1882 = vmatpush1.msra.mxu0 0.0
        %1883 = vmatprep.subr.mxu0 0.0
        %1884 = vmatpush1.msra.mxu0 0.0
        %1885 = vmatprep.subr.mxu0 0.0
        %1886 = vmatpush1.msra.mxu0 0.0
        %1887 = vmatprep.subr.mxu0 0.0
        %1888 = vmatpush1.msra.mxu0 0.0
        %1889 = vmatprep.subr.mxu0 0.0
        %1890 = vmatpush1.msra.mxu0 0.0
        %1891 = vmatprep.subr.mxu0 0.0
        %1892 = vmatpush1.msra.mxu0 0.0
        %1893 = vmatprep.subr.mxu0 0.0
        %1894 = vmatpush1.msra.mxu0 0.0
        %1895 = vmatprep.subr.mxu0 0.0
        %1896 = vmatpush1.msra.mxu0 0.0
        %1897 = vmatprep.subr.mxu0 0.0
        %1898 = vmatpush1.msra.mxu0 0.0
        %1899 = vmatprep.subr.mxu0 0.0
        %1900 = vmatpush1.msra.mxu0 0.0
        %1901 = vmatprep.subr.mxu0 0.0
        %1902 = vmatpush1.msra.mxu0 0.0
        %1903 = vmatprep.subr.mxu0 0.0
        %1904 = vmatpush1.msra.mxu0 0.0
        %1905 = vmatprep.subr.mxu0 0.0
        %1906 = vmatpush1.msra.mxu0 0.0
        %1907 = vmatprep.mubr.f32.mxu0 0.0
        %1908 = vmatmul.mubr.f32.gmra.mrb[0].mxu0 %v1841
        %v1909 = vpop.f32.mrb[0].mxu0
        %v1910 = vadd.f32 0.0, %v1909
        %v1911 = vpop.f32.mrb[0].mxu0
        %1912 = vdwg.mxu0
        %1913 = vrot.lane.b32.xlu0 %v1325, 96
        %v1914 = vpop.permute.xlu0 %1913
        %v1917 = vsel %vm1640, %v1684, 0
        %1919 = vmatprep.subr.mxu0 0.0
        %1920 = vmatpush1.msra.mxu0 %v1914
        %1921 = vmatprep.subr.mxu0 0.0
        %1922 = vmatpush1.msra.mxu0 0.0
        %1923 = vmatprep.subr.mxu0 0.0
        %1924 = vmatpush1.msra.mxu0 0.0
        %1925 = vmatprep.subr.mxu0 0.0
        %1926 = vmatpush1.msra.mxu0 0.0
        %1927 = vmatprep.subr.mxu0 0.0
        %1928 = vmatpush1.msra.mxu0 0.0
        %1929 = vmatprep.subr.mxu0 0.0
        %1930 = vmatpush1.msra.mxu0 0.0
        %1931 = vmatprep.subr.mxu0 0.0
        %1932 = vmatpush1.msra.mxu0 0.0
        %1933 = vmatprep.subr.mxu0 0.0
        %1934 = vmatpush1.msra.mxu0 0.0
        %1935 = vmatprep.subr.mxu0 0.0
        %1936 = vmatpush1.msra.mxu0 0.0
        %1937 = vmatprep.subr.mxu0 0.0
        %1938 = vmatpush1.msra.mxu0 0.0
        %1939 = vmatprep.subr.mxu0 0.0
        %1940 = vmatpush1.msra.mxu0 0.0
        %1941 = vmatprep.subr.mxu0 0.0
        %1942 = vmatpush1.msra.mxu0 0.0
        %1943 = vmatprep.subr.mxu0 0.0
        %1944 = vmatpush1.msra.mxu0 0.0
        %1945 = vmatprep.subr.mxu0 0.0
        %1946 = vmatpush1.msra.mxu0 0.0
        %1947 = vmatprep.subr.mxu0 0.0
        %1948 = vmatpush1.msra.mxu0 0.0
        %1949 = vmatprep.subr.mxu0 0.0
        %1950 = vmatpush1.msra.mxu0 0.0
        %1951 = vmatprep.subr.mxu0 0.0
        %1952 = vmatpush1.msra.mxu0 0.0
        %1953 = vmatprep.subr.mxu0 0.0
        %1954 = vmatpush1.msra.mxu0 0.0
        %1955 = vmatprep.subr.mxu0 0.0
        %1956 = vmatpush1.msra.mxu0 0.0
        %1957 = vmatprep.subr.mxu0 0.0
        %1958 = vmatpush1.msra.mxu0 0.0
        %1959 = vmatprep.subr.mxu0 0.0
        %1960 = vmatpush1.msra.mxu0 0.0
        %1961 = vmatprep.subr.mxu0 0.0
        %1962 = vmatpush1.msra.mxu0 0.0
        %1963 = vmatprep.subr.mxu0 0.0
        %1964 = vmatpush1.msra.mxu0 0.0
        %1965 = vmatprep.subr.mxu0 0.0
        %1966 = vmatpush1.msra.mxu0 0.0
        %1967 = vmatprep.subr.mxu0 0.0
        %1968 = vmatpush1.msra.mxu0 0.0
        %1969 = vmatprep.subr.mxu0 0.0
        %1970 = vmatpush1.msra.mxu0 0.0
        %1971 = vmatprep.subr.mxu0 0.0
        %1972 = vmatpush1.msra.mxu0 0.0
        %1973 = vmatprep.subr.mxu0 0.0
        %1974 = vmatpush1.msra.mxu0 0.0
        %1975 = vmatprep.subr.mxu0 0.0
        %1976 = vmatpush1.msra.mxu0 0.0
        %1977 = vmatprep.subr.mxu0 0.0
        %1978 = vmatpush1.msra.mxu0 0.0
        %1979 = vmatprep.subr.mxu0 0.0
        %1980 = vmatpush1.msra.mxu0 0.0
        %1981 = vmatprep.subr.mxu0 0.0
        %1982 = vmatpush1.msra.mxu0 0.0
        %1983 = vmatprep.mubr.f32.mxu0 0.0
        %1984 = vmatmul.mubr.f32.gmra.mrb[0].mxu0 %v1917
        %v1985 = vpop.f32.mrb[0].mxu0
        %v1986 = vadd.f32 0.0, %v1985
        %v1987 = vpop.f32.mrb[0].mxu0
        %1988 = vdwg.mxu0
        %v1989 = vld [vmem:[%s11] sm:$0xff]
        %v1990 = vld [vmem:[%s11 + $0x8] sm:$0xff]
        %v1991 = vld [vmem:[%s11 + $0x10] sm:$0xff]
        %v1992 = vld [vmem:[%s11 + $0x18] sm:$0xff]
        %v1993 = vld [vmem:[%s11 + $0x20] sm:$0xff]
        %v1994 = vld [vmem:[%s11 + $0x28] sm:$0xff]
        %v1995 = vld [vmem:[%s11 + $0x30] sm:$0xff]
        %v1996 = vld [vmem:[%s11 + $0x38] sm:$0xff]
        %v1998 = vsel %vm910, %v1758, 0
        %2000 = vmatprep.subr.mxu0 0.0
        %2001 = vmatpush1.msra.mxu0 %v1989
        %2002 = vmatprep.subr.mxu0 0.0
        %2003 = vmatpush1.msra.mxu0 %v1990
        %2004 = vmatprep.subr.mxu0 0.0
        %2005 = vmatpush1.msra.mxu0 0.0
        %2006 = vmatprep.subr.mxu0 0.0
        %2007 = vmatpush1.msra.mxu0 0.0
        %2008 = vmatprep.subr.mxu0 0.0
        %2009 = vmatpush1.msra.mxu0 0.0
        %2010 = vmatprep.subr.mxu0 0.0
        %2011 = vmatpush1.msra.mxu0 0.0
        %2012 = vmatprep.subr.mxu0 0.0
        %2013 = vmatpush1.msra.mxu0 0.0
        %2014 = vmatprep.subr.mxu0 0.0
        %2015 = vmatpush1.msra.mxu0 0.0
        %2016 = vmatprep.subr.mxu0 0.0
        %2017 = vmatpush1.msra.mxu0 0.0
        %2018 = vmatprep.subr.mxu0 0.0
        %2019 = vmatpush1.msra.mxu0 0.0
        %2020 = vmatprep.subr.mxu0 0.0
        %2021 = vmatpush1.msra.mxu0 0.0
        %2022 = vmatprep.subr.mxu0 0.0
        %2023 = vmatpush1.msra.mxu0 0.0
        %2024 = vmatprep.subr.mxu0 0.0
        %2025 = vmatpush1.msra.mxu0 0.0
        %2026 = vmatprep.subr.mxu0 0.0
        %2027 = vmatpush1.msra.mxu0 0.0
        %2028 = vmatprep.subr.mxu0 0.0
        %2029 = vmatpush1.msra.mxu0 0.0
        %2030 = vmatprep.subr.mxu0 0.0
        %2031 = vmatpush1.msra.mxu0 0.0
        %2032 = vmatprep.subr.mxu0 0.0
        %2033 = vmatpush1.msra.mxu0 0.0
        %2034 = vmatprep.subr.mxu0 0.0
        %2035 = vmatpush1.msra.mxu0 0.0
        %2036 = vmatprep.subr.mxu0 0.0
        %2037 = vmatpush1.msra.mxu0 0.0
        %2038 = vmatprep.subr.mxu0 0.0
        %2039 = vmatpush1.msra.mxu0 0.0
        %2040 = vmatprep.subr.mxu0 0.0
        %2041 = vmatpush1.msra.mxu0 0.0
        %2042 = vmatprep.subr.mxu0 0.0
        %2043 = vmatpush1.msra.mxu0 0.0
        %2044 = vmatprep.subr.mxu0 0.0
        %2045 = vmatpush1.msra.mxu0 0.0
        %2046 = vmatprep.subr.mxu0 0.0
        %2047 = vmatpush1.msra.mxu0 0.0
        %2048 = vmatprep.subr.mxu0 0.0
        %2049 = vmatpush1.msra.mxu0 0.0
        %2050 = vmatprep.subr.mxu0 0.0
        %2051 = vmatpush1.msra.mxu0 0.0
        %2052 = vmatprep.subr.mxu0 0.0
        %2053 = vmatpush1.msra.mxu0 0.0
        %2054 = vmatprep.subr.mxu0 0.0
        %2055 = vmatpush1.msra.mxu0 0.0
        %2056 = vmatprep.subr.mxu0 0.0
        %2057 = vmatpush1.msra.mxu0 0.0
        %2058 = vmatprep.subr.mxu0 0.0
        %2059 = vmatpush1.msra.mxu0 0.0
        %2060 = vmatprep.subr.mxu0 0.0
        %2061 = vmatpush1.msra.mxu0 0.0
        %2062 = vmatprep.subr.mxu0 0.0
        %2063 = vmatpush1.msra.mxu0 0.0
        %2064 = vmatprep.mubr.f32.mxu0 0.0
        %2065 = vmatmul.mubr.f32.gmra.mrb[0].mxu0 %v1998
        %v2066 = vpop.f32.mrb[0].mxu0
        %v2067 = vadd.f32 0.0, %v2066
        %v2068 = vpop.f32.mrb[0].mxu0
        %2069 = vdwg.mxu0
        %v2071 = vsel %vm910, %v1834, 0
        %2073 = vmatprep.subr.mxu0 0.0
        %2074 = vmatpush1.msra.mxu0 %v1991
        %2075 = vmatprep.subr.mxu0 0.0
        %2076 = vmatpush1.msra.mxu0 %v1992
        %2077 = vmatprep.subr.mxu0 0.0
        %2078 = vmatpush1.msra.mxu0 0.0
        %2079 = vmatprep.subr.mxu0 0.0
        %2080 = vmatpush1.msra.mxu0 0.0
        %2081 = vmatprep.subr.mxu0 0.0
        %2082 = vmatpush1.msra.mxu0 0.0
        %2083 = vmatprep.subr.mxu0 0.0
        %2084 = vmatpush1.msra.mxu0 0.0
        %2085 = vmatprep.subr.mxu0 0.0
        %2086 = vmatpush1.msra.mxu0 0.0
        %2087 = vmatprep.subr.mxu0 0.0
        %2088 = vmatpush1.msra.mxu0 0.0
        %2089 = vmatprep.subr.mxu0 0.0
        %2090 = vmatpush1.msra.mxu0 0.0
        %2091 = vmatprep.subr.mxu0 0.0
        %2092 = vmatpush1.msra.mxu0 0.0
        %2093 = vmatprep.subr.mxu0 0.0
        %2094 = vmatpush1.msra.mxu0 0.0
        %2095 = vmatprep.subr.mxu0 0.0
        %2096 = vmatpush1.msra.mxu0 0.0
        %2097 = vmatprep.subr.mxu0 0.0
        %2098 = vmatpush1.msra.mxu0 0.0
        %2099 = vmatprep.subr.mxu0 0.0
        %2100 = vmatpush1.msra.mxu0 0.0
        %2101 = vmatprep.subr.mxu0 0.0
        %2102 = vmatpush1.msra.mxu0 0.0
        %2103 = vmatprep.subr.mxu0 0.0
        %2104 = vmatpush1.msra.mxu0 0.0
        %2105 = vmatprep.subr.mxu0 0.0
        %2106 = vmatpush1.msra.mxu0 0.0
        %2107 = vmatprep.subr.mxu0 0.0
        %2108 = vmatpush1.msra.mxu0 0.0
        %2109 = vmatprep.subr.mxu0 0.0
        %2110 = vmatpush1.msra.mxu0 0.0
        %2111 = vmatprep.subr.mxu0 0.0
        %2112 = vmatpush1.msra.mxu0 0.0
        %2113 = vmatprep.subr.mxu0 0.0
        %2114 = vmatpush1.msra.mxu0 0.0
        %2115 = vmatprep.subr.mxu0 0.0
        %2116 = vmatpush1.msra.mxu0 0.0
        %2117 = vmatprep.subr.mxu0 0.0
        %2118 = vmatpush1.msra.mxu0 0.0
        %2119 = vmatprep.subr.mxu0 0.0
        %2120 = vmatpush1.msra.mxu0 0.0
        %2121 = vmatprep.subr.mxu0 0.0
        %2122 = vmatpush1.msra.mxu0 0.0
        %2123 = vmatprep.subr.mxu0 0.0
        %2124 = vmatpush1.msra.mxu0 0.0
        %2125 = vmatprep.subr.mxu0 0.0
        %2126 = vmatpush1.msra.mxu0 0.0
        %2127 = vmatprep.subr.mxu0 0.0
        %2128 = vmatpush1.msra.mxu0 0.0
        %2129 = vmatprep.subr.mxu0 0.0
        %2130 = vmatpush1.msra.mxu0 0.0
        %2131 = vmatprep.subr.mxu0 0.0
        %2132 = vmatpush1.msra.mxu0 0.0
        %2133 = vmatprep.subr.mxu0 0.0
        %2134 = vmatpush1.msra.mxu0 0.0
        %2135 = vmatprep.subr.mxu0 0.0
        %2136 = vmatpush1.msra.mxu0 0.0
        %2137 = vmatprep.mubr.f32.mxu0 0.0
        %2138 = vmatmul.mubr.f32.gmra.mrb[0].mxu0 %v2071
        %v2139 = vpop.f32.mrb[0].mxu0
        %v2140 = vadd.f32 0.0, %v2139
        %v2141 = vpop.f32.mrb[0].mxu0
        %2142 = vdwg.mxu0
        %v2144 = vsel %vm910, %v1910, 0
        %2146 = vmatprep.subr.mxu0 0.0
        %2147 = vmatpush1.msra.mxu0 %v1993
        %2148 = vmatprep.subr.mxu0 0.0
        %2149 = vmatpush1.msra.mxu0 %v1994
        %2150 = vmatprep.subr.mxu0 0.0
        %2151 = vmatpush1.msra.mxu0 0.0
        %2152 = vmatprep.subr.mxu0 0.0
        %2153 = vmatpush1.msra.mxu0 0.0
        %2154 = vmatprep.subr.mxu0 0.0
        %2155 = vmatpush1.msra.mxu0 0.0
        %2156 = vmatprep.subr.mxu0 0.0
        %2157 = vmatpush1.msra.mxu0 0.0
        %2158 = vmatprep.subr.mxu0 0.0
        %2159 = vmatpush1.msra.mxu0 0.0
        %2160 = vmatprep.subr.mxu0 0.0
        %2161 = vmatpush1.msra.mxu0 0.0
        %2162 = vmatprep.subr.mxu0 0.0
        %2163 = vmatpush1.msra.mxu0 0.0
        %2164 = vmatprep.subr.mxu0 0.0
        %2165 = vmatpush1.msra.mxu0 0.0
        %2166 = vmatprep.subr.mxu0 0.0
        %2167 = vmatpush1.msra.mxu0 0.0
        %2168 = vmatprep.subr.mxu0 0.0
        %2169 = vmatpush1.msra.mxu0 0.0
        %2170 = vmatprep.subr.mxu0 0.0
        %2171 = vmatpush1.msra.mxu0 0.0
        %2172 = vmatprep.subr.mxu0 0.0
        %2173 = vmatpush1.msra.mxu0 0.0
        %2174 = vmatprep.subr.mxu0 0.0
        %2175 = vmatpush1.msra.mxu0 0.0
        %2176 = vmatprep.subr.mxu0 0.0
        %2177 = vmatpush1.msra.mxu0 0.0
        %2178 = vmatprep.subr.mxu0 0.0
        %2179 = vmatpush1.msra.mxu0 0.0
        %2180 = vmatprep.subr.mxu0 0.0
        %2181 = vmatpush1.msra.mxu0 0.0
        %2182 = vmatprep.subr.mxu0 0.0
        %2183 = vmatpush1.msra.mxu0 0.0
        %2184 = vmatprep.subr.mxu0 0.0
        %2185 = vmatpush1.msra.mxu0 0.0
        %2186 = vmatprep.subr.mxu0 0.0
        %2187 = vmatpush1.msra.mxu0 0.0
        %2188 = vmatprep.subr.mxu0 0.0
        %2189 = vmatpush1.msra.mxu0 0.0
        %2190 = vmatprep.subr.mxu0 0.0
        %2191 = vmatpush1.msra.mxu0 0.0
        %2192 = vmatprep.subr.mxu0 0.0
        %2193 = vmatpush1.msra.mxu0 0.0
        %2194 = vmatprep.subr.mxu0 0.0
        %2195 = vmatpush1.msra.mxu0 0.0
        %2196 = vmatprep.subr.mxu0 0.0
        %2197 = vmatpush1.msra.mxu0 0.0
        %2198 = vmatprep.subr.mxu0 0.0
        %2199 = vmatpush1.msra.mxu0 0.0
        %2200 = vmatprep.subr.mxu0 0.0
        %2201 = vmatpush1.msra.mxu0 0.0
        %2202 = vmatprep.subr.mxu0 0.0
        %2203 = vmatpush1.msra.mxu0 0.0
        %2204 = vmatprep.subr.mxu0 0.0
        %2205 = vmatpush1.msra.mxu0 0.0
        %2206 = vmatprep.subr.mxu0 0.0
        %2207 = vmatpush1.msra.mxu0 0.0
        %2208 = vmatprep.subr.mxu0 0.0
        %2209 = vmatpush1.msra.mxu0 0.0
        %2210 = vmatprep.mubr.f32.mxu0 0.0
        %2211 = vmatmul.mubr.f32.gmra.mrb[0].mxu0 %v2144
        %v2212 = vpop.f32.mrb[0].mxu0
        %v2213 = vadd.f32 0.0, %v2212
        %v2214 = vpop.f32.mrb[0].mxu0
        %2215 = vdwg.mxu0
        %v2217 = vsel %vm910, %v1986, 0
        %2219 = vmatprep.subr.mxu0 0.0
        %2220 = vmatpush1.msra.mxu0 %v1995
        %2221 = vmatprep.subr.mxu0 0.0
        %2222 = vmatpush1.msra.mxu0 %v1996
        %2223 = vmatprep.subr.mxu0 0.0
        %2224 = vmatpush1.msra.mxu0 0.0
        %2225 = vmatprep.subr.mxu0 0.0
        %2226 = vmatpush1.msra.mxu0 0.0
        %2227 = vmatprep.subr.mxu0 0.0
        %2228 = vmatpush1.msra.mxu0 0.0
        %2229 = vmatprep.subr.mxu0 0.0
        %2230 = vmatpush1.msra.mxu0 0.0
        %2231 = vmatprep.subr.mxu0 0.0
        %2232 = vmatpush1.msra.mxu0 0.0
        %2233 = vmatprep.subr.mxu0 0.0
        %2234 = vmatpush1.msra.mxu0 0.0
        %2235 = vmatprep.subr.mxu0 0.0
        %2236 = vmatpush1.msra.mxu0 0.0
        %2237 = vmatprep.subr.mxu0 0.0
        %2238 = vmatpush1.msra.mxu0 0.0
        %2239 = vmatprep.subr.mxu0 0.0
        %2240 = vmatpush1.msra.mxu0 0.0
        %2241 = vmatprep.subr.mxu0 0.0
        %2242 = vmatpush1.msra.mxu0 0.0
        %2243 = vmatprep.subr.mxu0 0.0
        %2244 = vmatpush1.msra.mxu0 0.0
        %2245 = vmatprep.subr.mxu0 0.0
        %2246 = vmatpush1.msra.mxu0 0.0
        %2247 = vmatprep.subr.mxu0 0.0
        %2248 = vmatpush1.msra.mxu0 0.0
        %2249 = vmatprep.subr.mxu0 0.0
        %2250 = vmatpush1.msra.mxu0 0.0
        %2251 = vmatprep.subr.mxu0 0.0
        %2252 = vmatpush1.msra.mxu0 0.0
        %2253 = vmatprep.subr.mxu0 0.0
        %2254 = vmatpush1.msra.mxu0 0.0
        %2255 = vmatprep.subr.mxu0 0.0
        %2256 = vmatpush1.msra.mxu0 0.0
        %2257 = vmatprep.subr.mxu0 0.0
        %2258 = vmatpush1.msra.mxu0 0.0
        %2259 = vmatprep.subr.mxu0 0.0
        %2260 = vmatpush1.msra.mxu0 0.0
        %2261 = vmatprep.subr.mxu0 0.0
        %2262 = vmatpush1.msra.mxu0 0.0
        %2263 = vmatprep.subr.mxu0 0.0
        %2264 = vmatpush1.msra.mxu0 0.0
        %2265 = vmatprep.subr.mxu0 0.0
        %2266 = vmatpush1.msra.mxu0 0.0
        %2267 = vmatprep.subr.mxu0 0.0
        %2268 = vmatpush1.msra.mxu0 0.0
        %2269 = vmatprep.subr.mxu0 0.0
        %2270 = vmatpush1.msra.mxu0 0.0
        %2271 = vmatprep.subr.mxu0 0.0
        %2272 = vmatpush1.msra.mxu0 0.0
        %2273 = vmatprep.subr.mxu0 0.0
        %2274 = vmatpush1.msra.mxu0 0.0
        %2275 = vmatprep.subr.mxu0 0.0
        %2276 = vmatpush1.msra.mxu0 0.0
        %2277 = vmatprep.subr.mxu0 0.0
        %2278 = vmatpush1.msra.mxu0 0.0
        %2279 = vmatprep.subr.mxu0 0.0
        %2280 = vmatpush1.msra.mxu0 0.0
        %2281 = vmatprep.subr.mxu0 0.0
        %2282 = vmatpush1.msra.mxu0 0.0
        %2283 = vmatprep.mubr.f32.mxu0 0.0
        %2284 = vmatmul.mubr.f32.gmra.mrb[0].mxu0 %v2217
        %v2285 = vpop.f32.mrb[0].mxu0
        %v2286 = vadd.f32 0.0, %v2285
        %v2287 = vpop.f32.mrb[0].mxu0
        %2288 = vdwg.mxu0
        %v2289 = vsel %vm1044, %v2067, 0.0
        %v2290 = vsel %vm1044, %v2140, 0.0
        %v2291 = vadd.f32 %v2289, %v2290
        %v2292 = vsel %vm1044, %v2213, 0.0
        %v2293 = vadd.f32 %v2291, %v2292
        %v2294 = vsel %vm1044, %v2286, 0.0
        %v2295 = vadd.f32 %v2293, %v2294
        %v2296 = vld [vmem:[%s13] sm:$0x1]
        %v2298 = vlaneseq
        %v2299 = vshrl.u32 %v2298, 7
        %v2300 = vsub.s32 0, %v2299
        %v2301 = vrot.slane %v2296, %v2300
        %v2303 = vadd.f32 %v2295, %v2301
        %v2304 = vadd.f32 %v981, %v2303
        %v2305 = vld [vmem:[%s15] sm:$0x1]
        %v2306 = vld [vmem:[%s17] sm:$0x1]
        %v2307 = vsel %vm1044, %v2304, 0.0
        %2308 = vadd.xlane.f32.xlu0 %v2307
        %v2309 = vpop.xlane.xlu0 %2308
        %v2310 = vrcp.pop 64.0
        %v2311 = vmul.f32 %v2309, %v2310
        %v2312 = vsub.f32 %v2304, %v2311
        %v2313 = vmul.f32 %v2312, %v2312
        %v2314 = vsel %vm1044, %v2313, 0.0
        %2315 = vadd.xlane.f32.xlu0 %v2314
        %v2316 = vpop.xlane.xlu0 %2315
        %v2317 = vmul.f32 %v2316, %v2310
        %v2318 = vadd.f32 %v2317, 1e-05
        %v2319 = vrsqrt.pop %v2318
        %v2320 = vmul.f32 %v2312, %v2319
        %v2322 = vlaneseq
        %v2323 = vshrl.u32 %v2322, 7
        %v2324 = vsub.s32 0, %v2323
        %v2325 = vrot.slane %v2305, %v2324
        %v2327 = vmul.f32 %v2320, %v2325
        %v2329 = vlaneseq
        %v2330 = vshrl.u32 %v2329, 7
        %v2331 = vsub.s32 0, %v2330
        %v2332 = vrot.slane %v2306, %v2331
        %v2334 = vadd.f32 %v2327, %v2332
        %v2335 = vld [vmem:[%s19] sm:$0xff]
        %v2336 = vld [vmem:[%s19 + $0x8] sm:$0xff]
        %v2337 = vld [vmem:[%s19 + $0x10] sm:$0xff]
        %v2338 = vld [vmem:[%s19 + $0x18] sm:$0xff]
        %v2339 = vld [vmem:[%s19 + $0x20] sm:$0xff]
        %v2340 = vld [vmem:[%s19 + $0x28] sm:$0xff]
        %v2341 = vld [vmem:[%s19 + $0x30] sm:$0xff]
        %v2342 = vld [vmem:[%s19 + $0x38] sm:$0xff]
        %v2343 = vld [vmem:[%s21] sm:$0x1]
        %v2345 = vlaneseq
        %v2346 = vshrl.u32 %v2345, 7
        %v2347 = vsub.s32 0, %v2346
        %v2348 = vrot.slane %v2343, %v2347
        %v2351 = vsel %vm1044, %v2334, 0
        %2353 = vmatprep.subr.mxu0 0.0
        %2354 = vmatpush1.msra.mxu0 %v2335
        %2355 = vmatprep.subr.mxu0 0.0
        %2356 = vmatpush1.msra.mxu0 %v2336
        %2357 = vmatprep.subr.mxu0 0.0
        %2358 = vmatpush1.msra.mxu0 %v2337
        %2359 = vmatprep.subr.mxu0 0.0
        %2360 = vmatpush1.msra.mxu0 %v2338
        %2361 = vmatprep.subr.mxu0 0.0
        %2362 = vmatpush1.msra.mxu0 %v2339
        %2363 = vmatprep.subr.mxu0 0.0
        %2364 = vmatpush1.msra.mxu0 %v2340
        %2365 = vmatprep.subr.mxu0 0.0
        %2366 = vmatpush1.msra.mxu0 %v2341
        %2367 = vmatprep.subr.mxu0 0.0
        %2368 = vmatpush1.msra.mxu0 %v2342
        %2369 = vmatprep.subr.mxu0 0.0
        %2370 = vmatpush1.msra.mxu0 0.0
        %2371 = vmatprep.subr.mxu0 0.0
        %2372 = vmatpush1.msra.mxu0 0.0
        %2373 = vmatprep.subr.mxu0 0.0
        %2374 = vmatpush1.msra.mxu0 0.0
        %2375 = vmatprep.subr.mxu0 0.0
        %2376 = vmatpush1.msra.mxu0 0.0
        %2377 = vmatprep.subr.mxu0 0.0
        %2378 = vmatpush1.msra.mxu0 0.0
        %2379 = vmatprep.subr.mxu0 0.0
        %2380 = vmatpush1.msra.mxu0 0.0
        %2381 = vmatprep.subr.mxu0 0.0
        %2382 = vmatpush1.msra.mxu0 0.0
        %2383 = vmatprep.subr.mxu0 0.0
        %2384 = vmatpush1.msra.mxu0 0.0
        %2385 = vmatprep.subr.mxu0 0.0
        %2386 = vmatpush1.msra.mxu0 0.0
        %2387 = vmatprep.subr.mxu0 0.0
        %2388 = vmatpush1.msra.mxu0 0.0
        %2389 = vmatprep.subr.mxu0 0.0
        %2390 = vmatpush1.msra.mxu0 0.0
        %2391 = vmatprep.subr.mxu0 0.0
        %2392 = vmatpush1.msra.mxu0 0.0
        %2393 = vmatprep.subr.mxu0 0.0
        %2394 = vmatpush1.msra.mxu0 0.0
        %2395 = vmatprep.subr.mxu0 0.0
        %2396 = vmatpush1.msra.mxu0 0.0
        %2397 = vmatprep.subr.mxu0 0.0
        %2398 = vmatpush1.msra.mxu0 0.0
        %2399 = vmatprep.subr.mxu0 0.0
        %2400 = vmatpush1.msra.mxu0 0.0
        %2401 = vmatprep.subr.mxu0 0.0
        %2402 = vmatpush1.msra.mxu0 0.0
        %2403 = vmatprep.subr.mxu0 0.0
        %2404 = vmatpush1.msra.mxu0 0.0
        %2405 = vmatprep.subr.mxu0 0.0
        %2406 = vmatpush1.msra.mxu0 0.0
        %2407 = vmatprep.subr.mxu0 0.0
        %2408 = vmatpush1.msra.mxu0 0.0
        %2409 = vmatprep.subr.mxu0 0.0
        %2410 = vmatpush1.msra.mxu0 0.0
        %2411 = vmatprep.subr.mxu0 0.0
        %2412 = vmatpush1.msra.mxu0 0.0
        %2413 = vmatprep.subr.mxu0 0.0
        %2414 = vmatpush1.msra.mxu0 0.0
        %2415 = vmatprep.subr.mxu0 0.0
        %2416 = vmatpush1.msra.mxu0 0.0
        %2417 = vmatprep.mubr.f32.mxu0 0.0
        %2418 = vmatmul.mubr.f32.gmra.mrb[0].mxu0 %v2351
        %v2419 = vpop.f32.mrb[0].mxu0
        %v2420 = vadd.f32 %v2348, %v2419
        %v2421 = vpop.f32.mrb[0].mxu0
        %2422 = vdwg.mxu0
        %v2423 = vmax.f32 %v2420, 0.0
        %v2424 = vld [vmem:[%s23] sm:$0xff]
        %v2425 = vld [vmem:[%s23 + $0x8] sm:$0xff]
        %v2426 = vld [vmem:[%s23 + $0x10] sm:$0xff]
        %v2427 = vld [vmem:[%s23 + $0x18] sm:$0xff]
        %v2428 = vld [vmem:[%s23 + $0x20] sm:$0xff]
        %v2429 = vld [vmem:[%s23 + $0x28] sm:$0xff]
        %v2430 = vld [vmem:[%s23 + $0x30] sm:$0xff]
        %v2431 = vld [vmem:[%s23 + $0x38] sm:$0xff]
        %v2432 = vld [vmem:[%s23 + $0x40] sm:$0xff]
        %v2433 = vld [vmem:[%s23 + $0x48] sm:$0xff]
        %v2434 = vld [vmem:[%s23 + $0x50] sm:$0xff]
        %v2435 = vld [vmem:[%s23 + $0x58] sm:$0xff]
        %v2436 = vld [vmem:[%s23 + $0x60] sm:$0xff]
        %v2437 = vld [vmem:[%s23 + $0x68] sm:$0xff]
        %v2438 = vld [vmem:[%s23 + $0x70] sm:$0xff]
        %v2439 = vld [vmem:[%s23 + $0x78] sm:$0xff]
        %v2440 = vld [vmem:[%s25] sm:$0x1]
        %v2442 = vlaneseq
        %v2443 = vshrl.u32 %v2442, 7
        %v2444 = vsub.s32 0, %v2443
        %v2445 = vrot.slane %v2440, %v2444
        %2447 = vmatprep.subr.mxu0 0.0
        %2448 = vmatpush1.msra.mxu0 %v2424
        %2449 = vmatprep.subr.mxu0 0.0
        %2450 = vmatpush1.msra.mxu0 %v2425
        %2451 = vmatprep.subr.mxu0 0.0
        %2452 = vmatpush1.msra.mxu0 %v2426
        %2453 = vmatprep.subr.mxu0 0.0
        %2454 = vmatpush1.msra.mxu0 %v2427
        %2455 = vmatprep.subr.mxu0 0.0
        %2456 = vmatpush1.msra.mxu0 %v2428
        %2457 = vmatprep.subr.mxu0 0.0
        %2458 = vmatpush1.msra.mxu0 %v2429
        %2459 = vmatprep.subr.mxu0 0.0
        %2460 = vmatpush1.msra.mxu0 %v2430
        %2461 = vmatprep.subr.mxu0 0.0
        %2462 = vmatpush1.msra.mxu0 %v2431
        %2463 = vmatprep.subr.mxu0 0.0
        %2464 = vmatpush1.msra.mxu0 %v2432
        %2465 = vmatprep.subr.mxu0 0.0
        %2466 = vmatpush1.msra.mxu0 %v2433
        %2467 = vmatprep.subr.mxu0 0.0
        %2468 = vmatpush1.msra.mxu0 %v2434
        %2469 = vmatprep.subr.mxu0 0.0
        %2470 = vmatpush1.msra.mxu0 %v2435
        %2471 = vmatprep.subr.mxu0 0.0
        %2472 = vmatpush1.msra.mxu0 %v2436
        %2473 = vmatprep.subr.mxu0 0.0
        %2474 = vmatpush1.msra.mxu0 %v2437
        %2475 = vmatprep.subr.mxu0 0.0
        %2476 = vmatpush1.msra.mxu0 %v2438
        %2477 = vmatprep.subr.mxu0 0.0
        %2478 = vmatpush1.msra.mxu0 %v2439
        %2479 = vmatprep.subr.mxu0 0.0
        %2480 = vmatpush1.msra.mxu0 0.0
        %2481 = vmatprep.subr.mxu0 0.0
        %2482 = vmatpush1.msra.mxu0 0.0
        %2483 = vmatprep.subr.mxu0 0.0
        %2484 = vmatpush1.msra.mxu0 0.0
        %2485 = vmatprep.subr.mxu0 0.0
        %2486 = vmatpush1.msra.mxu0 0.0
        %2487 = vmatprep.subr.mxu0 0.0
        %2488 = vmatpush1.msra.mxu0 0.0
        %2489 = vmatprep.subr.mxu0 0.0
        %2490 = vmatpush1.msra.mxu0 0.0
        %2491 = vmatprep.subr.mxu0 0.0
        %2492 = vmatpush1.msra.mxu0 0.0
        %2493 = vmatprep.subr.mxu0 0.0
        %2494 = vmatpush1.msra.mxu0 0.0
        %2495 = vmatprep.subr.mxu0 0.0
        %2496 = vmatpush1.msra.mxu0 0.0
        %2497 = vmatprep.subr.mxu0 0.0
        %2498 = vmatpush1.msra.mxu0 0.0
        %2499 = vmatprep.subr.mxu0 0.0
        %2500 = vmatpush1.msra.mxu0 0.0
        %2501 = vmatprep.subr.mxu0 0.0
        %2502 = vmatpush1.msra.mxu0 0.0
        %2503 = vmatprep.subr.mxu0 0.0
        %2504 = vmatpush1.msra.mxu0 0.0
        %2505 = vmatprep.subr.mxu0 0.0
        %2506 = vmatpush1.msra.mxu0 0.0
        %2507 = vmatprep.subr.mxu0 0.0
        %2508 = vmatpush1.msra.mxu0 0.0
        %2509 = vmatprep.subr.mxu0 0.0
        %2510 = vmatpush1.msra.mxu0 0.0
        %2511 = vmatprep.mubr.f32.mxu0 0.0
        %2512 = vmatmul.mubr.f32.gmra.mrb[0].mxu0 %v2423
        %v2513 = vpop.f32.mrb[0].mxu0
        %v2514 = vadd.f32 %v2445, %v2513
        %v2515 = vpop.f32.mrb[0].mxu0
        %2516 = vdwg.mxu0
        %v2517 = vadd.f32 %v2334, %v2514
        %v2518 = vld [vmem:[%s27] sm:$0x1]
        %v2519 = vld [vmem:[%s29] sm:$0x1]
        %v2520 = vsel %vm1044, %v2517, 0.0
        %2521 = vadd.xlane.f32.xlu0 %v2520
        %v2522 = vpop.xlane.xlu0 %2521
        %v2523 = vmul.f32 %v2522, %v2310
        %v2524 = vsub.f32 %v2517, %v2523
        %v2525 = vmul.f32 %v2524, %v2524
        %v2526 = vsel %vm1044, %v2525, 0.0
        %2527 = vadd.xlane.f32.xlu0 %v2526
        %v2528 = vpop.xlane.xlu0 %2527
        %v2529 = vmul.f32 %v2528, %v2310
        %v2530 = vadd.f32 %v2529, 1e-05
        %v2531 = vrsqrt.pop %v2530
        %v2532 = vmul.f32 %v2524, %v2531
        %v2534 = vlaneseq
        %v2535 = vshrl.u32 %v2534, 7
        %v2536 = vsub.s32 0, %v2535
        %v2537 = vrot.slane %v2518, %v2536
        %v2539 = vmul.f32 %v2532, %v2537
        %v2541 = vlaneseq
        %v2542 = vshrl.u32 %v2541, 7
        %v2543 = vsub.s32 0, %v2542
        %v2544 = vrot.slane %v2519, %v2543
        %v2546 = vadd.f32 %v2539, %v2544
        %v2547 = vld [vmem:[%s31] sm:$0xff]
        %v2548 = vld [vmem:[%s31 + $0x8] sm:$0xff]
        %v2549 = vld [vmem:[%s31 + $0x10] sm:$0xff]
        %v2550 = vld [vmem:[%s31 + $0x18] sm:$0xff]
        %v2551 = vld [vmem:[%s31 + $0x20] sm:$0xff]
        %v2552 = vld [vmem:[%s31 + $0x28] sm:$0xff]
        %v2553 = vld [vmem:[%s31 + $0x30] sm:$0xff]
        %v2554 = vld [vmem:[%s31 + $0x38] sm:$0xff]
        %v2555 = vld [vmem:[%s31 + $0x40] sm:$0xff]
        %v2556 = vld [vmem:[%s31 + $0x48] sm:$0xff]
        %v2557 = vld [vmem:[%s31 + $0x50] sm:$0xff]
        %v2558 = vld [vmem:[%s31 + $0x58] sm:$0xff]
        %v2559 = vld [vmem:[%s31 + $0x60] sm:$0xff]
        %v2560 = vld [vmem:[%s31 + $0x68] sm:$0xff]
        %v2561 = vld [vmem:[%s31 + $0x70] sm:$0xff]
        %v2562 = vld [vmem:[%s31 + $0x78] sm:$0xff]
        %v2563 = vld [vmem:[%s31 + $0x80] sm:$0xff]
        %v2564 = vld [vmem:[%s31 + $0x88] sm:$0xff]
        %v2565 = vld [vmem:[%s31 + $0x90] sm:$0xff]
        %v2566 = vld [vmem:[%s31 + $0x98] sm:$0xff]
        %v2567 = vld [vmem:[%s31 + $0xa0] sm:$0xff]
        %v2568 = vld [vmem:[%s31 + $0xa8] sm:$0xff]
        %v2569 = vld [vmem:[%s31 + $0xb0] sm:$0xff]
        %v2570 = vld [vmem:[%s31 + $0xb8] sm:$0xff]
        %v2571 = vld [vmem:[%s31 + $0xc0] sm:$0xff]
        %v2572 = vld [vmem:[%s31 + $0xc8] sm:$0xff]
        %v2573 = vld [vmem:[%s31 + $0xd0] sm:$0xff]
        %v2574 = vld [vmem:[%s31 + $0xd8] sm:$0xff]
        %v2575 = vld [vmem:[%s31 + $0xe0] sm:$0xff]
        %v2576 = vld [vmem:[%s31 + $0xe8] sm:$0xff]
        %v2577 = vld [vmem:[%s31 + $0xf0] sm:$0xff]
        %v2578 = vld [vmem:[%s31 + $0xf8] sm:$0xff]
        %v2579 = vld [vmem:[%s33] sm:$0x1]
        %v2580 = vld [vmem:[%s33 + $0x1] sm:$0x1]
        %v2581 = vld [vmem:[%s33 + $0x2] sm:$0x1]
        %v2582 = vld [vmem:[%s33 + $0x3] sm:$0x1]
        %v2587 = vlaneseq
        %v2588 = vshrl.u32 %v2587, 7
        %v2589 = vsub.s32 0, %v2588
        %v2590 = vrot.slane %v2579, %v2589
        %v2591 = vlaneseq
        %v2592 = vshrl.u32 %v2591, 7
        %v2593 = vsub.s32 0, %v2592
        %v2594 = vrot.slane %v2580, %v2593
        %v2595 = vlaneseq
        %v2596 = vshrl.u32 %v2595, 7
        %v2597 = vsub.s32 0, %v2596
        %v2598 = vrot.slane %v2581, %v2597
        %v2599 = vlaneseq
        %v2600 = vshrl.u32 %v2599, 7
        %v2601 = vsub.s32 0, %v2600
        %v2602 = vrot.slane %v2582, %v2601
        %v2608 = vsel %vm1044, %v2546, 0
        %2610 = vmatprep.subr.mxu0 0.0
        %2611 = vmatpush1.msra.mxu0 %v2547
        %2612 = vmatprep.subr.mxu0 0.0
        %2613 = vmatpush1.msra.mxu0 %v2548
        %2614 = vmatprep.subr.mxu0 0.0
        %2615 = vmatpush1.msra.mxu0 %v2549
        %2616 = vmatprep.subr.mxu0 0.0
        %2617 = vmatpush1.msra.mxu0 %v2550
        %2618 = vmatprep.subr.mxu0 0.0
        %2619 = vmatpush1.msra.mxu0 %v2551
        %2620 = vmatprep.subr.mxu0 0.0
        %2621 = vmatpush1.msra.mxu0 %v2552
        %2622 = vmatprep.subr.mxu0 0.0
        %2623 = vmatpush1.msra.mxu0 %v2553
        %2624 = vmatprep.subr.mxu0 0.0
        %2625 = vmatpush1.msra.mxu0 %v2554
        %2626 = vmatprep.subr.mxu0 0.0
        %2627 = vmatpush1.msra.mxu0 0.0
        %2628 = vmatprep.subr.mxu0 0.0
        %2629 = vmatpush1.msra.mxu0 0.0
        %2630 = vmatprep.subr.mxu0 0.0
        %2631 = vmatpush1.msra.mxu0 0.0
        %2632 = vmatprep.subr.mxu0 0.0
        %2633 = vmatpush1.msra.mxu0 0.0
        %2634 = vmatprep.subr.mxu0 0.0
        %2635 = vmatpush1.msra.mxu0 0.0
        %2636 = vmatprep.subr.mxu0 0.0
        %2637 = vmatpush1.msra.mxu0 0.0
        %2638 = vmatprep.subr.mxu0 0.0
        %2639 = vmatpush1.msra.mxu0 0.0
        %2640 = vmatprep.subr.mxu0 0.0
        %2641 = vmatpush1.msra.mxu0 0.0
        %2642 = vmatprep.subr.mxu0 0.0
        %2643 = vmatpush1.msra.mxu0 0.0
        %2644 = vmatprep.subr.mxu0 0.0
        %2645 = vmatpush1.msra.mxu0 0.0
        %2646 = vmatprep.subr.mxu0 0.0
        %2647 = vmatpush1.msra.mxu0 0.0
        %2648 = vmatprep.subr.mxu0 0.0
        %2649 = vmatpush1.msra.mxu0 0.0
        %2650 = vmatprep.subr.mxu0 0.0
        %2651 = vmatpush1.msra.mxu0 0.0
        %2652 = vmatprep.subr.mxu0 0.0
        %2653 = vmatpush1.msra.mxu0 0.0
        %2654 = vmatprep.subr.mxu0 0.0
        %2655 = vmatpush1.msra.mxu0 0.0
        %2656 = vmatprep.subr.mxu0 0.0
        %2657 = vmatpush1.msra.mxu0 0.0
        %2658 = vmatprep.subr.mxu0 0.0
        %2659 = vmatpush1.msra.mxu0 0.0
        %2660 = vmatprep.subr.mxu0 0.0
        %2661 = vmatpush1.msra.mxu0 0.0
        %2662 = vmatprep.subr.mxu0 0.0
        %2663 = vmatpush1.msra.mxu0 0.0
        %2664 = vmatprep.subr.mxu0 0.0
        %2665 = vmatpush1.msra.mxu0 0.0
        %2666 = vmatprep.subr.mxu0 0.0
        %2667 = vmatpush1.msra.mxu0 0.0
        %2668 = vmatprep.subr.mxu0 0.0
        %2669 = vmatpush1.msra.mxu0 0.0
        %2670 = vmatprep.subr.mxu0 0.0
        %2671 = vmatpush1.msra.mxu0 0.0
        %2672 = vmatprep.subr.mxu0 0.0
        %2673 = vmatpush1.msra.mxu0 0.0
        %2674 = vmatprep.mubr.f32.mxu0 0.0
        %2675 = vmatmul.mubr.f32.gmra.mrb[0].mxu0 %v2608
        %v2676 = vpop.f32.mrb[0].mxu0
        %v2677 = vadd.f32 %v2590, %v2676
        %v2678 = vpop.f32.mrb[0].mxu0
        %2679 = vdwg.mxu0
        %2680 = vmatprep.subr.mxu0 0.0
        %2681 = vmatpush1.msra.mxu0 %v2555
        %2682 = vmatprep.subr.mxu0 0.0
        %2683 = vmatpush1.msra.mxu0 %v2556
        %2684 = vmatprep.subr.mxu0 0.0
        %2685 = vmatpush1.msra.mxu0 %v2557
        %2686 = vmatprep.subr.mxu0 0.0
        %2687 = vmatpush1.msra.mxu0 %v2558
        %2688 = vmatprep.subr.mxu0 0.0
        %2689 = vmatpush1.msra.mxu0 %v2559
        %2690 = vmatprep.subr.mxu0 0.0
        %2691 = vmatpush1.msra.mxu0 %v2560
        %2692 = vmatprep.subr.mxu0 0.0
        %2693 = vmatpush1.msra.mxu0 %v2561
        %2694 = vmatprep.subr.mxu0 0.0
        %2695 = vmatpush1.msra.mxu0 %v2562
        %2696 = vmatprep.subr.mxu0 0.0
        %2697 = vmatpush1.msra.mxu0 0.0
        %2698 = vmatprep.subr.mxu0 0.0
        %2699 = vmatpush1.msra.mxu0 0.0
        %2700 = vmatprep.subr.mxu0 0.0
        %2701 = vmatpush1.msra.mxu0 0.0
        %2702 = vmatprep.subr.mxu0 0.0
        %2703 = vmatpush1.msra.mxu0 0.0
        %2704 = vmatprep.subr.mxu0 0.0
        %2705 = vmatpush1.msra.mxu0 0.0
        %2706 = vmatprep.subr.mxu0 0.0
        %2707 = vmatpush1.msra.mxu0 0.0
        %2708 = vmatprep.subr.mxu0 0.0
        %2709 = vmatpush1.msra.mxu0 0.0
        %2710 = vmatprep.subr.mxu0 0.0
        %2711 = vmatpush1.msra.mxu0 0.0
        %2712 = vmatprep.subr.mxu0 0.0
        %2713 = vmatpush1.msra.mxu0 0.0
        %2714 = vmatprep.subr.mxu0 0.0
        %2715 = vmatpush1.msra.mxu0 0.0
        %2716 = vmatprep.subr.mxu0 0.0
        %2717 = vmatpush1.msra.mxu0 0.0
        %2718 = vmatprep.subr.mxu0 0.0
        %2719 = vmatpush1.msra.mxu0 0.0
        %2720 = vmatprep.subr.mxu0 0.0
        %2721 = vmatpush1.msra.mxu0 0.0
        %2722 = vmatprep.subr.mxu0 0.0
        %2723 = vmatpush1.msra.mxu0 0.0
        %2724 = vmatprep.subr.mxu0 0.0
        %2725 = vmatpush1.msra.mxu0 0.0
        %2726 = vmatprep.subr.mxu0 0.0
        %2727 = vmatpush1.msra.mxu0 0.0
        %2728 = vmatprep.subr.mxu0 0.0
        %2729 = vmatpush1.msra.mxu0 0.0
        %2730 = vmatprep.subr.mxu0 0.0
        %2731 = vmatpush1.msra.mxu0 0.0
        %2732 = vmatprep.subr.mxu0 0.0
        %2733 = vmatpush1.msra.mxu0 0.0
        %2734 = vmatprep.subr.mxu0 0.0
        %2735 = vmatpush1.msra.mxu0 0.0
        %2736 = vmatprep.subr.mxu0 0.0
        %2737 = vmatpush1.msra.mxu0 0.0
        %2738 = vmatprep.subr.mxu0 0.0
        %2739 = vmatpush1.msra.mxu0 0.0
        %2740 = vmatprep.subr.mxu0 0.0
        %2741 = vmatpush1.msra.mxu0 0.0
        %2742 = vmatprep.subr.mxu0 0.0
        %2743 = vmatpush1.msra.mxu0 0.0
        %2744 = vmatprep.mubr.f32.mxu0 0.0
        %2745 = vmatmul.mubr.f32.gmra.mrb[0].mxu0 %v2608
        %v2746 = vpop.f32.mrb[0].mxu0
        %v2747 = vadd.f32 %v2594, %v2746
        %v2748 = vpop.f32.mrb[0].mxu0
        %2749 = vdwg.mxu0
        %2750 = vmatprep.subr.mxu0 0.0
        %2751 = vmatpush1.msra.mxu0 %v2563
        %2752 = vmatprep.subr.mxu0 0.0
        %2753 = vmatpush1.msra.mxu0 %v2564
        %2754 = vmatprep.subr.mxu0 0.0
        %2755 = vmatpush1.msra.mxu0 %v2565
        %2756 = vmatprep.subr.mxu0 0.0
        %2757 = vmatpush1.msra.mxu0 %v2566
        %2758 = vmatprep.subr.mxu0 0.0
        %2759 = vmatpush1.msra.mxu0 %v2567
        %2760 = vmatprep.subr.mxu0 0.0
        %2761 = vmatpush1.msra.mxu0 %v2568
        %2762 = vmatprep.subr.mxu0 0.0
        %2763 = vmatpush1.msra.mxu0 %v2569
        %2764 = vmatprep.subr.mxu0 0.0
        %2765 = vmatpush1.msra.mxu0 %v2570
        %2766 = vmatprep.subr.mxu0 0.0
        %2767 = vmatpush1.msra.mxu0 0.0
        %2768 = vmatprep.subr.mxu0 0.0
        %2769 = vmatpush1.msra.mxu0 0.0
        %2770 = vmatprep.subr.mxu0 0.0
        %2771 = vmatpush1.msra.mxu0 0.0
        %2772 = vmatprep.subr.mxu0 0.0
        %2773 = vmatpush1.msra.mxu0 0.0
        %2774 = vmatprep.subr.mxu0 0.0
        %2775 = vmatpush1.msra.mxu0 0.0
        %2776 = vmatprep.subr.mxu0 0.0
        %2777 = vmatpush1.msra.mxu0 0.0
        %2778 = vmatprep.subr.mxu0 0.0
        %2779 = vmatpush1.msra.mxu0 0.0
        %2780 = vmatprep.subr.mxu0 0.0
        %2781 = vmatpush1.msra.mxu0 0.0
        %2782 = vmatprep.subr.mxu0 0.0
        %2783 = vmatpush1.msra.mxu0 0.0
        %2784 = vmatprep.subr.mxu0 0.0
        %2785 = vmatpush1.msra.mxu0 0.0
        %2786 = vmatprep.subr.mxu0 0.0
        %2787 = vmatpush1.msra.mxu0 0.0
        %2788 = vmatprep.subr.mxu0 0.0
        %2789 = vmatpush1.msra.mxu0 0.0
        %2790 = vmatprep.subr.mxu0 0.0
        %2791 = vmatpush1.msra.mxu0 0.0
        %2792 = vmatprep.subr.mxu0 0.0
        %2793 = vmatpush1.msra.mxu0 0.0
        %2794 = vmatprep.subr.mxu0 0.0
        %2795 = vmatpush1.msra.mxu0 0.0
        %2796 = vmatprep.subr.mxu0 0.0
        %2797 = vmatpush1.msra.mxu0 0.0
        %2798 = vmatprep.subr.mxu0 0.0
        %2799 = vmatpush1.msra.mxu0 0.0
        %2800 = vmatprep.subr.mxu0 0.0
        %2801 = vmatpush1.msra.mxu0 0.0
        %2802 = vmatprep.subr.mxu0 0.0
        %2803 = vmatpush1.msra.mxu0 0.0
        %2804 = vmatprep.subr.mxu0 0.0
        %2805 = vmatpush1.msra.mxu0 0.0
        %2806 = vmatprep.subr.mxu0 0.0
        %2807 = vmatpush1.msra.mxu0 0.0
        %2808 = vmatprep.subr.mxu0 0.0
        %2809 = vmatpush1.msra.mxu0 0.0
        %2810 = vmatprep.subr.mxu0 0.0
        %2811 = vmatpush1.msra.mxu0 0.0
        %2812 = vmatprep.subr.mxu0 0.0
        %2813 = vmatpush1.msra.mxu0 0.0
        %2814 = vmatprep.mubr.f32.mxu0 0.0
        %2815 = vmatmul.mubr.f32.gmra.mrb[0].mxu0 %v2608
        %v2816 = vpop.f32.mrb[0].mxu0
        %v2817 = vadd.f32 %v2598, %v2816
        %v2818 = vpop.f32.mrb[0].mxu0
        %2819 = vdwg.mxu0
        %2820 = vmatprep.subr.mxu0 0.0
        %2821 = vmatpush1.msra.mxu0 %v2571
        %2822 = vmatprep.subr.mxu0 0.0
        %2823 = vmatpush1.msra.mxu0 %v2572
        %2824 = vmatprep.subr.mxu0 0.0
        %2825 = vmatpush1.msra.mxu0 %v2573
        %2826 = vmatprep.subr.mxu0 0.0
        %2827 = vmatpush1.msra.mxu0 %v2574
        %2828 = vmatprep.subr.mxu0 0.0
        %2829 = vmatpush1.msra.mxu0 %v2575
        %2830 = vmatprep.subr.mxu0 0.0
        %2831 = vmatpush1.msra.mxu0 %v2576
        %2832 = vmatprep.subr.mxu0 0.0
        %2833 = vmatpush1.msra.mxu0 %v2577
        %2834 = vmatprep.subr.mxu0 0.0
        %2835 = vmatpush1.msra.mxu0 %v2578
        %2836 = vmatprep.subr.mxu0 0.0
        %2837 = vmatpush1.msra.mxu0 0.0
        %2838 = vmatprep.subr.mxu0 0.0
        %2839 = vmatpush1.msra.mxu0 0.0
        %2840 = vmatprep.subr.mxu0 0.0
        %2841 = vmatpush1.msra.mxu0 0.0
        %2842 = vmatprep.subr.mxu0 0.0
        %2843 = vmatpush1.msra.mxu0 0.0
        %2844 = vmatprep.subr.mxu0 0.0
        %2845 = vmatpush1.msra.mxu0 0.0
        %2846 = vmatprep.subr.mxu0 0.0
        %2847 = vmatpush1.msra.mxu0 0.0
        %2848 = vmatprep.subr.mxu0 0.0
        %2849 = vmatpush1.msra.mxu0 0.0
        %2850 = vmatprep.subr.mxu0 0.0
        %2851 = vmatpush1.msra.mxu0 0.0
        %2852 = vmatprep.subr.mxu0 0.0
        %2853 = vmatpush1.msra.mxu0 0.0
        %2854 = vmatprep.subr.mxu0 0.0
        %2855 = vmatpush1.msra.mxu0 0.0
        %2856 = vmatprep.subr.mxu0 0.0
        %2857 = vmatpush1.msra.mxu0 0.0
        %2858 = vmatprep.subr.mxu0 0.0
        %2859 = vmatpush1.msra.mxu0 0.0
        %2860 = vmatprep.subr.mxu0 0.0
        %2861 = vmatpush1.msra.mxu0 0.0
        %2862 = vmatprep.subr.mxu0 0.0
        %2863 = vmatpush1.msra.mxu0 0.0
        %2864 = vmatprep.subr.mxu0 0.0
        %2865 = vmatpush1.msra.mxu0 0.0
        %2866 = vmatprep.subr.mxu0 0.0
        %2867 = vmatpush1.msra.mxu0 0.0
        %2868 = vmatprep.subr.mxu0 0.0
        %2869 = vmatpush1.msra.mxu0 0.0
        %2870 = vmatprep.subr.mxu0 0.0
        %2871 = vmatpush1.msra.mxu0 0.0
        %2872 = vmatprep.subr.mxu0 0.0
        %2873 = vmatpush1.msra.mxu0 0.0
        %2874 = vmatprep.subr.mxu0 0.0
        %2875 = vmatpush1.msra.mxu0 0.0
        %2876 = vmatprep.subr.mxu0 0.0
        %2877 = vmatpush1.msra.mxu0 0.0
        %2878 = vmatprep.subr.mxu0 0.0
        %2879 = vmatpush1.msra.mxu0 0.0
        %2880 = vmatprep.subr.mxu0 0.0
        %2881 = vmatpush1.msra.mxu0 0.0
        %2882 = vmatprep.subr.mxu0 0.0
        %2883 = vmatpush1.msra.mxu0 0.0
        %2884 = vmatprep.mubr.f32.mxu0 0.0
        %2885 = vmatmul.mubr.f32.gmra.mrb[0].mxu0 %v2608
        %v2886 = vpop.f32.mrb[0].mxu0
        %v2887 = vadd.f32 %v2602, %v2886
        %v2888 = vpop.f32.mrb[0].mxu0
        %2889 = vdwg.mxu0
        %2891 = vrot.lane.b32.xlu0 %v2677, 112
        %v2892 = vpop.permute.xlu0 %2891
        %v2893 = vsel %vm910, %v2677, 0
        %v2895 = vsel %vm910, %v2892, 0
        %2897 = vmatprep.subr.mxu0 0.0
        %2898 = vmatpush1.xpose.msra.mxu0 %v2895
        %2899 = vmatprep.subr.mxu0 0.0
        %2900 = vmatpush1.xpose.msra.mxu0 0.0
        %2901 = vmatprep.subr.mxu0 0.0
        %2902 = vmatpush1.xpose.msra.mxu0 0.0
        %2903 = vmatprep.subr.mxu0 0.0
        %2904 = vmatpush1.xpose.msra.mxu0 0.0
        %2905 = vmatprep.subr.mxu0 0.0
        %2906 = vmatpush1.xpose.msra.mxu0 0.0
        %2907 = vmatprep.subr.mxu0 0.0
        %2908 = vmatpush1.xpose.msra.mxu0 0.0
        %2909 = vmatprep.subr.mxu0 0.0
        %2910 = vmatpush1.xpose.msra.mxu0 0.0
        %2911 = vmatprep.subr.mxu0 0.0
        %2912 = vmatpush1.xpose.msra.mxu0 0.0
        %2913 = vmatprep.subr.mxu0 0.0
        %2914 = vmatpush1.xpose.msra.mxu0 0.0
        %2915 = vmatprep.subr.mxu0 0.0
        %2916 = vmatpush1.xpose.msra.mxu0 0.0
        %2917 = vmatprep.subr.mxu0 0.0
        %2918 = vmatpush1.xpose.msra.mxu0 0.0
        %2919 = vmatprep.subr.mxu0 0.0
        %2920 = vmatpush1.xpose.msra.mxu0 0.0
        %2921 = vmatprep.subr.mxu0 0.0
        %2922 = vmatpush1.xpose.msra.mxu0 0.0
        %2923 = vmatprep.subr.mxu0 0.0
        %2924 = vmatpush1.xpose.msra.mxu0 0.0
        %2925 = vmatprep.subr.mxu0 0.0
        %2926 = vmatpush1.xpose.msra.mxu0 0.0
        %2927 = vmatprep.subr.mxu0 0.0
        %2928 = vmatpush1.xpose.msra.mxu0 0.0
        %2929 = vmatprep.subr.mxu0 0.0
        %2930 = vmatpush1.xpose.msra.mxu0 0.0
        %2931 = vmatprep.subr.mxu0 0.0
        %2932 = vmatpush1.xpose.msra.mxu0 0.0
        %2933 = vmatprep.subr.mxu0 0.0
        %2934 = vmatpush1.xpose.msra.mxu0 0.0
        %2935 = vmatprep.subr.mxu0 0.0
        %2936 = vmatpush1.xpose.msra.mxu0 0.0
        %2937 = vmatprep.subr.mxu0 0.0
        %2938 = vmatpush1.xpose.msra.mxu0 0.0
        %2939 = vmatprep.subr.mxu0 0.0
        %2940 = vmatpush1.xpose.msra.mxu0 0.0
        %2941 = vmatprep.subr.mxu0 0.0
        %2942 = vmatpush1.xpose.msra.mxu0 0.0
        %2943 = vmatprep.subr.mxu0 0.0
        %2944 = vmatpush1.xpose.msra.mxu0 0.0
        %2945 = vmatprep.subr.mxu0 0.0
        %2946 = vmatpush1.xpose.msra.mxu0 0.0
        %2947 = vmatprep.subr.mxu0 0.0
        %2948 = vmatpush1.xpose.msra.mxu0 0.0
        %2949 = vmatprep.subr.mxu0 0.0
        %2950 = vmatpush1.xpose.msra.mxu0 0.0
        %2951 = vmatprep.subr.mxu0 0.0
        %2952 = vmatpush1.xpose.msra.mxu0 0.0
        %2953 = vmatprep.subr.mxu0 0.0
        %2954 = vmatpush1.xpose.msra.mxu0 0.0
        %2955 = vmatprep.subr.mxu0 0.0
        %2956 = vmatpush1.xpose.msra.mxu0 0.0
        %2957 = vmatprep.subr.mxu0 0.0
        %2958 = vmatpush1.xpose.msra.mxu0 0.0
        %2959 = vmatprep.subr.mxu0 0.0
        %2960 = vmatpush1.xpose.msra.mxu0 0.0
        %2961 = vmatprep.mubr.f32.mxu0 0.0
        %2962 = vmatmul.mubr.f32.gmra.mrb[0].mxu0 %v2893
        %v2963 = vpop.f32.mrb[0].mxu0
        %v2964 = vadd.f32 0.0, %v2963
        %v2965 = vpop.f32.mrb[0].mxu0
        %2966 = vdwg.mxu0
        %2968 = vrot.lane.b32.xlu0 %v2747, 112
        %v2969 = vpop.permute.xlu0 %2968
        %v2970 = vsel %vm910, %v2747, 0
        %v2972 = vsel %vm910, %v2969, 0
        %2974 = vmatprep.subr.mxu0 0.0
        %2975 = vmatpush1.xpose.msra.mxu0 %v2972
        %2976 = vmatprep.subr.mxu0 0.0
        %2977 = vmatpush1.xpose.msra.mxu0 0.0
        %2978 = vmatprep.subr.mxu0 0.0
        %2979 = vmatpush1.xpose.msra.mxu0 0.0
        %2980 = vmatprep.subr.mxu0 0.0
        %2981 = vmatpush1.xpose.msra.mxu0 0.0
        %2982 = vmatprep.subr.mxu0 0.0
        %2983 = vmatpush1.xpose.msra.mxu0 0.0
        %2984 = vmatprep.subr.mxu0 0.0
        %2985 = vmatpush1.xpose.msra.mxu0 0.0
        %2986 = vmatprep.subr.mxu0 0.0
        %2987 = vmatpush1.xpose.msra.mxu0 0.0
        %2988 = vmatprep.subr.mxu0 0.0
        %2989 = vmatpush1.xpose.msra.mxu0 0.0
        %2990 = vmatprep.subr.mxu0 0.0
        %2991 = vmatpush1.xpose.msra.mxu0 0.0
        %2992 = vmatprep.subr.mxu0 0.0
        %2993 = vmatpush1.xpose.msra.mxu0 0.0
        %2994 = vmatprep.subr.mxu0 0.0
        %2995 = vmatpush1.xpose.msra.mxu0 0.0
        %2996 = vmatprep.subr.mxu0 0.0
        %2997 = vmatpush1.xpose.msra.mxu0 0.0
        %2998 = vmatprep.subr.mxu0 0.0
        %2999 = vmatpush1.xpose.msra.mxu0 0.0
        %3000 = vmatprep.subr.mxu0 0.0
        %3001 = vmatpush1.xpose.msra.mxu0 0.0
        %3002 = vmatprep.subr.mxu0 0.0
        %3003 = vmatpush1.xpose.msra.mxu0 0.0
        %3004 = vmatprep.subr.mxu0 0.0
        %3005 = vmatpush1.xpose.msra.mxu0 0.0
        %3006 = vmatprep.subr.mxu0 0.0
        %3007 = vmatpush1.xpose.msra.mxu0 0.0
        %3008 = vmatprep.subr.mxu0 0.0
        %3009 = vmatpush1.xpose.msra.mxu0 0.0
        %3010 = vmatprep.subr.mxu0 0.0
        %3011 = vmatpush1.xpose.msra.mxu0 0.0
        %3012 = vmatprep.subr.mxu0 0.0
        %3013 = vmatpush1.xpose.msra.mxu0 0.0
        %3014 = vmatprep.subr.mxu0 0.0
        %3015 = vmatpush1.xpose.msra.mxu0 0.0
        %3016 = vmatprep.subr.mxu0 0.0
        %3017 = vmatpush1.xpose.msra.mxu0 0.0
        %3018 = vmatprep.subr.mxu0 0.0
        %3019 = vmatpush1.xpose.msra.mxu0 0.0
        %3020 = vmatprep.subr.mxu0 0.0
        %3021 = vmatpush1.xpose.msra.mxu0 0.0
        %3022 = vmatprep.subr.mxu0 0.0
        %3023 = vmatpush1.xpose.msra.mxu0 0.0
        %3024 = vmatprep.subr.mxu0 0.0
        %3025 = vmatpush1.xpose.msra.mxu0 0.0
        %3026 = vmatprep.subr.mxu0 0.0
        %3027 = vmatpush1.xpose.msra.mxu0 0.0
        %3028 = vmatprep.subr.mxu0 0.0
        %3029 = vmatpush1.xpose.msra.mxu0 0.0
        %3030 = vmatprep.subr.mxu0 0.0
        %3031 = vmatpush1.xpose.msra.mxu0 0.0
        %3032 = vmatprep.subr.mxu0 0.0
        %3033 = vmatpush1.xpose.msra.mxu0 0.0
        %3034 = vmatprep.subr.mxu0 0.0
        %3035 = vmatpush1.xpose.msra.mxu0 0.0
        %3036 = vmatprep.subr.mxu0 0.0
        %3037 = vmatpush1.xpose.msra.mxu0 0.0
        %3038 = vmatprep.mubr.f32.mxu0 0.0
        %3039 = vmatmul.mubr.f32.gmra.mrb[0].mxu0 %v2970
        %v3040 = vpop.f32.mrb[0].mxu0
        %v3041 = vadd.f32 0.0, %v3040
        %v3042 = vpop.f32.mrb[0].mxu0
        %3043 = vdwg.mxu0
        %3045 = vrot.lane.b32.xlu0 %v2817, 112
        %v3046 = vpop.permute.xlu0 %3045
        %v3047 = vsel %vm910, %v2817, 0
        %v3049 = vsel %vm910, %v3046, 0
        %3051 = vmatprep.subr.mxu0 0.0
        %3052 = vmatpush1.xpose.msra.mxu0 %v3049
        %3053 = vmatprep.subr.mxu0 0.0
        %3054 = vmatpush1.xpose.msra.mxu0 0.0
        %3055 = vmatprep.subr.mxu0 0.0
        %3056 = vmatpush1.xpose.msra.mxu0 0.0
        %3057 = vmatprep.subr.mxu0 0.0
        %3058 = vmatpush1.xpose.msra.mxu0 0.0
        %3059 = vmatprep.subr.mxu0 0.0
        %3060 = vmatpush1.xpose.msra.mxu0 0.0
        %3061 = vmatprep.subr.mxu0 0.0
        %3062 = vmatpush1.xpose.msra.mxu0 0.0
        %3063 = vmatprep.subr.mxu0 0.0
        %3064 = vmatpush1.xpose.msra.mxu0 0.0
        %3065 = vmatprep.subr.mxu0 0.0
        %3066 = vmatpush1.xpose.msra.mxu0 0.0
        %3067 = vmatprep.subr.mxu0 0.0
        %3068 = vmatpush1.xpose.msra.mxu0 0.0
        %3069 = vmatprep.subr.mxu0 0.0
        %3070 = vmatpush1.xpose.msra.mxu0 0.0
        %3071 = vmatprep.subr.mxu0 0.0
        %3072 = vmatpush1.xpose.msra.mxu0 0.0
        %3073 = vmatprep.subr.mxu0 0.0
        %3074 = vmatpush1.xpose.msra.mxu0 0.0
        %3075 = vmatprep.subr.mxu0 0.0
        %3076 = vmatpush1.xpose.msra.mxu0 0.0
        %3077 = vmatprep.subr.mxu0 0.0
        %3078 = vmatpush1.xpose.msra.mxu0 0.0
        %3079 = vmatprep.subr.mxu0 0.0
        %3080 = vmatpush1.xpose.msra.mxu0 0.0
        %3081 = vmatprep.subr.mxu0 0.0
        %3082 = vmatpush1.xpose.msra.mxu0 0.0
        %3083 = vmatprep.subr.mxu0 0.0
        %3084 = vmatpush1.xpose.msra.mxu0 0.0
        %3085 = vmatprep.subr.mxu0 0.0
        %3086 = vmatpush1.xpose.msra.mxu0 0.0
        %3087 = vmatprep.subr.mxu0 0.0
        %3088 = vmatpush1.xpose.msra.mxu0 0.0
        %3089 = vmatprep.subr.mxu0 0.0
        %3090 = vmatpush1.xpose.msra.mxu0 0.0
        %3091 = vmatprep.subr.mxu0 0.0
        %3092 = vmatpush1.xpose.msra.mxu0 0.0
        %3093 = vmatprep.subr.mxu0 0.0
        %3094 = vmatpush1.xpose.msra.mxu0 0.0
        %3095 = vmatprep.subr.mxu0 0.0
        %3096 = vmatpush1.xpose.msra.mxu0 0.0
        %3097 = vmatprep.subr.mxu0 0.0
        %3098 = vmatpush1.xpose.msra.mxu0 0.0
        %3099 = vmatprep.subr.mxu0 0.0
        %3100 = vmatpush1.xpose.msra.mxu0 0.0
        %3101 = vmatprep.subr.mxu0 0.0
        %3102 = vmatpush1.xpose.msra.mxu0 0.0
        %3103 = vmatprep.subr.mxu0 0.0
        %3104 = vmatpush1.xpose.msra.mxu0 0.0
        %3105 = vmatprep.subr.mxu0 0.0
        %3106 = vmatpush1.xpose.msra.mxu0 0.0
        %3107 = vmatprep.subr.mxu0 0.0
        %3108 = vmatpush1.xpose.msra.mxu0 0.0
        %3109 = vmatprep.subr.mxu0 0.0
        %3110 = vmatpush1.xpose.msra.mxu0 0.0
        %3111 = vmatprep.subr.mxu0 0.0
        %3112 = vmatpush1.xpose.msra.mxu0 0.0
        %3113 = vmatprep.subr.mxu0 0.0
        %3114 = vmatpush1.xpose.msra.mxu0 0.0
        %3115 = vmatprep.mubr.f32.mxu0 0.0
        %3116 = vmatmul.mubr.f32.gmra.mrb[0].mxu0 %v3047
        %v3117 = vpop.f32.mrb[0].mxu0
        %v3118 = vadd.f32 0.0, %v3117
        %v3119 = vpop.f32.mrb[0].mxu0
        %3120 = vdwg.mxu0
        %3122 = vrot.lane.b32.xlu0 %v2887, 112
        %v3123 = vpop.permute.xlu0 %3122
        %v3124 = vsel %vm910, %v2887, 0
        %v3126 = vsel %vm910, %v3123, 0
        %3128 = vmatprep.subr.mxu0 0.0
        %3129 = vmatpush1.xpose.msra.mxu0 %v3126
        %3130 = vmatprep.subr.mxu0 0.0
        %3131 = vmatpush1.xpose.msra.mxu0 0.0
        %3132 = vmatprep.subr.mxu0 0.0
        %3133 = vmatpush1.xpose.msra.mxu0 0.0
        %3134 = vmatprep.subr.mxu0 0.0
        %3135 = vmatpush1.xpose.msra.mxu0 0.0
        %3136 = vmatprep.subr.mxu0 0.0
        %3137 = vmatpush1.xpose.msra.mxu0 0.0
        %3138 = vmatprep.subr.mxu0 0.0
        %3139 = vmatpush1.xpose.msra.mxu0 0.0
        %3140 = vmatprep.subr.mxu0 0.0
        %3141 = vmatpush1.xpose.msra.mxu0 0.0
        %3142 = vmatprep.subr.mxu0 0.0
        %3143 = vmatpush1.xpose.msra.mxu0 0.0
        %3144 = vmatprep.subr.mxu0 0.0
        %3145 = vmatpush1.xpose.msra.mxu0 0.0
        %3146 = vmatprep.subr.mxu0 0.0
        %3147 = vmatpush1.xpose.msra.mxu0 0.0
        %3148 = vmatprep.subr.mxu0 0.0
        %3149 = vmatpush1.xpose.msra.mxu0 0.0
        %3150 = vmatprep.subr.mxu0 0.0
        %3151 = vmatpush1.xpose.msra.mxu0 0.0
        %3152 = vmatprep.subr.mxu0 0.0
        %3153 = vmatpush1.xpose.msra.mxu0 0.0
        %3154 = vmatprep.subr.mxu0 0.0
        %3155 = vmatpush1.xpose.msra.mxu0 0.0
        %3156 = vmatprep.subr.mxu0 0.0
        %3157 = vmatpush1.xpose.msra.mxu0 0.0
        %3158 = vmatprep.subr.mxu0 0.0
        %3159 = vmatpush1.xpose.msra.mxu0 0.0
        %3160 = vmatprep.subr.mxu0 0.0
        %3161 = vmatpush1.xpose.msra.mxu0 0.0
        %3162 = vmatprep.subr.mxu0 0.0
        %3163 = vmatpush1.xpose.msra.mxu0 0.0
        %3164 = vmatprep.subr.mxu0 0.0
        %3165 = vmatpush1.xpose.msra.mxu0 0.0
        %3166 = vmatprep.subr.mxu0 0.0
        %3167 = vmatpush1.xpose.msra.mxu0 0.0
        %3168 = vmatprep.subr.mxu0 0.0
        %3169 = vmatpush1.xpose.msra.mxu0 0.0
        %3170 = vmatprep.subr.mxu0 0.0
        %3171 = vmatpush1.xpose.msra.mxu0 0.0
        %3172 = vmatprep.subr.mxu0 0.0
        %3173 = vmatpush1.xpose.msra.mxu0 0.0
        %3174 = vmatprep.subr.mxu0 0.0
        %3175 = vmatpush1.xpose.msra.mxu0 0.0
        %3176 = vmatprep.subr.mxu0 0.0
        %3177 = vmatpush1.xpose.msra.mxu0 0.0
        %3178 = vmatprep.subr.mxu0 0.0
        %3179 = vmatpush1.xpose.msra.mxu0 0.0
        %3180 = vmatprep.subr.mxu0 0.0
        %3181 = vmatpush1.xpose.msra.mxu0 0.0
        %3182 = vmatprep.subr.mxu0 0.0
        %3183 = vmatpush1.xpose.msra.mxu0 0.0
        %3184 = vmatprep.subr.mxu0 0.0
        %3185 = vmatpush1.xpose.msra.mxu0 0.0
        %3186 = vmatprep.subr.mxu0 0.0
        %3187 = vmatpush1.xpose.msra.mxu0 0.0
        %3188 = vmatprep.subr.mxu0 0.0
        %3189 = vmatpush1.xpose.msra.mxu0 0.0
        %3190 = vmatprep.subr.mxu0 0.0
        %3191 = vmatpush1.xpose.msra.mxu0 0.0
        %3192 = vmatprep.mubr.f32.mxu0 0.0
        %3193 = vmatmul.mubr.f32.gmra.mrb[0].mxu0 %v3124
        %v3194 = vpop.f32.mrb[0].mxu0
        %v3195 = vadd.f32 0.0, %v3194
        %v3196 = vpop.f32.mrb[0].mxu0
        %3197 = vdwg.mxu0
        %v3198 = vmul.f32 %v2964, 0.25
        %v3199 = vmul.f32 %v3041, 0.25
        %v3200 = vmul.f32 %v3118, 0.25
        %v3201 = vmul.f32 %v3195, 0.25
        %v3202 = vsel %vm1640, %v3198, -inf
        %3203 = vmax.xlane.f32.xlu0 %v3202
        %v3204 = vpop.xlane.xlu0 %3203
        %v3205 = vsel %vm1640, %v3199, -inf
        %3206 = vmax.xlane.f32.xlu0 %v3205
        %v3207 = vpop.xlane.xlu0 %3206
        %v3208 = vsel %vm1640, %v3200, -inf
        %3209 = vmax.xlane.f32.xlu0 %v3208
        %v3210 = vpop.xlane.xlu0 %3209
        %v3211 = vsel %vm1640, %v3201, -inf
        %3212 = vmax.xlane.f32.xlu0 %v3211
        %v3213 = vpop.xlane.xlu0 %3212
        %v3214 = vsub.f32 %v3198, %v3204
        %v3215 = vsub.f32 %v3199, %v3207
        %v3216 = vsub.f32 %v3200, %v3210
        %v3217 = vsub.f32 %v3201, %v3213
        %v3218 = vmul.f32 %v3214, 1.442695
        %v3219 = vpow.pop %v3218
        %v3220 = vmul.f32 %v3215, 1.442695
        %v3221 = vpow.pop %v3220
        %v3222 = vmul.f32 %v3216, 1.442695
        %v3223 = vpow.pop %v3222
        %v3224 = vmul.f32 %v3217, 1.442695
        %v3225 = vpow.pop %v3224
        %v3226 = vsel %vm1640, %v3219, 0.0
        %3227 = vadd.xlane.f32.xlu0 %v3226
        %v3228 = vpop.xlane.xlu0 %3227
        %v3229 = vsel %vm1640, %v3221, 0.0
        %3230 = vadd.xlane.f32.xlu0 %v3229
        %v3231 = vpop.xlane.xlu0 %3230
        %v3232 = vsel %vm1640, %v3223, 0.0
        %3233 = vadd.xlane.f32.xlu0 %v3232
        %v3234 = vpop.xlane.xlu0 %3233
        %v3235 = vsel %vm1640, %v3225, 0.0
        %3236 = vadd.xlane.f32.xlu0 %v3235
        %v3237 = vpop.xlane.xlu0 %3236
        %v3238 = vrcp.pop %v3228
        %v3239 = vrcp.pop %v3231
        %v3240 = vrcp.pop %v3234
        %v3241 = vrcp.pop %v3237
        %v3242 = vmul.f32 %v3219, %v3238
        %v3243 = vmul.f32 %v3221, %v3239
        %v3244 = vmul.f32 %v3223, %v3240
        %v3245 = vmul.f32 %v3225, %v3241
        %3246 = vrot.lane.b32.xlu0 %v2677, 96
        %v3247 = vpop.permute.xlu0 %3246
        %v3250 = vsel %vm1640, %v3242, 0
        %3252 = vmatprep.subr.mxu0 0.0
        %3253 = vmatpush1.msra.mxu0 %v3247
        %3254 = vmatprep.subr.mxu0 0.0
        %3255 = vmatpush1.msra.mxu0 0.0
        %3256 = vmatprep.subr.mxu0 0.0
        %3257 = vmatpush1.msra.mxu0 0.0
        %3258 = vmatprep.subr.mxu0 0.0
        %3259 = vmatpush1.msra.mxu0 0.0
        %3260 = vmatprep.subr.mxu0 0.0
        %3261 = vmatpush1.msra.mxu0 0.0
        %3262 = vmatprep.subr.mxu0 0.0
        %3263 = vmatpush1.msra.mxu0 0.0
        %3264 = vmatprep.subr.mxu0 0.0
        %3265 = vmatpush1.msra.mxu0 0.0
        %3266 = vmatprep.subr.mxu0 0.0
        %3267 = vmatpush1.msra.mxu0 0.0
        %3268 = vmatprep.subr.mxu0 0.0
        %3269 = vmatpush1.msra.mxu0 0.0
        %3270 = vmatprep.subr.mxu0 0.0
        %3271 = vmatpush1.msra.mxu0 0.0
        %3272 = vmatprep.subr.mxu0 0.0
        %3273 = vmatpush1.msra.mxu0 0.0
        %3274 = vmatprep.subr.mxu0 0.0
        %3275 = vmatpush1.msra.mxu0 0.0
        %3276 = vmatprep.subr.mxu0 0.0
        %3277 = vmatpush1.msra.mxu0 0.0
        %3278 = vmatprep.subr.mxu0 0.0
        %3279 = vmatpush1.msra.mxu0 0.0
        %3280 = vmatprep.subr.mxu0 0.0
        %3281 = vmatpush1.msra.mxu0 0.0
        %3282 = vmatprep.subr.mxu0 0.0
        %3283 = vmatpush1.msra.mxu0 0.0
        %3284 = vmatprep.subr.mxu0 0.0
        %3285 = vmatpush1.msra.mxu0 0.0
        %3286 = vmatprep.subr.mxu0 0.0
        %3287 = vmatpush1.msra.mxu0 0.0
        %3288 = vmatprep.subr.mxu0 0.0
        %3289 = vmatpush1.msra.mxu0 0.0
        %3290 = vmatprep.subr.mxu0 0.0
        %3291 = vmatpush1.msra.mxu0 0.0
        %3292 = vmatprep.subr.mxu0 0.0
        %3293 = vmatpush1.msra.mxu0 0.0
        %3294 = vmatprep.subr.mxu0 0.0
        %3295 = vmatpush1.msra.mxu0 0.0
        %3296 = vmatprep.subr.mxu0 0.0
        %3297 = vmatpush1.msra.mxu0 0.0
        %3298 = vmatprep.subr.mxu0 0.0
        %3299 = vmatpush1.msra.mxu0 0.0
        %3300 = vmatprep.subr.mxu0 0.0
        %3301 = vmatpush1.msra.mxu0 0.0
        %3302 = vmatprep.subr.mxu0 0.0
        %3303 = vmatpush1.msra.mxu0 0.0
        %3304 = vmatprep.subr.mxu0 0.0
        %3305 = vmatpush1.msra.mxu0 0.0
        %3306 = vmatprep.subr.mxu0 0.0
        %3307 = vmatpush1.msra.mxu0 0.0
        %3308 = vmatprep.subr.mxu0 0.0
        %3309 = vmatpush1.msra.mxu0 0.0
        %3310 = vmatprep.subr.mxu0 0.0
        %3311 = vmatpush1.msra.mxu0 0.0
        %3312 = vmatprep.subr.mxu0 0.0
        %3313 = vmatpush1.msra.mxu0 0.0
        %3314 = vmatprep.subr.mxu0 0.0
        %3315 = vmatpush1.msra.mxu0 0.0
        %3316 = vmatprep.mubr.f32.mxu0 0.0
        %3317 = vmatmul.mubr.f32.gmra.mrb[0].mxu0 %v3250
        %v3318 = vpop.f32.mrb[0].mxu0
        %v3319 = vadd.f32 0.0, %v3318
        %v3320 = vpop.f32.mrb[0].mxu0
        %3321 = vdwg.mxu0
        %3322 = vrot.lane.b32.xlu0 %v2747, 96
        %v3323 = vpop.permute.xlu0 %3322
        %v3326 = vsel %vm1640, %v3243, 0
        %3328 = vmatprep.subr.mxu0 0.0
        %3329 = vmatpush1.msra.mxu0 %v3323
        %3330 = vmatprep.subr.mxu0 0.0
        %3331 = vmatpush1.msra.mxu0 0.0
        %3332 = vmatprep.subr.mxu0 0.0
        %3333 = vmatpush1.msra.mxu0 0.0
        %3334 = vmatprep.subr.mxu0 0.0
        %3335 = vmatpush1.msra.mxu0 0.0
        %3336 = vmatprep.subr.mxu0 0.0
        %3337 = vmatpush1.msra.mxu0 0.0
        %3338 = vmatprep.subr.mxu0 0.0
        %3339 = vmatpush1.msra.mxu0 0.0
        %3340 = vmatprep.subr.mxu0 0.0
        %3341 = vmatpush1.msra.mxu0 0.0
        %3342 = vmatprep.subr.mxu0 0.0
        %3343 = vmatpush1.msra.mxu0 0.0
        %3344 = vmatprep.subr.mxu0 0.0
        %3345 = vmatpush1.msra.mxu0 0.0
        %3346 = vmatprep.subr.mxu0 0.0
        %3347 = vmatpush1.msra.mxu0 0.0
        %3348 = vmatprep.subr.mxu0 0.0
        %3349 = vmatpush1.msra.mxu0 0.0
        %3350 = vmatprep.subr.mxu0 0.0
        %3351 = vmatpush1.msra.mxu0 0.0
        %3352 = vmatprep.subr.mxu0 0.0
        %3353 = vmatpush1.msra.mxu0 0.0
        %3354 = vmatprep.subr.mxu0 0.0
        %3355 = vmatpush1.msra.mxu0 0.0
        %3356 = vmatprep.subr.mxu0 0.0
        %3357 = vmatpush1.msra.mxu0 0.0
        %3358 = vmatprep.subr.mxu0 0.0
        %3359 = vmatpush1.msra.mxu0 0.0
        %3360 = vmatprep.subr.mxu0 0.0
        %3361 = vmatpush1.msra.mxu0 0.0
        %3362 = vmatprep.subr.mxu0 0.0
        %3363 = vmatpush1.msra.mxu0 0.0
        %3364 = vmatprep.subr.mxu0 0.0
        %3365 = vmatpush1.msra.mxu0 0.0
        %3366 = vmatprep.subr.mxu0 0.0
        %3367 = vmatpush1.msra.mxu0 0.0
        %3368 = vmatprep.subr.mxu0 0.0
        %3369 = vmatpush1.msra.mxu0 0.0
        %3370 = vmatprep.subr.mxu0 0.0
        %3371 = vmatpush1.msra.mxu0 0.0
        %3372 = vmatprep.subr.mxu0 0.0
        %3373 = vmatpush1.msra.mxu0 0.0
        %3374 = vmatprep.subr.mxu0 0.0
        %3375 = vmatpush1.msra.mxu0 0.0
        %3376 = vmatprep.subr.mxu0 0.0
        %3377 = vmatpush1.msra.mxu0 0.0
        %3378 = vmatprep.subr.mxu0 0.0
        %3379 = vmatpush1.msra.mxu0 0.0
        %3380 = vmatprep.subr.mxu0 0.0
        %3381 = vmatpush1.msra.mxu0 0.0
        %3382 = vmatprep.subr.mxu0 0.0
        %3383 = vmatpush1.msra.mxu0 0.0
        %3384 = vmatprep.subr.mxu0 0.0
        %3385 = vmatpush1.msra.mxu0 0.0
        %3386 = vmatprep.subr.mxu0 0.0
        %3387 = vmatpush1.msra.mxu0 0.0
        %3388 = vmatprep.subr.mxu0 0.0
        %3389 = vmatpush1.msra.mxu0 0.0
        %3390 = vmatprep.subr.mxu0 0.0
        %3391 = vmatpush1.msra.mxu0 0.0
        %3392 = vmatprep.mubr.f32.mxu0 0.0
        %3393 = vmatmul.mubr.f32.gmra.mrb[0].mxu0 %v3326
        %v3394 = vpop.f32.mrb[0].mxu0
        %v3395 = vadd.f32 0.0, %v3394
        %v3396 = vpop.f32.mrb[0].mxu0
        %3397 = vdwg.mxu0
        %3398 = vrot.lane.b32.xlu0 %v2817, 96
        %v3399 = vpop.permute.xlu0 %3398
        %v3402 = vsel %vm1640, %v3244, 0
        %3404 = vmatprep.subr.mxu0 0.0
        %3405 = vmatpush1.msra.mxu0 %v3399
        %3406 = vmatprep.subr.mxu0 0.0
        %3407 = vmatpush1.msra.mxu0 0.0
        %3408 = vmatprep.subr.mxu0 0.0
        %3409 = vmatpush1.msra.mxu0 0.0
        %3410 = vmatprep.subr.mxu0 0.0
        %3411 = vmatpush1.msra.mxu0 0.0
        %3412 = vmatprep.subr.mxu0 0.0
        %3413 = vmatpush1.msra.mxu0 0.0
        %3414 = vmatprep.subr.mxu0 0.0
        %3415 = vmatpush1.msra.mxu0 0.0
        %3416 = vmatprep.subr.mxu0 0.0
        %3417 = vmatpush1.msra.mxu0 0.0
        %3418 = vmatprep.subr.mxu0 0.0
        %3419 = vmatpush1.msra.mxu0 0.0
        %3420 = vmatprep.subr.mxu0 0.0
        %3421 = vmatpush1.msra.mxu0 0.0
        %3422 = vmatprep.subr.mxu0 0.0
        %3423 = vmatpush1.msra.mxu0 0.0
        %3424 = vmatprep.subr.mxu0 0.0
        %3425 = vmatpush1.msra.mxu0 0.0
        %3426 = vmatprep.subr.mxu0 0.0
        %3427 = vmatpush1.msra.mxu0 0.0
        %3428 = vmatprep.subr.mxu0 0.0
        %3429 = vmatpush1.msra.mxu0 0.0
        %3430 = vmatprep.subr.mxu0 0.0
        %3431 = vmatpush1.msra.mxu0 0.0
        %3432 = vmatprep.subr.mxu0 0.0
        %3433 = vmatpush1.msra.mxu0 0.0
        %3434 = vmatprep.subr.mxu0 0.0
        %3435 = vmatpush1.msra.mxu0 0.0
        %3436 = vmatprep.subr.mxu0 0.0
        %3437 = vmatpush1.msra.mxu0 0.0
        %3438 = vmatprep.subr.mxu0 0.0
        %3439 = vmatpush1.msra.mxu0 0.0
        %3440 = vmatprep.subr.mxu0 0.0
        %3441 = vmatpush1.msra.mxu0 0.0
        %3442 = vmatprep.subr.mxu0 0.0
        %3443 = vmatpush1.msra.mxu0 0.0
        %3444 = vmatprep.subr.mxu0 0.0
        %3445 = vmatpush1.msra.mxu0 0.0
        %3446 = vmatprep.subr.mxu0 0.0
        %3447 = vmatpush1.msra.mxu0 0.0
        %3448 = vmatprep.subr.mxu0 0.0
        %3449 = vmatpush1.msra.mxu0 0.0
        %3450 = vmatprep.subr.mxu0 0.0
        %3451 = vmatpush1.msra.mxu0 0.0
        %3452 = vmatprep.subr.mxu0 0.0
        %3453 = vmatpush1.msra.mxu0 0.0
        %3454 = vmatprep.subr.mxu0 0.0
        %3455 = vmatpush1.msra.mxu0 0.0
        %3456 = vmatprep.subr.mxu0 0.0
        %3457 = vmatpush1.msra.mxu0 0.0
        %3458 = vmatprep.subr.mxu0 0.0
        %3459 = vmatpush1.msra.mxu0 0.0
        %3460 = vmatprep.subr.mxu0 0.0
        %3461 = vmatpush1.msra.mxu0 0.0
        %3462 = vmatprep.subr.mxu0 0.0
        %3463 = vmatpush1.msra.mxu0 0.0
        %3464 = vmatprep.subr.mxu0 0.0
        %3465 = vmatpush1.msra.mxu0 0.0
        %3466 = vmatprep.subr.mxu0 0.0
        %3467 = vmatpush1.msra.mxu0 0.0
        %3468 = vmatprep.mubr.f32.mxu0 0.0
        %3469 = vmatmul.mubr.f32.gmra.mrb[0].mxu0 %v3402
        %v3470 = vpop.f32.mrb[0].mxu0
        %v3471 = vadd.f32 0.0, %v3470
        %v3472 = vpop.f32.mrb[0].mxu0
        %3473 = vdwg.mxu0
        %3474 = vrot.lane.b32.xlu0 %v2887, 96
        %v3475 = vpop.permute.xlu0 %3474
        %v3478 = vsel %vm1640, %v3245, 0
        %3480 = vmatprep.subr.mxu0 0.0
        %3481 = vmatpush1.msra.mxu0 %v3475
        %3482 = vmatprep.subr.mxu0 0.0
        %3483 = vmatpush1.msra.mxu0 0.0
        %3484 = vmatprep.subr.mxu0 0.0
        %3485 = vmatpush1.msra.mxu0 0.0
        %3486 = vmatprep.subr.mxu0 0.0
        %3487 = vmatpush1.msra.mxu0 0.0
        %3488 = vmatprep.subr.mxu0 0.0
        %3489 = vmatpush1.msra.mxu0 0.0
        %3490 = vmatprep.subr.mxu0 0.0
        %3491 = vmatpush1.msra.mxu0 0.0
        %3492 = vmatprep.subr.mxu0 0.0
        %3493 = vmatpush1.msra.mxu0 0.0
        %3494 = vmatprep.subr.mxu0 0.0
        %3495 = vmatpush1.msra.mxu0 0.0
        %3496 = vmatprep.subr.mxu0 0.0
        %3497 = vmatpush1.msra.mxu0 0.0
        %3498 = vmatprep.subr.mxu0 0.0
        %3499 = vmatpush1.msra.mxu0 0.0
        %3500 = vmatprep.subr.mxu0 0.0
        %3501 = vmatpush1.msra.mxu0 0.0
        %3502 = vmatprep.subr.mxu0 0.0
        %3503 = vmatpush1.msra.mxu0 0.0
        %3504 = vmatprep.subr.mxu0 0.0
        %3505 = vmatpush1.msra.mxu0 0.0
        %3506 = vmatprep.subr.mxu0 0.0
        %3507 = vmatpush1.msra.mxu0 0.0
        %3508 = vmatprep.subr.mxu0 0.0
        %3509 = vmatpush1.msra.mxu0 0.0
        %3510 = vmatprep.subr.mxu0 0.0
        %3511 = vmatpush1.msra.mxu0 0.0
        %3512 = vmatprep.subr.mxu0 0.0
        %3513 = vmatpush1.msra.mxu0 0.0
        %3514 = vmatprep.subr.mxu0 0.0
        %3515 = vmatpush1.msra.mxu0 0.0
        %3516 = vmatprep.subr.mxu0 0.0
        %3517 = vmatpush1.msra.mxu0 0.0
        %3518 = vmatprep.subr.mxu0 0.0
        %3519 = vmatpush1.msra.mxu0 0.0
        %3520 = vmatprep.subr.mxu0 0.0
        %3521 = vmatpush1.msra.mxu0 0.0
        %3522 = vmatprep.subr.mxu0 0.0
        %3523 = vmatpush1.msra.mxu0 0.0
        %3524 = vmatprep.subr.mxu0 0.0
        %3525 = vmatpush1.msra.mxu0 0.0
        %3526 = vmatprep.subr.mxu0 0.0
        %3527 = vmatpush1.msra.mxu0 0.0
        %3528 = vmatprep.subr.mxu0 0.0
        %3529 = vmatpush1.msra.mxu0 0.0
        %3530 = vmatprep.subr.mxu0 0.0
        %3531 = vmatpush1.msra.mxu0 0.0
        %3532 = vmatprep.subr.mxu0 0.0
        %3533 = vmatpush1.msra.mxu0 0.0
        %3534 = vmatprep.subr.mxu0 0.0
        %3535 = vmatpush1.msra.mxu0 0.0
        %3536 = vmatprep.subr.mxu0 0.0
        %3537 = vmatpush1.msra.mxu0 0.0
        %3538 = vmatprep.subr.mxu0 0.0
        %3539 = vmatpush1.msra.mxu0 0.0
        %3540 = vmatprep.subr.mxu0 0.0
        %3541 = vmatpush1.msra.mxu0 0.0
        %3542 = vmatprep.subr.mxu0 0.0
        %3543 = vmatpush1.msra.mxu0 0.0
        %3544 = vmatprep.mubr.f32.mxu0 0.0
        %3545 = vmatmul.mubr.f32.gmra.mrb[0].mxu0 %v3478
        %v3546 = vpop.f32.mrb[0].mxu0
        %v3547 = vadd.f32 0.0, %v3546
        %v3548 = vpop.f32.mrb[0].mxu0
        %3549 = vdwg.mxu0
        %v3550 = vld [vmem:[%s35] sm:$0xff]
        %v3551 = vld [vmem:[%s35 + $0x8] sm:$0xff]
        %v3552 = vld [vmem:[%s35 + $0x10] sm:$0xff]
        %v3553 = vld [vmem:[%s35 + $0x18] sm:$0xff]
        %v3554 = vld [vmem:[%s35 + $0x20] sm:$0xff]
        %v3555 = vld [vmem:[%s35 + $0x28] sm:$0xff]
        %v3556 = vld [vmem:[%s35 + $0x30] sm:$0xff]
        %v3557 = vld [vmem:[%s35 + $0x38] sm:$0xff]
        %v3559 = vsel %vm910, %v3319, 0
        %3561 = vmatprep.subr.mxu0 0.0
        %3562 = vmatpush1.msra.mxu0 %v3550
        %3563 = vmatprep.subr.mxu0 0.0
        %3564 = vmatpush1.msra.mxu0 %v3551
        %3565 = vmatprep.subr.mxu0 0.0
        %3566 = vmatpush1.msra.mxu0 0.0
        %3567 = vmatprep.subr.mxu0 0.0
        %3568 = vmatpush1.msra.mxu0 0.0
        %3569 = vmatprep.subr.mxu0 0.0
        %3570 = vmatpush1.msra.mxu0 0.0
        %3571 = vmatprep.subr.mxu0 0.0
        %3572 = vmatpush1.msra.mxu0 0.0
        %3573 = vmatprep.subr.mxu0 0.0
        %3574 = vmatpush1.msra.mxu0 0.0
        %3575 = vmatprep.subr.mxu0 0.0
        %3576 = vmatpush1.msra.mxu0 0.0
        %3577 = vmatprep.subr.mxu0 0.0
        %3578 = vmatpush1.msra.mxu0 0.0
        %3579 = vmatprep.subr.mxu0 0.0
        %3580 = vmatpush1.msra.mxu0 0.0
        %3581 = vmatprep.subr.mxu0 0.0
        %3582 = vmatpush1.msra.mxu0 0.0
        %3583 = vmatprep.subr.mxu0 0.0
        %3584 = vmatpush1.msra.mxu0 0.0
        %3585 = vmatprep.subr.mxu0 0.0
        %3586 = vmatpush1.msra.mxu0 0.0
        %3587 = vmatprep.subr.mxu0 0.0
        %3588 = vmatpush1.msra.mxu0 0.0
        %3589 = vmatprep.subr.mxu0 0.0
        %3590 = vmatpush1.msra.mxu0 0.0
        %3591 = vmatprep.subr.mxu0 0.0
        %3592 = vmatpush1.msra.mxu0 0.0
        %3593 = vmatprep.subr.mxu0 0.0
        %3594 = vmatpush1.msra.mxu0 0.0
        %3595 = vmatprep.subr.mxu0 0.0
        %3596 = vmatpush1.msra.mxu0 0.0
        %3597 = vmatprep.subr.mxu0 0.0
        %3598 = vmatpush1.msra.mxu0 0.0
        %3599 = vmatprep.subr.mxu0 0.0
        %3600 = vmatpush1.msra.mxu0 0.0
        %3601 = vmatprep.subr.mxu0 0.0
        %3602 = vmatpush1.msra.mxu0 0.0
        %3603 = vmatprep.subr.mxu0 0.0
        %3604 = vmatpush1.msra.mxu0 0.0
        %3605 = vmatprep.subr.mxu0 0.0
        %3606 = vmatpush1.msra.mxu0 0.0
        %3607 = vmatprep.subr.mxu0 0.0
        %3608 = vmatpush1.msra.mxu0 0.0
        %3609 = vmatprep.subr.mxu0 0.0
        %3610 = vmatpush1.msra.mxu0 0.0
        %3611 = vmatprep.subr.mxu0 0.0
        %3612 = vmatpush1.msra.mxu0 0.0
        %3613 = vmatprep.subr.mxu0 0.0
        %3614 = vmatpush1.msra.mxu0 0.0
        %3615 = vmatprep.subr.mxu0 0.0
        %3616 = vmatpush1.msra.mxu0 0.0
        %3617 = vmatprep.subr.mxu0 0.0
        %3618 = vmatpush1.msra.mxu0 0.0
        %3619 = vmatprep.subr.mxu0 0.0
        %3620 = vmatpush1.msra.mxu0 0.0
        %3621 = vmatprep.subr.mxu0 0.0
        %3622 = vmatpush1.msra.mxu0 0.0
        %3623 = vmatprep.subr.mxu0 0.0
        %3624 = vmatpush1.msra.mxu0 0.0
        %3625 = vmatprep.mubr.f32.mxu0 0.0
        %3626 = vmatmul.mubr.f32.gmra.mrb[0].mxu0 %v3559
        %v3627 = vpop.f32.mrb[0].mxu0
        %v3628 = vadd.f32 0.0, %v3627
        %v3629 = vpop.f32.mrb[0].mxu0
        %3630 = vdwg.mxu0
        %v3632 = vsel %vm910, %v3395, 0
        %3634 = vmatprep.subr.mxu0 0.0
        %3635 = vmatpush1.msra.mxu0 %v3552
        %3636 = vmatprep.subr.mxu0 0.0
        %3637 = vmatpush1.msra.mxu0 %v3553
        %3638 = vmatprep.subr.mxu0 0.0
        %3639 = vmatpush1.msra.mxu0 0.0
        %3640 = vmatprep.subr.mxu0 0.0
        %3641 = vmatpush1.msra.mxu0 0.0
        %3642 = vmatprep.subr.mxu0 0.0
        %3643 = vmatpush1.msra.mxu0 0.0
        %3644 = vmatprep.subr.mxu0 0.0
        %3645 = vmatpush1.msra.mxu0 0.0
        %3646 = vmatprep.subr.mxu0 0.0
        %3647 = vmatpush1.msra.mxu0 0.0
        %3648 = vmatprep.subr.mxu0 0.0
        %3649 = vmatpush1.msra.mxu0 0.0
        %3650 = vmatprep.subr.mxu0 0.0
        %3651 = vmatpush1.msra.mxu0 0.0
        %3652 = vmatprep.subr.mxu0 0.0
        %3653 = vmatpush1.msra.mxu0 0.0
        %3654 = vmatprep.subr.mxu0 0.0
        %3655 = vmatpush1.msra.mxu0 0.0
        %3656 = vmatprep.subr.mxu0 0.0
        %3657 = vmatpush1.msra.mxu0 0.0
        %3658 = vmatprep.subr.mxu0 0.0
        %3659 = vmatpush1.msra.mxu0 0.0
        %3660 = vmatprep.subr.mxu0 0.0
        %3661 = vmatpush1.msra.mxu0 0.0
        %3662 = vmatprep.subr.mxu0 0.0
        %3663 = vmatpush1.msra.mxu0 0.0
        %3664 = vmatprep.subr.mxu0 0.0
        %3665 = vmatpush1.msra.mxu0 0.0
        %3666 = vmatprep.subr.mxu0 0.0
        %3667 = vmatpush1.msra.mxu0 0.0
        %3668 = vmatprep.subr.mxu0 0.0
        %3669 = vmatpush1.msra.mxu0 0.0
        %3670 = vmatprep.subr.mxu0 0.0
        %3671 = vmatpush1.msra.mxu0 0.0
        %3672 = vmatprep.subr.mxu0 0.0
        %3673 = vmatpush1.msra.mxu0 0.0
        %3674 = vmatprep.subr.mxu0 0.0
        %3675 = vmatpush1.msra.mxu0 0.0
        %3676 = vmatprep.subr.mxu0 0.0
        %3677 = vmatpush1.msra.mxu0 0.0
        %3678 = vmatprep.subr.mxu0 0.0
        %3679 = vmatpush1.msra.mxu0 0.0
        %3680 = vmatprep.subr.mxu0 0.0
        %3681 = vmatpush1.msra.mxu0 0.0
        %3682 = vmatprep.subr.mxu0 0.0
        %3683 = vmatpush1.msra.mxu0 0.0
        %3684 = vmatprep.subr.mxu0 0.0
        %3685 = vmatpush1.msra.mxu0 0.0
        %3686 = vmatprep.subr.mxu0 0.0
        %3687 = vmatpush1.msra.mxu0 0.0
        %3688 = vmatprep.subr.mxu0 0.0
        %3689 = vmatpush1.msra.mxu0 0.0
        %3690 = vmatprep.subr.mxu0 0.0
        %3691 = vmatpush1.msra.mxu0 0.0
        %3692 = vmatprep.subr.mxu0 0.0
        %3693 = vmatpush1.msra.mxu0 0.0
        %3694 = vmatprep.subr.mxu0 0.0
        %3695 = vmatpush1.msra.mxu0 0.0
        %3696 = vmatprep.subr.mxu0 0.0
        %3697 = vmatpush1.msra.mxu0 0.0
        %3698 = vmatprep.mubr.f32.mxu0 0.0
        %3699 = vmatmul.mubr.f32.gmra.mrb[0].mxu0 %v3632
        %v3700 = vpop.f32.mrb[0].mxu0
        %v3701 = vadd.f32 0.0, %v3700
        %v3702 = vpop.f32.mrb[0].mxu0
        %3703 = vdwg.mxu0
        %v3705 = vsel %vm910, %v3471, 0
        %3707 = vmatprep.subr.mxu0 0.0
        %3708 = vmatpush1.msra.mxu0 %v3554
        %3709 = vmatprep.subr.mxu0 0.0
        %3710 = vmatpush1.msra.mxu0 %v3555
        %3711 = vmatprep.subr.mxu0 0.0
        %3712 = vmatpush1.msra.mxu0 0.0
        %3713 = vmatprep.subr.mxu0 0.0
        %3714 = vmatpush1.msra.mxu0 0.0
        %3715 = vmatprep.subr.mxu0 0.0
        %3716 = vmatpush1.msra.mxu0 0.0
        %3717 = vmatprep.subr.mxu0 0.0
        %3718 = vmatpush1.msra.mxu0 0.0
        %3719 = vmatprep.subr.mxu0 0.0
        %3720 = vmatpush1.msra.mxu0 0.0
        %3721 = vmatprep.subr.mxu0 0.0
        %3722 = vmatpush1.msra.mxu0 0.0
        %3723 = vmatprep.subr.mxu0 0.0
        %3724 = vmatpush1.msra.mxu0 0.0
        %3725 = vmatprep.subr.mxu0 0.0
        %3726 = vmatpush1.msra.mxu0 0.0
        %3727 = vmatprep.subr.mxu0 0.0
        %3728 = vmatpush1.msra.mxu0 0.0
        %3729 = vmatprep.subr.mxu0 0.0
        %3730 = vmatpush1.msra.mxu0 0.0
        %3731 = vmatprep.subr.mxu0 0.0
        %3732 = vmatpush1.msra.mxu0 0.0
        %3733 = vmatprep.subr.mxu0 0.0
        %3734 = vmatpush1.msra.mxu0 0.0
        %3735 = vmatprep.subr.mxu0 0.0
        %3736 = vmatpush1.msra.mxu0 0.0
        %3737 = vmatprep.subr.mxu0 0.0
        %3738 = vmatpush1.msra.mxu0 0.0
        %3739 = vmatprep.subr.mxu0 0.0
        %3740 = vmatpush1.msra.mxu0 0.0
        %3741 = vmatprep.subr.mxu0 0.0
        %3742 = vmatpush1.msra.mxu0 0.0
        %3743 = vmatprep.subr.mxu0 0.0
        %3744 = vmatpush1.msra.mxu0 0.0
        %3745 = vmatprep.subr.mxu0 0.0
        %3746 = vmatpush1.msra.mxu0 0.0
        %3747 = vmatprep.subr.mxu0 0.0
        %3748 = vmatpush1.msra.mxu0 0.0
        %3749 = vmatprep.subr.mxu0 0.0
        %3750 = vmatpush1.msra.mxu0 0.0
        %3751 = vmatprep.subr.mxu0 0.0
        %3752 = vmatpush1.msra.mxu0 0.0
        %3753 = vmatprep.subr.mxu0 0.0
        %3754 = vmatpush1.msra.mxu0 0.0
        %3755 = vmatprep.subr.mxu0 0.0
        %3756 = vmatpush1.msra.mxu0 0.0
        %3757 = vmatprep.subr.mxu0 0.0
        %3758 = vmatpush1.msra.mxu0 0.0
        %3759 = vmatprep.subr.mxu0 0.0
        %3760 = vmatpush1.msra.mxu0 0.0
        %3761 = vmatprep.subr.mxu0 0.0
        %3762 = vmatpush1.msra.mxu0 0.0
        %3763 = vmatprep.subr.mxu0 0.0
        %3764 = vmatpush1.msra.mxu0 0.0
        %3765 = vmatprep.subr.mxu0 0.0
        %3766 = vmatpush1.msra.mxu0 0.0
        %3767 = vmatprep.subr.mxu0 0.0
        %3768 = vmatpush1.msra.mxu0 0.0
        %3769 = vmatprep.subr.mxu0 0.0
        %3770 = vmatpush1.msra.mxu0 0.0
        %3771 = vmatprep.mubr.f32.mxu0 0.0
        %3772 = vmatmul.mubr.f32.gmra.mrb[0].mxu0 %v3705
        %v3773 = vpop.f32.mrb[0].mxu0
        %v3774 = vadd.f32 0.0, %v3773
        %v3775 = vpop.f32.mrb[0].mxu0
        %3776 = vdwg.mxu0
        %v3778 = vsel %vm910, %v3547, 0
        %3780 = vmatprep.subr.mxu0 0.0
        %3781 = vmatpush1.msra.mxu0 %v3556
        %3782 = vmatprep.subr.mxu0 0.0
        %3783 = vmatpush1.msra.mxu0 %v3557
        %3784 = vmatprep.subr.mxu0 0.0
        %3785 = vmatpush1.msra.mxu0 0.0
        %3786 = vmatprep.subr.mxu0 0.0
        %3787 = vmatpush1.msra.mxu0 0.0
        %3788 = vmatprep.subr.mxu0 0.0
        %3789 = vmatpush1.msra.mxu0 0.0
        %3790 = vmatprep.subr.mxu0 0.0
        %3791 = vmatpush1.msra.mxu0 0.0
        %3792 = vmatprep.subr.mxu0 0.0
        %3793 = vmatpush1.msra.mxu0 0.0
        %3794 = vmatprep.subr.mxu0 0.0
        %3795 = vmatpush1.msra.mxu0 0.0
        %3796 = vmatprep.subr.mxu0 0.0
        %3797 = vmatpush1.msra.mxu0 0.0
        %3798 = vmatprep.subr.mxu0 0.0
        %3799 = vmatpush1.msra.mxu0 0.0
        %3800 = vmatprep.subr.mxu0 0.0
        %3801 = vmatpush1.msra.mxu0 0.0
        %3802 = vmatprep.subr.mxu0 0.0
        %3803 = vmatpush1.msra.mxu0 0.0
        %3804 = vmatprep.subr.mxu0 0.0
        %3805 = vmatpush1.msra.mxu0 0.0
        %3806 = vmatprep.subr.mxu0 0.0
        %3807 = vmatpush1.msra.mxu0 0.0
        %3808 = vmatprep.subr.mxu0 0.0
        %3809 = vmatpush1.msra.mxu0 0.0
        %3810 = vmatprep.subr.mxu0 0.0
        %3811 = vmatpush1.msra.mxu0 0.0
        %3812 = vmatprep.subr.mxu0 0.0
        %3813 = vmatpush1.msra.mxu0 0.0
        %3814 = vmatprep.subr.mxu0 0.0
        %3815 = vmatpush1.msra.mxu0 0.0
        %3816 = vmatprep.subr.mxu0 0.0
        %3817 = vmatpush1.msra.mxu0 0.0
        %3818 = vmatprep.subr.mxu0 0.0
        %3819 = vmatpush1.msra.mxu0 0.0
        %3820 = vmatprep.subr.mxu0 0.0
        %3821 = vmatpush1.msra.mxu0 0.0
        %3822 = vmatprep.subr.mxu0 0.0
        %3823 = vmatpush1.msra.mxu0 0.0
        %3824 = vmatprep.subr.mxu0 0.0
        %3825 = vmatpush1.msra.mxu0 0.0
        %3826 = vmatprep.subr.mxu0 0.0
        %3827 = vmatpush1.msra.mxu0 0.0
        %3828 = vmatprep.subr.mxu0 0.0
        %3829 = vmatpush1.msra.mxu0 0.0
        %3830 = vmatprep.subr.mxu0 0.0
        %3831 = vmatpush1.msra.mxu0 0.0
        %3832 = vmatprep.subr.mxu0 0.0
        %3833 = vmatpush1.msra.mxu0 0.0
        %3834 = vmatprep.subr.mxu0 0.0
        %3835 = vmatpush1.msra.mxu0 0.0
        %3836 = vmatprep.subr.mxu0 0.0
        %3837 = vmatpush1.msra.mxu0 0.0
        %3838 = vmatprep.subr.mxu0 0.0
        %3839 = vmatpush1.msra.mxu0 0.0
        %3840 = vmatprep.subr.mxu0 0.0
        %3841 = vmatpush1.msra.mxu0 0.0
        %3842 = vmatprep.subr.mxu0 0.0
        %3843 = vmatpush1.msra.mxu0 0.0
        %3844 = vmatprep.mubr.f32.mxu0 0.0
        %3845 = vmatmul.mubr.f32.gmra.mrb[0].mxu0 %v3778
        %v3846 = vpop.f32.mrb[0].mxu0
        %v3847 = vadd.f32 0.0, %v3846
        %v3848 = vpop.f32.mrb[0].mxu0
        %3849 = vdwg.mxu0
        %v3850 = vsel %vm1044, %v3628, 0.0
        %v3851 = vsel %vm1044, %v3701, 0.0
        %v3852 = vadd.f32 %v3850, %v3851
        %v3853 = vsel %vm1044, %v3774, 0.0
        %v3854 = vadd.f32 %v3852, %v3853
        %v3855 = vsel %vm1044, %v3847, 0.0
        %v3856 = vadd.f32 %v3854, %v3855
        %v3857 = vld [vmem:[%s37] sm:$0x1]
        %v3859 = vlaneseq
        %v3860 = vshrl.u32 %v3859, 7
        %v3861 = vsub.s32 0, %v3860
        %v3862 = vrot.slane %v3857, %v3861
        %v3864 = vadd.f32 %v3856, %v3862
        %v3865 = vadd.f32 %v2546, %v3864
        %v3866 = vld [vmem:[%s39] sm:$0x1]
        %v3867 = vld [vmem:[%s41] sm:$0x1]
        %v3868 = vsel %vm1044, %v3865, 0.0
        %3869 = vadd.xlane.f32.xlu0 %v3868
        %v3870 = vpop.xlane.xlu0 %3869
        %v3871 = vmul.f32 %v3870, %v2310
        %v3872 = vsub.f32 %v3865, %v3871
        %v3873 = vmul.f32 %v3872, %v3872
        %v3874 = vsel %vm1044, %v3873, 0.0
        %3875 = vadd.xlane.f32.xlu0 %v3874
        %v3876 = vpop.xlane.xlu0 %3875
        %v3877 = vmul.f32 %v3876, %v2310
        %v3878 = vadd.f32 %v3877, 1e-05
        %v3879 = vrsqrt.pop %v3878
        %v3880 = vmul.f32 %v3872, %v3879
        %v3882 = vlaneseq
        %v3883 = vshrl.u32 %v3882, 7
        %v3884 = vsub.s32 0, %v3883
        %v3885 = vrot.slane %v3866, %v3884
        %v3887 = vmul.f32 %v3880, %v3885
        %v3889 = vlaneseq
        %v3890 = vshrl.u32 %v3889, 7
        %v3891 = vsub.s32 0, %v3890
        %v3892 = vrot.slane %v3867, %v3891
        %v3894 = vadd.f32 %v3887, %v3892
        %v3895 = vld [vmem:[%s43] sm:$0xff]
        %v3896 = vld [vmem:[%s43 + $0x8] sm:$0xff]
        %v3897 = vld [vmem:[%s43 + $0x10] sm:$0xff]
        %v3898 = vld [vmem:[%s43 + $0x18] sm:$0xff]
        %v3899 = vld [vmem:[%s43 + $0x20] sm:$0xff]
        %v3900 = vld [vmem:[%s43 + $0x28] sm:$0xff]
        %v3901 = vld [vmem:[%s43 + $0x30] sm:$0xff]
        %v3902 = vld [vmem:[%s43 + $0x38] sm:$0xff]
        %v3903 = vld [vmem:[%s45] sm:$0x1]
        %v3905 = vlaneseq
        %v3906 = vshrl.u32 %v3905, 7
        %v3907 = vsub.s32 0, %v3906
        %v3908 = vrot.slane %v3903, %v3907
        %v3911 = vsel %vm1044, %v3894, 0
        %3913 = vmatprep.subr.mxu0 0.0
        %3914 = vmatpush1.msra.mxu0 %v3895
        %3915 = vmatprep.subr.mxu0 0.0
        %3916 = vmatpush1.msra.mxu0 %v3896
        %3917 = vmatprep.subr.mxu0 0.0
        %3918 = vmatpush1.msra.mxu0 %v3897
        %3919 = vmatprep.subr.mxu0 0.0
        %3920 = vmatpush1.msra.mxu0 %v3898
        %3921 = vmatprep.subr.mxu0 0.0
        %3922 = vmatpush1.msra.mxu0 %v3899
        %3923 = vmatprep.subr.mxu0 0.0
        %3924 = vmatpush1.msra.mxu0 %v3900
        %3925 = vmatprep.subr.mxu0 0.0
        %3926 = vmatpush1.msra.mxu0 %v3901
        %3927 = vmatprep.subr.mxu0 0.0
        %3928 = vmatpush1.msra.mxu0 %v3902
        %3929 = vmatprep.subr.mxu0 0.0
        %3930 = vmatpush1.msra.mxu0 0.0
        %3931 = vmatprep.subr.mxu0 0.0
        %3932 = vmatpush1.msra.mxu0 0.0
        %3933 = vmatprep.subr.mxu0 0.0
        %3934 = vmatpush1.msra.mxu0 0.0
        %3935 = vmatprep.subr.mxu0 0.0
        %3936 = vmatpush1.msra.mxu0 0.0
        %3937 = vmatprep.subr.mxu0 0.0
        %3938 = vmatpush1.msra.mxu0 0.0
        %3939 = vmatprep.subr.mxu0 0.0
        %3940 = vmatpush1.msra.mxu0 0.0
        %3941 = vmatprep.subr.mxu0 0.0
        %3942 = vmatpush1.msra.mxu0 0.0
        %3943 = vmatprep.subr.mxu0 0.0
        %3944 = vmatpush1.msra.mxu0 0.0
        %3945 = vmatprep.subr.mxu0 0.0
        %3946 = vmatpush1.msra.mxu0 0.0
        %3947 = vmatprep.subr.mxu0 0.0
        %3948 = vmatpush1.msra.mxu0 0.0
        %3949 = vmatprep.subr.mxu0 0.0
        %3950 = vmatpush1.msra.mxu0 0.0
        %3951 = vmatprep.subr.mxu0 0.0
        %3952 = vmatpush1.msra.mxu0 0.0
        %3953 = vmatprep.subr.mxu0 0.0
        %3954 = vmatpush1.msra.mxu0 0.0
        %3955 = vmatprep.subr.mxu0 0.0
        %3956 = vmatpush1.msra.mxu0 0.0
        %3957 = vmatprep.subr.mxu0 0.0
        %3958 = vmatpush1.msra.mxu0 0.0
        %3959 = vmatprep.subr.mxu0 0.0
        %3960 = vmatpush1.msra.mxu0 0.0
        %3961 = vmatprep.subr.mxu0 0.0
        %3962 = vmatpush1.msra.mxu0 0.0
        %3963 = vmatprep.subr.mxu0 0.0
        %3964 = vmatpush1.msra.mxu0 0.0
        %3965 = vmatprep.subr.mxu0 0.0
        %3966 = vmatpush1.msra.mxu0 0.0
        %3967 = vmatprep.subr.mxu0 0.0
        %3968 = vmatpush1.msra.mxu0 0.0
        %3969 = vmatprep.subr.mxu0 0.0
        %3970 = vmatpush1.msra.mxu0 0.0
        %3971 = vmatprep.subr.mxu0 0.0
        %3972 = vmatpush1.msra.mxu0 0.0
        %3973 = vmatprep.subr.mxu0 0.0
        %3974 = vmatpush1.msra.mxu0 0.0
        %3975 = vmatprep.subr.mxu0 0.0
        %3976 = vmatpush1.msra.mxu0 0.0
        %3977 = vmatprep.mubr.f32.mxu0 0.0
        %3978 = vmatmul.mubr.f32.gmra.mrb[0].mxu0 %v3911
        %v3979 = vpop.f32.mrb[0].mxu0
        %v3980 = vadd.f32 %v3908, %v3979
        %v3981 = vpop.f32.mrb[0].mxu0
        %3982 = vdwg.mxu0
        %v3983 = vmax.f32 %v3980, 0.0
        %v3984 = vld [vmem:[%s47] sm:$0xff]
        %v3985 = vld [vmem:[%s47 + $0x8] sm:$0xff]
        %v3986 = vld [vmem:[%s47 + $0x10] sm:$0xff]
        %v3987 = vld [vmem:[%s47 + $0x18] sm:$0xff]
        %v3988 = vld [vmem:[%s47 + $0x20] sm:$0xff]
        %v3989 = vld [vmem:[%s47 + $0x28] sm:$0xff]
        %v3990 = vld [vmem:[%s47 + $0x30] sm:$0xff]
        %v3991 = vld [vmem:[%s47 + $0x38] sm:$0xff]
        %v3992 = vld [vmem:[%s47 + $0x40] sm:$0xff]
        %v3993 = vld [vmem:[%s47 + $0x48] sm:$0xff]
        %v3994 = vld [vmem:[%s47 + $0x50] sm:$0xff]
        %v3995 = vld [vmem:[%s47 + $0x58] sm:$0xff]
        %v3996 = vld [vmem:[%s47 + $0x60] sm:$0xff]
        %v3997 = vld [vmem:[%s47 + $0x68] sm:$0xff]
        %v3998 = vld [vmem:[%s47 + $0x70] sm:$0xff]
        %v3999 = vld [vmem:[%s47 + $0x78] sm:$0xff]
        %v4000 = vld [vmem:[%s49] sm:$0x1]
        %v4002 = vlaneseq
        %v4003 = vshrl.u32 %v4002, 7
        %v4004 = vsub.s32 0, %v4003
        %v4005 = vrot.slane %v4000, %v4004
        %4007 = vmatprep.subr.mxu0 0.0
        %4008 = vmatpush1.msra.mxu0 %v3984
        %4009 = vmatprep.subr.mxu0 0.0
        %4010 = vmatpush1.msra.mxu0 %v3985
        %4011 = vmatprep.subr.mxu0 0.0
        %4012 = vmatpush1.msra.mxu0 %v3986
        %4013 = vmatprep.subr.mxu0 0.0
        %4014 = vmatpush1.msra.mxu0 %v3987
        %4015 = vmatprep.subr.mxu0 0.0
        %4016 = vmatpush1.msra.mxu0 %v3988
        %4017 = vmatprep.subr.mxu0 0.0
        %4018 = vmatpush1.msra.mxu0 %v3989
        %4019 = vmatprep.subr.mxu0 0.0
        %4020 = vmatpush1.msra.mxu0 %v3990
        %4021 = vmatprep.subr.mxu0 0.0
        %4022 = vmatpush1.msra.mxu0 %v3991
        %4023 = vmatprep.subr.mxu0 0.0
        %4024 = vmatpush1.msra.mxu0 %v3992
        %4025 = vmatprep.subr.mxu0 0.0
        %4026 = vmatpush1.msra.mxu0 %v3993
        %4027 = vmatprep.subr.mxu0 0.0
        %4028 = vmatpush1.msra.mxu0 %v3994
        %4029 = vmatprep.subr.mxu0 0.0
        %4030 = vmatpush1.msra.mxu0 %v3995
        %4031 = vmatprep.subr.mxu0 0.0
        %4032 = vmatpush1.msra.mxu0 %v3996
        %4033 = vmatprep.subr.mxu0 0.0
        %4034 = vmatpush1.msra.mxu0 %v3997
        %4035 = vmatprep.subr.mxu0 0.0
        %4036 = vmatpush1.msra.mxu0 %v3998
        %4037 = vmatprep.subr.mxu0 0.0
        %4038 = vmatpush1.msra.mxu0 %v3999
        %4039 = vmatprep.subr.mxu0 0.0
        %4040 = vmatpush1.msra.mxu0 0.0
        %4041 = vmatprep.subr.mxu0 0.0
        %4042 = vmatpush1.msra.mxu0 0.0
        %4043 = vmatprep.subr.mxu0 0.0
        %4044 = vmatpush1.msra.mxu0 0.0
        %4045 = vmatprep.subr.mxu0 0.0
        %4046 = vmatpush1.msra.mxu0 0.0
        %4047 = vmatprep.subr.mxu0 0.0
        %4048 = vmatpush1.msra.mxu0 0.0
        %4049 = vmatprep.subr.mxu0 0.0
        %4050 = vmatpush1.msra.mxu0 0.0
        %4051 = vmatprep.subr.mxu0 0.0
        %4052 = vmatpush1.msra.mxu0 0.0
        %4053 = vmatprep.subr.mxu0 0.0
        %4054 = vmatpush1.msra.mxu0 0.0
        %4055 = vmatprep.subr.mxu0 0.0
        %4056 = vmatpush1.msra.mxu0 0.0
        %4057 = vmatprep.subr.mxu0 0.0
        %4058 = vmatpush1.msra.mxu0 0.0
        %4059 = vmatprep.subr.mxu0 0.0
        %4060 = vmatpush1.msra.mxu0 0.0
        %4061 = vmatprep.subr.mxu0 0.0
        %4062 = vmatpush1.msra.mxu0 0.0
        %4063 = vmatprep.subr.mxu0 0.0
        %4064 = vmatpush1.msra.mxu0 0.0
        %4065 = vmatprep.subr.mxu0 0.0
        %4066 = vmatpush1.msra.mxu0 0.0
        %4067 = vmatprep.subr.mxu0 0.0
        %4068 = vmatpush1.msra.mxu0 0.0
        %4069 = vmatprep.subr.mxu0 0.0
        %4070 = vmatpush1.msra.mxu0 0.0
        %4071 = vmatprep.mubr.f32.mxu0 0.0
        %4072 = vmatmul.mubr.f32.gmra.mrb[0].mxu0 %v3983
        %v4073 = vpop.f32.mrb[0].mxu0
        %v4074 = vadd.f32 %v4005, %v4073
        %v4075 = vpop.f32.mrb[0].mxu0
        %4076 = vdwg.mxu0
        %v4077 = vadd.f32 %v3894, %v4074
        %v4078 = vld [vmem:[%s51] sm:$0x1]
        %v4079 = vld [vmem:[%s53] sm:$0x1]
        %v4080 = vsel %vm1044, %v4077, 0.0
        %4081 = vadd.xlane.f32.xlu0 %v4080
        %v4082 = vpop.xlane.xlu0 %4081
        %v4083 = vmul.f32 %v4082, %v2310
        %v4084 = vsub.f32 %v4077, %v4083
        %v4085 = vmul.f32 %v4084, %v4084
        %v4086 = vsel %vm1044, %v4085, 0.0
        %4087 = vadd.xlane.f32.xlu0 %v4086
        %v4088 = vpop.xlane.xlu0 %4087
        %v4089 = vmul.f32 %v4088, %v2310
        %v4090 = vadd.f32 %v4089, 1e-05
        %v4091 = vrsqrt.pop %v4090
        %v4092 = vmul.f32 %v4084, %v4091
        %v4094 = vlaneseq
        %v4095 = vshrl.u32 %v4094, 7
        %v4096 = vsub.s32 0, %v4095
        %v4097 = vrot.slane %v4078, %v4096
        %v4099 = vmul.f32 %v4092, %v4097
        %v4101 = vlaneseq
        %v4102 = vshrl.u32 %v4101, 7
        %v4103 = vsub.s32 0, %v4102
        %v4104 = vrot.slane %v4079, %v4103
        %v4106 = vadd.f32 %v4099, %v4104
        %v4107 = vld [vmem:[%s55] sm:$0xff]
        %v4108 = vld [vmem:[%s55 + $0x8] sm:$0xff]
        %v4109 = vld [vmem:[%s55 + $0x10] sm:$0xff]
        %v4110 = vld [vmem:[%s55 + $0x18] sm:$0xff]
        %v4111 = vld [vmem:[%s55 + $0x20] sm:$0xff]
        %v4112 = vld [vmem:[%s55 + $0x28] sm:$0xff]
        %v4113 = vld [vmem:[%s55 + $0x30] sm:$0xff]
        %v4114 = vld [vmem:[%s55 + $0x38] sm:$0xff]
        %v4115 = vld [vmem:[%s57] sm:$0x1]
        %v4117 = vlaneseq
        %v4118 = vshrl.u32 %v4117, 7
        %v4119 = vsub.s32 0, %v4118
        %v4120 = vrot.slane %v4115, %v4119
        %v4123 = vsel %vm1044, %v4106, 0
        %4125 = vmatprep.subr.mxu0 0.0
        %4126 = vmatpush1.msra.mxu0 %v4107
        %4127 = vmatprep.subr.mxu0 0.0
        %4128 = vmatpush1.msra.mxu0 %v4108
        %4129 = vmatprep.subr.mxu0 0.0
        %4130 = vmatpush1.msra.mxu0 %v4109
        %4131 = vmatprep.subr.mxu0 0.0
        %4132 = vmatpush1.msra.mxu0 %v4110
        %4133 = vmatprep.subr.mxu0 0.0
        %4134 = vmatpush1.msra.mxu0 %v4111
        %4135 = vmatprep.subr.mxu0 0.0
        %4136 = vmatpush1.msra.mxu0 %v4112
        %4137 = vmatprep.subr.mxu0 0.0
        %4138 = vmatpush1.msra.mxu0 %v4113
        %4139 = vmatprep.subr.mxu0 0.0
        %4140 = vmatpush1.msra.mxu0 %v4114
        %4141 = vmatprep.subr.mxu0 0.0
        %4142 = vmatpush1.msra.mxu0 0.0
        %4143 = vmatprep.subr.mxu0 0.0
        %4144 = vmatpush1.msra.mxu0 0.0
        %4145 = vmatprep.subr.mxu0 0.0
        %4146 = vmatpush1.msra.mxu0 0.0
        %4147 = vmatprep.subr.mxu0 0.0
        %4148 = vmatpush1.msra.mxu0 0.0
        %4149 = vmatprep.subr.mxu0 0.0
        %4150 = vmatpush1.msra.mxu0 0.0
        %4151 = vmatprep.subr.mxu0 0.0
        %4152 = vmatpush1.msra.mxu0 0.0
        %4153 = vmatprep.subr.mxu0 0.0
        %4154 = vmatpush1.msra.mxu0 0.0
        %4155 = vmatprep.subr.mxu0 0.0
        %4156 = vmatpush1.msra.mxu0 0.0
        %4157 = vmatprep.subr.mxu0 0.0
        %4158 = vmatpush1.msra.mxu0 0.0
        %4159 = vmatprep.subr.mxu0 0.0
        %4160 = vmatpush1.msra.mxu0 0.0
        %4161 = vmatprep.subr.mxu0 0.0
        %4162 = vmatpush1.msra.mxu0 0.0
        %4163 = vmatprep.subr.mxu0 0.0
        %4164 = vmatpush1.msra.mxu0 0.0
        %4165 = vmatprep.subr.mxu0 0.0
        %4166 = vmatpush1.msra.mxu0 0.0
        %4167 = vmatprep.subr.mxu0 0.0
        %4168 = vmatpush1.msra.mxu0 0.0
        %4169 = vmatprep.subr.mxu0 0.0
        %4170 = vmatpush1.msra.mxu0 0.0
        %4171 = vmatprep.subr.mxu0 0.0
        %4172 = vmatpush1.msra.mxu0 0.0
        %4173 = vmatprep.subr.mxu0 0.0
        %4174 = vmatpush1.msra.mxu0 0.0
        %4175 = vmatprep.subr.mxu0 0.0
        %4176 = vmatpush1.msra.mxu0 0.0
        %4177 = vmatprep.subr.mxu0 0.0
        %4178 = vmatpush1.msra.mxu0 0.0
        %4179 = vmatprep.subr.mxu0 0.0
        %4180 = vmatpush1.msra.mxu0 0.0
        %4181 = vmatprep.subr.mxu0 0.0
        %4182 = vmatpush1.msra.mxu0 0.0
        %4183 = vmatprep.subr.mxu0 0.0
        %4184 = vmatpush1.msra.mxu0 0.0
        %4185 = vmatprep.subr.mxu0 0.0
        %4186 = vmatpush1.msra.mxu0 0.0
        %4187 = vmatprep.subr.mxu0 0.0
        %4188 = vmatpush1.msra.mxu0 0.0
        %4189 = vmatprep.mubr.f32.mxu0 0.0
        %4190 = vmatmul.mubr.f32.gmra.mrb[0].mxu0 %v4123
        %v4191 = vpop.f32.mrb[0].mxu0
        %v4192 = vadd.f32 %v4120, %v4191
        %v4193 = vpop.f32.mrb[0].mxu0
        %4194 = vdwg.mxu0
        %4195 = vst [vmem:[%s893] sm:$0xff] %v4192
        %s4196 = sand.u32 %s695, 1
        %s4197 = scalar_lea.sflag [#allocation3], %s4196
        %s4198 = sand.u32 %s695, 1
        %s4199 = smul.addr %s4198, 8
        %s4200 = scalar_lea.vmem [#allocation2], %s4199
        // Predicated region
        $region137: #{transformer_forward.1} parent=135 // pred_check
          %p4201 = pneg %p705
        $region138: #{transformer_forward.1} parent=135 // pred_check_branch
          %4203 = sbr.rel (%p4201) target = $region140
        $region139: #{transformer_forward.1} parent=135 // pred_region
          %s4205 = ssub.s32 128, 128
          %4206 = vsyncadd %s4197, %s4205
          %s4207 = smul.addr %s73, 128
          %s4208 = scalar_lea.hbm %s59, %s4207
          %s4210 = sshll.u32 %s4200, 4
          %s4211 = int_to_ptr.vmem [resolvable:$true] %s4210
          %4213 = dma.vmem_to_hbm [thread:$0]  %s4211, 128, %s4208, %s4197
        $region140: #{transformer_forward.1} parent=135 // pred_fallthru
          _
      $region136: #{transformer_forward.1} parent=5 // pred_fallthru
        _
      %p4214 = scmp.le.s32.totalorder 2, %s68
      // Predicated region
      $region141: #{transformer_forward.1} parent=5 // pred_check
        %p4215 = pneg %p4214
      $region142: #{transformer_forward.1} parent=5 // pred_check_branch
        %4217 = sbr.rel (%p4215) target = $region144
      $region143: #{transformer_forward.1} parent=5 // pred_region
        %s4218 = ssub.s32 %s68, 2
        // Predicated region
        $region145: #{transformer_forward.1} parent=143 // pred_check
          %p4219 = pneg %p711
        $region146: #{transformer_forward.1} parent=143 // pred_check_branch
          %4221 = sbr.rel (%p4219) target = $region148
        $region147: #{transformer_forward.1} parent=143 // pred_region
          %s4222 = sand.u32 %s696, 1
          %s4223 = scalar_lea.sflag [#allocation3], %s4222
          %s4224 = sand.u32 %s696, 1
          %s4225 = smul.addr %s4224, 8
          %s4226 = scalar_lea.vmem [#allocation2], %s4225
          %4227 = dma.done %s4223, 128
        $region148: #{transformer_forward.1} parent=143 // pred_fallthru
          _
      $region144: #{transformer_forward.1} parent=5 // pred_fallthru
        _
    $region6: #{transformer_forward.1} parent=1 // loop_footer
      %s72 = sadd.s32 1, %s68
    $region7: #{transformer_forward.1} parent=1 // loop_footer_branch
      %67 = sbr.rel target = $region3
    $region8: #{transformer_forward.1} parent=1 // loop_exit
      _
    %4228 = vsyncpa [#allocation3], 1
    %s4229 = scalar_lea.sflag [#allocation3], 1
    %4230 = vsyncpa %s4229, 1

</llo_original>
